<compile_context>
chip_gen: v6e
topology: v6e:2x2x1
jax: 0.10.0
libtpu: 0.0.40
codegen_flags: <defaults>
</compile_context>

<pallas_src>
import functools

import jax
import jax.numpy as jnp
from jax.experimental import pallas as pl
from jax.experimental.pallas import tpu as pltpu


def _round_up(x, m):
    return ((x + m - 1) // m) * m


def _full_spec(arr):
    """Full-array block (exempt from the (8,128) rule); used with grid=(1,)."""
    return pl.BlockSpec(arr.shape, lambda i, nd=arr.ndim: (0,) * nd)


# ----------------------------------------------------------------------------
# Pallas kernels
# ----------------------------------------------------------------------------
def _gemm_bias_relu_kernel(x_ref, w_ref, b_ref, o_ref):
    """out = relu(x @ w + bias); bf16 MXU inputs, f32 accumulate/epilogue."""
    y = jnp.dot(x_ref[...], w_ref[...], preferred_element_type=jnp.float32)
    o_ref[...] = jnp.maximum(y + b_ref[...], 0.0).astype(o_ref.dtype)


def _fused_tail_kernel(p2_ref, w2_ref, t2_ref, w3_ref, t3_ref, a_ref,
                       w1c_ref, w1a_ref, b1_ref, wf2_ref, bf2_ref,
                       o_ref, y2_scr, *, batch, kpos):
    """conv2+bn2+relu -> conv3+bn3+relu -> fc1+relu -> fc2, all in VMEM.

    p2 rows are ordered (oy, ox, b) (spatial-major, batch-minor) so the conv3
    window (which covers conv2's entire kpos=25 spatial output) reduces to
    `kpos` accumulated (batch, 32) @ (32, 32) dots over contiguous row blocks.
    """
    # conv2 (GEMM over im2col patches) + folded-BN bias + ReLU
    y2 = jnp.dot(p2_ref[...], w2_ref[...], preferred_element_type=jnp.float32)
    y2_scr[...] = jnp.maximum(y2 + t2_ref[...], 0.0).astype(y2_scr.dtype)

    # conv3 + folded-BN bias + ReLU (kernel position r == conv2 spatial pos r)
    y3 = jnp.zeros((batch, 32), jnp.float32)
    for r in range(kpos):
        y3 = y3 + jnp.dot(y2_scr[r * batch:(r + 1) * batch, :],
                          w3_ref[r * 32:(r + 1) * 32, :],
                          preferred_element_type=jnp.float32)
    y3 = jnp.maximum(y3 + t3_ref[...], 0.0).astype(jnp.bfloat16)      # (B, 32)

    # fc1: conv-feature block + action block (pre-split weights, no concat)
    h = jnp.dot(y3, w1c_ref[...], preferred_element_type=jnp.float32)
    h = h + jnp.dot(a_ref[...], w1a_ref[...],
                    preferred_element_type=jnp.float32)
    h = jnp.maximum(h + b1_ref[...], 0.0).astype(jnp.bfloat16)        # (B, 128)

    # fc2
    out = jnp.dot(h, wf2_ref[...], preferred_element_type=jnp.float32)
    o_ref[...] = (out + bf2_ref[...]).astype(o_ref.dtype)


# ----------------------------------------------------------------------------
# pallas_call wrappers
# ----------------------------------------------------------------------------
def conv_gemm(p, w, bias, *, out_dtype=jnp.bfloat16):
    """Single-block GEMM: relu(p @ w + bias). Everything VMEM-resident."""
    M, K = p.shape
    K2, N = w.shape
    assert K == K2, (K, K2)
    return pl.pallas_call(
        _gemm_bias_relu_kernel,
        out_shape=jax.ShapeDtypeStruct((M, N), out_dtype),
        grid=(1,),
        in_specs=[_full_spec(p), _full_spec(w), _full_spec(bias)],
        out_specs=pl.BlockSpec((M, N), lambda i: (0, 0)),
    )(p, w, bias)


def fused_tail(p2, a_bf16, prep):
    """One pallas_call for conv2+bn2+relu + conv3+bn3+relu + fc1+relu + fc2."""
    w2m, t2 = prep["conv2"]
    w3m, t3 = prep["conv3"]
    fc = prep["fc"]
    batch = a_bf16.shape[0]
    kpos = w3m.shape[0] // 32                       # 25 conv3 kernel positions
    assert p2.shape[0] == kpos * batch, (p2.shape, kpos, batch)
    args = (p2, w2m, t2, w3m, t3, a_bf16,
            fc["w1c"], fc["w1a"], fc["b1"], fc["w2"], fc["b2"])
    kernel = functools.partial(_fused_tail_kernel, batch=batch, kpos=kpos)
    return pl.pallas_call(
        kernel,
        out_shape=jax.ShapeDtypeStruct((batch, 1), jnp.float32),
        grid=(1,),
        in_specs=[_full_spec(arr) for arr in args],
        out_specs=pl.BlockSpec((batch, 1), lambda i: (0, 0)),
        scratch_shapes=[pltpu.VMEM((kpos * batch, 32), jnp.bfloat16)],
    )(*args)


# ----------------------------------------------------------------------------
# Glue: im2col patch extraction (plain JAX, fused under jit)
# ----------------------------------------------------------------------------
def im2col(x_nhwc, ksize, stride, *, spatial_major=False, k_pad_to=128):
    """Patch matrix. Rows (b,oy,ox) or (oy,ox,b); cols (ky,kx,ci), K zero-padded."""
    n, h, w, c = x_nhwc.shape
    oh = (h - ksize) // stride + 1
    ow = (w - ksize) // stride + 1
    cols = []
    for i in range(ksize):
        for j in range(ksize):
            cols.append(x_nhwc[:, i:i + stride * (oh - 1) + 1:stride,
                                  j:j + stride * (ow - 1) + 1:stride, :])
    p = jnp.stack(cols, axis=3)                          # (n, oh, ow, k*k, c)
    if spatial_major:
        p = jnp.transpose(p, (1, 2, 0, 3, 4))            # (oh, ow, n, k*k, c)
    p = p.reshape(-1, ksize * ksize * c)
    k = ksize * ksize * c
    kp = _round_up(k, k_pad_to)
    if kp != k:
        p = jnp.pad(p, ((0, 0), (0, kp - k)))
    return p, (n, oh, ow)


# ----------------------------------------------------------------------------
# One-time weight preparation (hoisted out of the forward hot path)
# ----------------------------------------------------------------------------
def prepare_params(params, actions, eps=1e-5):
    prep = {}
    for name in ("1", "2", "3"):
        w, b = params["conv" + name]
        gamma, beta, mean, var = params["bn" + name]
        cout, cin, kh, kw = w.shape
        k = kh * kw * cin
        scale = gamma / jnp.sqrt(var + eps)                       # (cout,)
        shift = beta + (b - mean) * scale                         # (cout,)
        wmat = jnp.transpose(w, (2, 3, 1, 0)).reshape(k, cout)    # (ky,kx,ci) rows
        wmat = (wmat * scale[None, :]).astype(jnp.bfloat16)       # fold BN scale
        if name in ("1", "2"):                                    # patch-GEMM K pad
            kp = _round_up(k, 128)
            wmat = jnp.pad(wmat, ((0, kp - k), (0, 0)))
        prep["conv" + name] = (wmat, shift.reshape(1, cout).astype(jnp.float32))

    wf1, bf1 = params["fc1"]           # (128, lin_in), (128,)
    wf2, bf2 = params["fc2"]           # (1, 128), (1,)
    conv_feat = wf1.shape[1] - actions
    prep["fc"] = dict(
        w1c=wf1[:, :conv_feat].T.astype(jnp.bfloat16),            # (conv_feat, 128)
        w1a=wf1[:, conv_feat:].T.astype(jnp.bfloat16),            # (A, 128), no pad
        b1=bf1.reshape(1, -1).astype(jnp.float32),
        w2=wf2.T.astype(jnp.bfloat16),                            # (128, 1)
        b2=bf2.reshape(1, 1).astype(jnp.float32),
    )
    return prep


# ----------------------------------------------------------------------------
# ValueNet forward (jit-wrapped at the call site)
# ----------------------------------------------------------------------------
def value_net_forward(prep, x_nchw, a):
    x = jnp.transpose(x_nchw, (0, 2, 3, 1)).astype(jnp.bfloat16)   # NCHW -> NHWC
    b = x.shape[0]

    # conv1 + bn1 + relu : one full-block GEMM kernel, M = B*14*14 (no padding)
    w1m, t1 = prep["conv1"]
    p1, (_, oh1, ow1) = im2col(x, 5, 2)
    y1 = conv_gemm(p1, w1m, t1).reshape(b, oh1, ow1, w1m.shape[1])

    # conv2 patch matrix (spatial-major rows) feeds the fully fused tail kernel
    p2, (_, oh2, ow2) = im2col(y1, 5, 2, spatial_major=True)
    assert oh2 == 5 and ow2 == 5, (
        "fused tail kernel assumes conv2 output 5x5 / conv3 output 1x1 "
        f"(got {oh2}x{ow2}); use a 32x32-class input")
    return fused_tail(p2, a.astype(jnp.bfloat16), prep)


# ----------------------------------------------------------------------------
# Pure-JAX f32 reference (numerical sanity check)
# ----------------------------------------------------------------------------
def reference_forward(params, x, a, eps=1e-5):
    def conv_bn_relu(x, wb, bn):
        w, b = wb
        gamma, beta, mean, var = bn
        y = jax.lax.conv_general_dilated(
            x, w, window_strides=(2, 2), padding="VALID",
            dimension_numbers=("NCHW", "OIHW", "NCHW"))
        y = y + b.reshape(1, -1, 1, 1)
        y = (gamma.reshape(1, -1, 1, 1) * (y - mean.reshape(1, -1, 1, 1))
             / jnp.sqrt(var.reshape(1, -1, 1, 1) + eps) + beta.reshape(1, -1, 1, 1))
        return jnp.maximum(y, 0.0)

    x = conv_bn_relu(x, params["conv1"], params["bn1"])
    x = conv_bn_relu(x, params["conv2"], params["bn2"])
    x = conv_bn_relu(x, params["conv3"], params["bn3"])
    flat = x.reshape(x.shape[0], -1)
    h = jnp.concatenate([flat, a], axis=1)
    w1, b1 = params["fc1"]
    w2, b2 = params["fc2"]
    h = jnp.maximum(h @ w1.T + b1, 0.0)
    return h @ w2.T + b2


# ----------------------------------------------------------------------------
# Deterministic parameter init (shapes from ValueNet.__init__)
# ----------------------------------------------------------------------------
def conv2d_size_out(size, kernel_size=5, stride=2):
    return (size - (kernel_size - 1) - 1) // stride + 1


def init_params(key, h, w, actions):
    convw = conv2d_size_out(conv2d_size_out(conv2d_size_out(w)))
    convh = conv2d_size_out(conv2d_size_out(conv2d_size_out(h)))
    lin_in = convw * convh * 32 + actions

    keys = iter(jax.random.split(key, 32))

    def conv_p(cout, cin):
        return (0.05 * jax.random.normal(next(keys), (cout, cin, 5, 5), jnp.float32),
                0.05 * jax.random.normal(next(keys), (cout,), jnp.float32))

    def bn_p(c):
        return (jax.random.uniform(next(keys), (c,), jnp.float32, 0.5, 1.5),   # gamma
                0.1 * jax.random.normal(next(keys), (c,), jnp.float32),        # beta
                0.1 * jax.random.normal(next(keys), (c,), jnp.float32),        # mean
                jax.random.uniform(next(keys), (c,), jnp.float32, 0.5, 1.5))   # var

    def fc_p(cout, cin):
        return (0.05 * jax.random.normal(next(keys), (cout, cin), jnp.float32),
                0.05 * jax.random.normal(next(keys), (cout,), jnp.float32))

    return {
        "conv1": conv_p(16, 3), "bn1": bn_p(16),
        "conv2": conv_p(32, 16), "bn2": bn_p(32),
        "conv3": conv_p(32, 32), "bn3": bn_p(32),
        "fc1": fc_p(128, lin_in), "fc2": fc_p(1, 128),
    }


if __name__ == "__main__":
    H = W = 32          # smallest convenient size surviving three stride-2 5x5 convs
    BATCH = 2
    ACTIONS = 4

    key = jax.random.PRNGKey(0)
    kp, kx, ka = jax.random.split(key, 3)

    params = init_params(kp, H, W, ACTIONS)
    prep = prepare_params(params, ACTIONS)        # one-time weight folding/packing
    x = jax.random.normal(kx, (BATCH, 3, H, W), jnp.float32)   # NCHW, like PyTorch
    a = jax.random.normal(ka, (BATCH, ACTIONS), jnp.float32)

    forward = jax.jit(value_net_forward)
    out = jax.block_until_ready(forward(prep, x, a))
    assert out.shape == (BATCH, 1), out.shape

    ref = jax.block_until_ready(reference_forward(params, x, a))
    max_err = float(jnp.max(jnp.abs(out - ref)))
    assert max_err < 5e-2, f"mismatch vs f32 reference: {max_err}"

    print("KERNEL_OK")
</pallas_src>

<mosaic_0001>
module attributes {stable_mosaic.version = 11 : i64} {
  func.func @_gemm_bias_relu_kernel(%arg0: i32, %arg1: memref<392x128xbf16, #tpu.memory_space<vmem>>, %arg2: memref<128x16xbf16, #tpu.memory_space<vmem>>, %arg3: memref<1x16xf32, #tpu.memory_space<vmem>>, %arg4: memref<392x16xbf16, #tpu.memory_space<vmem>>) attributes {dimension_semantics = [#tpu.dimension_semantics<arbitrary>], iteration_bounds = array<i64: 1>, scalar_prefetch = 0 : i64, scratch_operands = 0 : i64, tpu.core_type = #tpu.core_type<tc>, window_params = [{pipeline_mode = #tpu.pipeline_mode<synchronous>, transform_indices = @transform_0, window_bounds = array<i64: 392, 128>}, {pipeline_mode = #tpu.pipeline_mode<synchronous>, transform_indices = @transform_1, window_bounds = array<i64: 128, 16>}, {pipeline_mode = #tpu.pipeline_mode<synchronous>, transform_indices = @transform_2, window_bounds = array<i64: 1, 16>}, {pipeline_mode = #tpu.pipeline_mode<synchronous>, transform_indices = @transform_3, window_bounds = array<i64: 392, 16>}]} {
    %c0 = arith.constant 0 : index
    %c0_0 = arith.constant 0 : index
    %0 = vector.load %arg1[%c0, %c0_0] : memref<392x128xbf16, #tpu.memory_space<vmem>>, vector<392x128xbf16>
    %c0_1 = arith.constant 0 : index
    %c0_2 = arith.constant 0 : index
    %1 = vector.load %arg2[%c0_1, %c0_2] : memref<128x16xbf16, #tpu.memory_space<vmem>>, vector<128x16xbf16>
    %cst = arith.constant dense<0.000000e+00> : vector<392x16xf32>
    %2 = tpu.matmul %0, %1, %cst {dimension_numbers = #tpu.dot_dimension_numbers<[1], [0], [0], [1], [0, 0, 1, 1], [], []>} : vector<392x128xbf16>, vector<128x16xbf16>, vector<392x16xf32> -> vector<392x16xf32>
    %c0_3 = arith.constant 0 : index
    %c0_4 = arith.constant 0 : index
    %3 = vector.load %arg3[%c0_3, %c0_4] : memref<1x16xf32, #tpu.memory_space<vmem>>, vector<1x16xf32>
    %4 = vector.broadcast %3 : vector<1x16xf32> to vector<392x16xf32>
    %5 = arith.addf %2, %4 : vector<392x16xf32>
    %cst_5 = arith.constant 0.000000e+00 : f32
    %6 = vector.broadcast %cst_5 : f32 to vector<392x16xf32>
    %7 = arith.maximumf %5, %6 : vector<392x16xf32>
    %8 = arith.truncf %7 : vector<392x16xf32> to vector<392x16xbf16>
    %c0_6 = arith.constant 0 : index
    %c0_7 = arith.constant 0 : index
    %9 = vector.load %arg4[%c0_6, %c0_7] : memref<392x16xbf16, #tpu.memory_space<vmem>>, vector<392x16xbf16>
    tpu.vector_store %arg4[%c0_6, %c0_7], %8 {strides = array<i32>} : memref<392x16xbf16, #tpu.memory_space<vmem>>, vector<392x16xbf16>,
    return
  }
  func.func @transform_0(%arg0: i32) -> (i32, i32) {
    %c0_i32 = arith.constant 0 : i32
    %c0_i32_0 = arith.constant 0 : i32
    %c0_i32_1 = arith.constant 0 : i32
    return %c0_i32, %c0_i32_0 : i32, i32
  }
  func.func @transform_1(%arg0: i32) -> (i32, i32) {
    %c0_i32 = arith.constant 0 : i32
    %c0_i32_0 = arith.constant 0 : i32
    %c0_i32_1 = arith.constant 0 : i32
    return %c0_i32, %c0_i32_0 : i32, i32
  }
  func.func @transform_2(%arg0: i32) -> (i32, i32) {
    %c0_i32 = arith.constant 0 : i32
    %c0_i32_0 = arith.constant 0 : i32
    %c0_i32_1 = arith.constant 0 : i32
    return %c0_i32, %c0_i32_0 : i32, i32
  }
  func.func @transform_3(%arg0: i32) -> (i32, i32) {
    %c0_i32 = arith.constant 0 : i32
    %c0_i32_0 = arith.constant 0 : i32
    %c0_i32_1 = arith.constant 0 : i32
    return %c0_i32, %c0_i32_0 : i32, i32
  }
}

module attributes {stable_mosaic.version = 11 : i64} {
  func.func @_fused_tail_kernel(%arg0: i32, %arg1: memref<50x512xbf16, #tpu.memory_space<vmem>>, %arg2: memref<512x32xbf16, #tpu.memory_space<vmem>>, %arg3: memref<1x32xf32, #tpu.memory_space<vmem>>, %arg4: memref<800x32xbf16, #tpu.memory_space<vmem>>, %arg5: memref<1x32xf32, #tpu.memory_space<vmem>>, %arg6: memref<2x4xbf16, #tpu.memory_space<vmem>>, %arg7: memref<32x128xbf16, #tpu.memory_space<vmem>>, %arg8: memref<4x128xbf16, #tpu.memory_space<vmem>>, %arg9: memref<1x128xf32, #tpu.memory_space<vmem>>, %arg10: memref<128x1xbf16, #tpu.memory_space<vmem>>, %arg11: memref<1x1xf32, #tpu.memory_space<vmem>>, %arg12: memref<2x1xf32, #tpu.memory_space<vmem>>, %arg13: memref<50x32xbf16, #tpu.memory_space<vmem>>) attributes {dimension_semantics = [#tpu.dimension_semantics<arbitrary>], iteration_bounds = array<i64: 1>, scalar_prefetch = 0 : i64, scratch_operands = 1 : i64, tpu.core_type = #tpu.core_type<tc>, window_params = [{pipeline_mode = #tpu.pipeline_mode<synchronous>, transform_indices = @transform_0, window_bounds = array<i64: 50, 512>}, {pipeline_mode = #tpu.pipeline_mode<synchronous>, transform_indices = @transform_1, window_bounds = array<i64: 512, 32>}, {pipeline_mode = #tpu.pipeline_mode<synchronous>, transform_indices = @transform_2, window_bounds = array<i64: 1, 32>}, {pipeline_mode = #tpu.pipeline_mode<synchronous>, transform_indices = @transform_3, window_bounds = array<i64: 800, 32>}, {pipeline_mode = #tpu.pipeline_mode<synchronous>, transform_indices = @transform_4, window_bounds = array<i64: 1, 32>}, {pipeline_mode = #tpu.pipeline_mode<synchronous>, transform_indices = @transform_5, window_bounds = array<i64: 2, 4>}, {pipeline_mode = #tpu.pipeline_mode<synchronous>, transform_indices = @transform_6, window_bounds = array<i64: 32, 128>}, {pipeline_mode = #tpu.pipeline_mode<synchronous>, transform_indices = @transform_7, window_bounds = array<i64: 4, 128>}, {pipeline_mode = #tpu.pipeline_mode<synchronous>, transform_indices = @transform_8, window_bounds = array<i64: 1, 128>}, {pipeline_mode = #tpu.pipeline_mode<synchronous>, transform_indices = @transform_9, window_bounds = array<i64: 128, 1>}, {pipeline_mode = #tpu.pipeline_mode<synchronous>, transform_indices = @transform_10, window_bounds = array<i64: 1, 1>}, {pipeline_mode = #tpu.pipeline_mode<synchronous>, transform_indices = @transform_11, window_bounds = array<i64: 2, 1>}]} {
    %c0 = arith.constant 0 : index
    %c0_0 = arith.constant 0 : index
    %0 = vector.load %arg1[%c0, %c0_0] : memref<50x512xbf16, #tpu.memory_space<vmem>>, vector<50x512xbf16>
    %c0_1 = arith.constant 0 : index
    %c0_2 = arith.constant 0 : index
    %1 = vector.load %arg2[%c0_1, %c0_2] : memref<512x32xbf16, #tpu.memory_space<vmem>>, vector<512x32xbf16>
    %cst = arith.constant dense<0.000000e+00> : vector<50x32xf32>
    %2 = tpu.matmul %0, %1, %cst {dimension_numbers = #tpu.dot_dimension_numbers<[1], [0], [0], [1], [0, 0, 1, 1], [], []>} : vector<50x512xbf16>, vector<512x32xbf16>, vector<50x32xf32> -> vector<50x32xf32>
    %c0_3 = arith.constant 0 : index
    %c0_4 = arith.constant 0 : index
    %3 = vector.load %arg3[%c0_3, %c0_4] : memref<1x32xf32, #tpu.memory_space<vmem>>, vector<1x32xf32>
    %4 = vector.broadcast %3 : vector<1x32xf32> to vector<50x32xf32>
    %5 = arith.addf %2, %4 : vector<50x32xf32>
    %cst_5 = arith.constant 0.000000e+00 : f32
    %6 = vector.broadcast %cst_5 : f32 to vector<50x32xf32>
    %7 = arith.maximumf %5, %6 : vector<50x32xf32>
    %8 = arith.truncf %7 : vector<50x32xf32> to vector<50x32xbf16>
    %c0_6 = arith.constant 0 : index
    %c0_7 = arith.constant 0 : index
    %9 = vector.load %arg13[%c0_6, %c0_7] : memref<50x32xbf16, #tpu.memory_space<vmem>>, vector<50x32xbf16>
    tpu.vector_store %arg13[%c0_6, %c0_7], %8 {strides = array<i32>} : memref<50x32xbf16, #tpu.memory_space<vmem>>, vector<50x32xbf16>,
    %cst_8 = arith.constant 0.000000e+00 : f32
    %10 = vector.broadcast %cst_8 : f32 to vector<2x32xf32>
    %c0_9 = arith.constant 0 : index
    %c0_10 = arith.constant 0 : index
    %11 = vector.load %arg13[%c0_9, %c0_10] : memref<50x32xbf16, #tpu.memory_space<vmem>>, vector<2x32xbf16>
    %c0_11 = arith.constant 0 : index
    %c0_12 = arith.constant 0 : index
    %12 = vector.load %arg4[%c0_11, %c0_12] : memref<800x32xbf16, #tpu.memory_space<vmem>>, vector<32x32xbf16>
    %cst_13 = arith.constant dense<0.000000e+00> : vector<2x32xf32>
    %13 = tpu.matmul %11, %12, %cst_13 {dimension_numbers = #tpu.dot_dimension_numbers<[1], [0], [0], [1], [0, 0, 1, 1], [], []>} : vector<2x32xbf16>, vector<32x32xbf16>, vector<2x32xf32> -> vector<2x32xf32>
    %14 = arith.addf %10, %13 : vector<2x32xf32>
    %c2 = arith.constant 2 : index
    %c0_14 = arith.constant 0 : index
    %15 = vector.load %arg13[%c2, %c0_14] : memref<50x32xbf16, #tpu.memory_space<vmem>>, vector<2x32xbf16>
    %c32 = arith.constant 32 : index
    %c0_15 = arith.constant 0 : index
    %16 = vector.load %arg4[%c32, %c0_15] : memref<800x32xbf16, #tpu.memory_space<vmem>>, vector<32x32xbf16>
    %cst_16 = arith.constant dense<0.000000e+00> : vector<2x32xf32>
    %17 = tpu.matmul %15, %16, %cst_16 {dimension_numbers = #tpu.dot_dimension_numbers<[1], [0], [0], [1], [0, 0, 1, 1], [], []>} : vector<2x32xbf16>, vector<32x32xbf16>, vector<2x32xf32> -> vector<2x32xf32>
    %18 = arith.addf %14, %17 : vector<2x32xf32>
    %c4 = arith.constant 4 : index
    %c0_17 = arith.constant 0 : index
    %19 = vector.load %arg13[%c4, %c0_17] : memref<50x32xbf16, #tpu.memory_space<vmem>>, vector<2x32xbf16>
    %c64 = arith.constant 64 : index
    %c0_18 = arith.constant 0 : index
    %20 = vector.load %arg4[%c64, %c0_18] : memref<800x32xbf16, #tpu.memory_space<vmem>>, vector<32x32xbf16>
    %cst_19 = arith.constant dense<0.000000e+00> : vector<2x32xf32>
    %21 = tpu.matmul %19, %20, %cst_19 {dimension_numbers = #tpu.dot_dimension_numbers<[1], [0], [0], [1], [0, 0, 1, 1], [], []>} : vector<2x32xbf16>, vector<32x32xbf16>, vector<2x32xf32> -> vector<2x32xf32>
    %22 = arith.addf %18, %21 : vector<2x32xf32>
    %c6 = arith.constant 6 : index
    %c0_20 = arith.constant 0 : index
    %23 = vector.load %arg13[%c6, %c0_20] : memref<50x32xbf16, #tpu.memory_space<vmem>>, vector<2x32xbf16>
    %c96 = arith.constant 96 : index
    %c0_21 = arith.constant 0 : index
    %24 = vector.load %arg4[%c96, %c0_21] : memref<800x32xbf16, #tpu.memory_space<vmem>>, vector<32x32xbf16>
    %cst_22 = arith.constant dense<0.000000e+00> : vector<2x32xf32>
    %25 = tpu.matmul %23, %24, %cst_22 {dimension_numbers = #tpu.dot_dimension_numbers<[1], [0], [0], [1], [0, 0, 1, 1], [], []>} : vector<2x32xbf16>, vector<32x32xbf16>, vector<2x32xf32> -> vector<2x32xf32>
    %26 = arith.addf %22, %25 : vector<2x32xf32>
    %c8 = arith.constant 8 : index
    %c0_23 = arith.constant 0 : index
    %27 = vector.load %arg13[%c8, %c0_23] : memref<50x32xbf16, #tpu.memory_space<vmem>>, vector<2x32xbf16>
    %c128 = arith.constant 128 : index
    %c0_24 = arith.constant 0 : index
    %28 = vector.load %arg4[%c128, %c0_24] : memref<800x32xbf16, #tpu.memory_space<vmem>>, vector<32x32xbf16>
    %cst_25 = arith.constant dense<0.000000e+00> : vector<2x32xf32>
    %29 = tpu.matmul %27, %28, %cst_25 {dimension_numbers = #tpu.dot_dimension_numbers<[1], [0], [0], [1], [0, 0, 1, 1], [], []>} : vector<2x32xbf16>, vector<32x32xbf16>, vector<2x32xf32> -> vector<2x32xf32>
    %30 = arith.addf %26, %29 : vector<2x32xf32>
    %c10 = arith.constant 10 : index
    %c0_26 = arith.constant 0 : index
    %31 = vector.load %arg13[%c10, %c0_26] : memref<50x32xbf16, #tpu.memory_space<vmem>>, vector<2x32xbf16>
    %c160 = arith.constant 160 : index
    %c0_27 = arith.constant 0 : index
    %32 = vector.load %arg4[%c160, %c0_27] : memref<800x32xbf16, #tpu.memory_space<vmem>>, vector<32x32xbf16>
    %cst_28 = arith.constant dense<0.000000e+00> : vector<2x32xf32>
    %33 = tpu.matmul %31, %32, %cst_28 {dimension_numbers = #tpu.dot_dimension_numbers<[1], [0], [0], [1], [0, 0, 1, 1], [], []>} : vector<2x32xbf16>, vector<32x32xbf16>, vector<2x32xf32> -> vector<2x32xf32>
    %34 = arith.addf %30, %33 : vector<2x32xf32>
    %c12 = arith.constant 12 : index
    %c0_29 = arith.constant 0 : index
    %35 = vector.load %arg13[%c12, %c0_29] : memref<50x32xbf16, #tpu.memory_space<vmem>>, vector<2x32xbf16>
    %c192 = arith.constant 192 : index
    %c0_30 = arith.constant 0 : index
    %36 = vector.load %arg4[%c192, %c0_30] : memref<800x32xbf16, #tpu.memory_space<vmem>>, vector<32x32xbf16>
    %cst_31 = arith.constant dense<0.000000e+00> : vector<2x32xf32>
    %37 = tpu.matmul %35, %36, %cst_31 {dimension_numbers = #tpu.dot_dimension_numbers<[1], [0], [0], [1], [0, 0, 1, 1], [], []>} : vector<2x32xbf16>, vector<32x32xbf16>, vector<2x32xf32> -> vector<2x32xf32>
    %38 = arith.addf %34, %37 : vector<2x32xf32>
    %c14 = arith.constant 14 : index
    %c0_32 = arith.constant 0 : index
    %39 = vector.load %arg13[%c14, %c0_32] : memref<50x32xbf16, #tpu.memory_space<vmem>>, vector<2x32xbf16>
    %c224 = arith.constant 224 : index
    %c0_33 = arith.constant 0 : index
    %40 = vector.load %arg4[%c224, %c0_33] : memref<800x32xbf16, #tpu.memory_space<vmem>>, vector<32x32xbf16>
    %cst_34 = arith.constant dense<0.000000e+00> : vector<2x32xf32>
    %41 = tpu.matmul %39, %40, %cst_34 {dimension_numbers = #tpu.dot_dimension_numbers<[1], [0], [0], [1], [0, 0, 1, 1], [], []>} : vector<2x32xbf16>, vector<32x32xbf16>, vector<2x32xf32> -> vector<2x32xf32>
    %42 = arith.addf %38, %41 : vector<2x32xf32>
    %c16 = arith.constant 16 : index
    %c0_35 = arith.constant 0 : index
    %43 = vector.load %arg13[%c16, %c0_35] : memref<50x32xbf16, #tpu.memory_space<vmem>>, vector<2x32xbf16>
    %c256 = arith.constant 256 : index
    %c0_36 = arith.constant 0 : index
    %44 = vector.load %arg4[%c256, %c0_36] : memref<800x32xbf16, #tpu.memory_space<vmem>>, vector<32x32xbf16>
    %cst_37 = arith.constant dense<0.000000e+00> : vector<2x32xf32>
    %45 = tpu.matmul %43, %44, %cst_37 {dimension_numbers = #tpu.dot_dimension_numbers<[1], [0], [0], [1], [0, 0, 1, 1], [], []>} : vector<2x32xbf16>, vector<32x32xbf16>, vector<2x32xf32> -> vector<2x32xf32>
    %46 = arith.addf %42, %45 : vector<2x32xf32>
    %c18 = arith.constant 18 : index
    %c0_38 = arith.constant 0 : index
    %47 = vector.load %arg13[%c18, %c0_38] : memref<50x32xbf16, #tpu.memory_space<vmem>>, vector<2x32xbf16>
    %c288 = arith.constant 288 : index
    %c0_39 = arith.constant 0 : index
    %48 = vector.load %arg4[%c288, %c0_39] : memref<800x32xbf16, #tpu.memory_space<vmem>>, vector<32x32xbf16>
    %cst_40 = arith.constant dense<0.000000e+00> : vector<2x32xf32>
    %49 = tpu.matmul %47, %48, %cst_40 {dimension_numbers = #tpu.dot_dimension_numbers<[1], [0], [0], [1], [0, 0, 1, 1], [], []>} : vector<2x32xbf16>, vector<32x32xbf16>, vector<2x32xf32> -> vector<2x32xf32>
    %50 = arith.addf %46, %49 : vector<2x32xf32>
    %c20 = arith.constant 20 : index
    %c0_41 = arith.constant 0 : index
    %51 = vector.load %arg13[%c20, %c0_41] : memref<50x32xbf16, #tpu.memory_space<vmem>>, vector<2x32xbf16>
    %c320 = arith.constant 320 : index
    %c0_42 = arith.constant 0 : index
    %52 = vector.load %arg4[%c320, %c0_42] : memref<800x32xbf16, #tpu.memory_space<vmem>>, vector<32x32xbf16>
    %cst_43 = arith.constant dense<0.000000e+00> : vector<2x32xf32>
    %53 = tpu.matmul %51, %52, %cst_43 {dimension_numbers = #tpu.dot_dimension_numbers<[1], [0], [0], [1], [0, 0, 1, 1], [], []>} : vector<2x32xbf16>, vector<32x32xbf16>, vector<2x32xf32> -> vector<2x32xf32>
    %54 = arith.addf %50, %53 : vector<2x32xf32>
    %c22 = arith.constant 22 : index
    %c0_44 = arith.constant 0 : index
    %55 = vector.load %arg13[%c22, %c0_44] : memref<50x32xbf16, #tpu.memory_space<vmem>>, vector<2x32xbf16>
    %c352 = arith.constant 352 : index
    %c0_45 = arith.constant 0 : index
    %56 = vector.load %arg4[%c352, %c0_45] : memref<800x32xbf16, #tpu.memory_space<vmem>>, vector<32x32xbf16>
    %cst_46 = arith.constant dense<0.000000e+00> : vector<2x32xf32>
    %57 = tpu.matmul %55, %56, %cst_46 {dimension_numbers = #tpu.dot_dimension_numbers<[1], [0], [0], [1], [0, 0, 1, 1], [], []>} : vector<2x32xbf16>, vector<32x32xbf16>, vector<2x32xf32> -> vector<2x32xf32>
    %58 = arith.addf %54, %57 : vector<2x32xf32>
    %c24 = arith.constant 24 : index
    %c0_47 = arith.constant 0 : index
    %59 = vector.load %arg13[%c24, %c0_47] : memref<50x32xbf16, #tpu.memory_space<vmem>>, vector<2x32xbf16>
    %c384 = arith.constant 384 : index
    %c0_48 = arith.constant 0 : index
    %60 = vector.load %arg4[%c384, %c0_48] : memref<800x32xbf16, #tpu.memory_space<vmem>>, vector<32x32xbf16>
    %cst_49 = arith.constant dense<0.000000e+00> : vector<2x32xf32>
    %61 = tpu.matmul %59, %60, %cst_49 {dimension_numbers = #tpu.dot_dimension_numbers<[1], [0], [0], [1], [0, 0, 1, 1], [], []>} : vector<2x32xbf16>, vector<32x32xbf16>, vector<2x32xf32> -> vector<2x32xf32>
    %62 = arith.addf %58, %61 : vector<2x32xf32>
    %c26 = arith.constant 26 : index
    %c0_50 = arith.constant 0 : index
    %63 = vector.load %arg13[%c26, %c0_50] : memref<50x32xbf16, #tpu.memory_space<vmem>>, vector<2x32xbf16>
    %c416 = arith.constant 416 : index
    %c0_51 = arith.constant 0 : index
    %64 = vector.load %arg4[%c416, %c0_51] : memref<800x32xbf16, #tpu.memory_space<vmem>>, vector<32x32xbf16>
    %cst_52 = arith.constant dense<0.000000e+00> : vector<2x32xf32>
    %65 = tpu.matmul %63, %64, %cst_52 {dimension_numbers = #tpu.dot_dimension_numbers<[1], [0], [0], [1], [0, 0, 1, 1], [], []>} : vector<2x32xbf16>, vector<32x32xbf16>, vector<2x32xf32> -> vector<2x32xf32>
    %66 = arith.addf %62, %65 : vector<2x32xf32>
    %c28 = arith.constant 28 : index
    %c0_53 = arith.constant 0 : index
    %67 = vector.load %arg13[%c28, %c0_53] : memref<50x32xbf16, #tpu.memory_space<vmem>>, vector<2x32xbf16>
    %c448 = arith.constant 448 : index
    %c0_54 = arith.constant 0 : index
    %68 = vector.load %arg4[%c448, %c0_54] : memref<800x32xbf16, #tpu.memory_space<vmem>>, vector<32x32xbf16>
    %cst_55 = arith.constant dense<0.000000e+00> : vector<2x32xf32>
    %69 = tpu.matmul %67, %68, %cst_55 {dimension_numbers = #tpu.dot_dimension_numbers<[1], [0], [0], [1], [0, 0, 1, 1], [], []>} : vector<2x32xbf16>, vector<32x32xbf16>, vector<2x32xf32> -> vector<2x32xf32>
    %70 = arith.addf %66, %69 : vector<2x32xf32>
    %c30 = arith.constant 30 : index
    %c0_56 = arith.constant 0 : index
    %71 = vector.load %arg13[%c30, %c0_56] : memref<50x32xbf16, #tpu.memory_space<vmem>>, vector<2x32xbf16>
    %c480 = arith.constant 480 : index
    %c0_57 = arith.constant 0 : index
    %72 = vector.load %arg4[%c480, %c0_57] : memref<800x32xbf16, #tpu.memory_space<vmem>>, vector<32x32xbf16>
    %cst_58 = arith.constant dense<0.000000e+00> : vector<2x32xf32>
    %73 = tpu.matmul %71, %72, %cst_58 {dimension_numbers = #tpu.dot_dimension_numbers<[1], [0], [0], [1], [0, 0, 1, 1], [], []>} : vector<2x32xbf16>, vector<32x32xbf16>, vector<2x32xf32> -> vector<2x32xf32>
    %74 = arith.addf %70, %73 : vector<2x32xf32>
    %c32_59 = arith.constant 32 : index
    %c0_60 = arith.constant 0 : index
    %75 = vector.load %arg13[%c32_59, %c0_60] : memref<50x32xbf16, #tpu.memory_space<vmem>>, vector<2x32xbf16>
    %c512 = arith.constant 512 : index
    %c0_61 = arith.constant 0 : index
    %76 = vector.load %arg4[%c512, %c0_61] : memref<800x32xbf16, #tpu.memory_space<vmem>>, vector<32x32xbf16>
    %cst_62 = arith.constant dense<0.000000e+00> : vector<2x32xf32>
    %77 = tpu.matmul %75, %76, %cst_62 {dimension_numbers = #tpu.dot_dimension_numbers<[1], [0], [0], [1], [0, 0, 1, 1], [], []>} : vector<2x32xbf16>, vector<32x32xbf16>, vector<2x32xf32> -> vector<2x32xf32>
    %78 = arith.addf %74, %77 : vector<2x32xf32>
    %c34 = arith.constant 34 : index
    %c0_63 = arith.constant 0 : index
    %79 = vector.load %arg13[%c34, %c0_63] : memref<50x32xbf16, #tpu.memory_space<vmem>>, vector<2x32xbf16>
    %c544 = arith.constant 544 : index
    %c0_64 = arith.constant 0 : index
    %80 = vector.load %arg4[%c544, %c0_64] : memref<800x32xbf16, #tpu.memory_space<vmem>>, vector<32x32xbf16>
    %cst_65 = arith.constant dense<0.000000e+00> : vector<2x32xf32>
    %81 = tpu.matmul %79, %80, %cst_65 {dimension_numbers = #tpu.dot_dimension_numbers<[1], [0], [0], [1], [0, 0, 1, 1], [], []>} : vector<2x32xbf16>, vector<32x32xbf16>, vector<2x32xf32> -> vector<2x32xf32>
    %82 = arith.addf %78, %81 : vector<2x32xf32>
    %c36 = arith.constant 36 : index
    %c0_66 = arith.constant 0 : index
    %83 = vector.load %arg13[%c36, %c0_66] : memref<50x32xbf16, #tpu.memory_space<vmem>>, vector<2x32xbf16>
    %c576 = arith.constant 576 : index
    %c0_67 = arith.constant 0 : index
    %84 = vector.load %arg4[%c576, %c0_67] : memref<800x32xbf16, #tpu.memory_space<vmem>>, vector<32x32xbf16>
    %cst_68 = arith.constant dense<0.000000e+00> : vector<2x32xf32>
    %85 = tpu.matmul %83, %84, %cst_68 {dimension_numbers = #tpu.dot_dimension_numbers<[1], [0], [0], [1], [0, 0, 1, 1], [], []>} : vector<2x32xbf16>, vector<32x32xbf16>, vector<2x32xf32> -> vector<2x32xf32>
    %86 = arith.addf %82, %85 : vector<2x32xf32>
    %c38 = arith.constant 38 : index
    %c0_69 = arith.constant 0 : index
    %87 = vector.load %arg13[%c38, %c0_69] : memref<50x32xbf16, #tpu.memory_space<vmem>>, vector<2x32xbf16>
    %c608 = arith.constant 608 : index
    %c0_70 = arith.constant 0 : index
    %88 = vector.load %arg4[%c608, %c0_70] : memref<800x32xbf16, #tpu.memory_space<vmem>>, vector<32x32xbf16>
    %cst_71 = arith.constant dense<0.000000e+00> : vector<2x32xf32>
    %89 = tpu.matmul %87, %88, %cst_71 {dimension_numbers = #tpu.dot_dimension_numbers<[1], [0], [0], [1], [0, 0, 1, 1], [], []>} : vector<2x32xbf16>, vector<32x32xbf16>, vector<2x32xf32> -> vector<2x32xf32>
    %90 = arith.addf %86, %89 : vector<2x32xf32>
    %c40 = arith.constant 40 : index
    %c0_72 = arith.constant 0 : index
    %91 = vector.load %arg13[%c40, %c0_72] : memref<50x32xbf16, #tpu.memory_space<vmem>>, vector<2x32xbf16>
    %c640 = arith.constant 640 : index
    %c0_73 = arith.constant 0 : index
    %92 = vector.load %arg4[%c640, %c0_73] : memref<800x32xbf16, #tpu.memory_space<vmem>>, vector<32x32xbf16>
    %cst_74 = arith.constant dense<0.000000e+00> : vector<2x32xf32>
    %93 = tpu.matmul %91, %92, %cst_74 {dimension_numbers = #tpu.dot_dimension_numbers<[1], [0], [0], [1], [0, 0, 1, 1], [], []>} : vector<2x32xbf16>, vector<32x32xbf16>, vector<2x32xf32> -> vector<2x32xf32>
    %94 = arith.addf %90, %93 : vector<2x32xf32>
    %c42 = arith.constant 42 : index
    %c0_75 = arith.constant 0 : index
    %95 = vector.load %arg13[%c42, %c0_75] : memref<50x32xbf16, #tpu.memory_space<vmem>>, vector<2x32xbf16>
    %c672 = arith.constant 672 : index
    %c0_76 = arith.constant 0 : index
    %96 = vector.load %arg4[%c672, %c0_76] : memref<800x32xbf16, #tpu.memory_space<vmem>>, vector<32x32xbf16>
    %cst_77 = arith.constant dense<0.000000e+00> : vector<2x32xf32>
    %97 = tpu.matmul %95, %96, %cst_77 {dimension_numbers = #tpu.dot_dimension_numbers<[1], [0], [0], [1], [0, 0, 1, 1], [], []>} : vector<2x32xbf16>, vector<32x32xbf16>, vector<2x32xf32> -> vector<2x32xf32>
    %98 = arith.addf %94, %97 : vector<2x32xf32>
    %c44 = arith.constant 44 : index
    %c0_78 = arith.constant 0 : index
    %99 = vector.load %arg13[%c44, %c0_78] : memref<50x32xbf16, #tpu.memory_space<vmem>>, vector<2x32xbf16>
    %c704 = arith.constant 704 : index
    %c0_79 = arith.constant 0 : index
    %100 = vector.load %arg4[%c704, %c0_79] : memref<800x32xbf16, #tpu.memory_space<vmem>>, vector<32x32xbf16>
    %cst_80 = arith.constant dense<0.000000e+00> : vector<2x32xf32>
    %101 = tpu.matmul %99, %100, %cst_80 {dimension_numbers = #tpu.dot_dimension_numbers<[1], [0], [0], [1], [0, 0, 1, 1], [], []>} : vector<2x32xbf16>, vector<32x32xbf16>, vector<2x32xf32> -> vector<2x32xf32>
    %102 = arith.addf %98, %101 : vector<2x32xf32>
    %c46 = arith.constant 46 : index
    %c0_81 = arith.constant 0 : index
    %103 = vector.load %arg13[%c46, %c0_81] : memref<50x32xbf16, #tpu.memory_space<vmem>>, vector<2x32xbf16>
    %c736 = arith.constant 736 : index
    %c0_82 = arith.constant 0 : index
    %104 = vector.load %arg4[%c736, %c0_82] : memref<800x32xbf16, #tpu.memory_space<vmem>>, vector<32x32xbf16>
    %cst_83 = arith.constant dense<0.000000e+00> : vector<2x32xf32>
    %105 = tpu.matmul %103, %104, %cst_83 {dimension_numbers = #tpu.dot_dimension_numbers<[1], [0], [0], [1], [0, 0, 1, 1], [], []>} : vector<2x32xbf16>, vector<32x32xbf16>, vector<2x32xf32> -> vector<2x32xf32>
    %106 = arith.addf %102, %105 : vector<2x32xf32>
    %c48 = arith.constant 48 : index
    %c0_84 = arith.constant 0 : index
    %107 = vector.load %arg13[%c48, %c0_84] : memref<50x32xbf16, #tpu.memory_space<vmem>>, vector<2x32xbf16>
    %c768 = arith.constant 768 : index
    %c0_85 = arith.constant 0 : index
    %108 = vector.load %arg4[%c768, %c0_85] : memref<800x32xbf16, #tpu.memory_space<vmem>>, vector<32x32xbf16>
    %cst_86 = arith.constant dense<0.000000e+00> : vector<2x32xf32>
    %109 = tpu.matmul %107, %108, %cst_86 {dimension_numbers = #tpu.dot_dimension_numbers<[1], [0], [0], [1], [0, 0, 1, 1], [], []>} : vector<2x32xbf16>, vector<32x32xbf16>, vector<2x32xf32> -> vector<2x32xf32>
    %110 = arith.addf %106, %109 : vector<2x32xf32>
    %c0_87 = arith.constant 0 : index
    %c0_88 = arith.constant 0 : index
    %111 = vector.load %arg5[%c0_87, %c0_88] : memref<1x32xf32, #tpu.memory_space<vmem>>, vector<1x32xf32>
    %112 = vector.broadcast %111 : vector<1x32xf32> to vector<2x32xf32>
    %113 = arith.addf %110, %112 : vector<2x32xf32>
    %cst_89 = arith.constant 0.000000e+00 : f32
    %114 = vector.broadcast %cst_89 : f32 to vector<2x32xf32>
    %115 = arith.maximumf %113, %114 : vector<2x32xf32>
    %116 = arith.truncf %115 : vector<2x32xf32> to vector<2x32xbf16>
    %c0_90 = arith.constant 0 : index
    %c0_91 = arith.constant 0 : index
    %117 = vector.load %arg7[%c0_90, %c0_91] : memref<32x128xbf16, #tpu.memory_space<vmem>>, vector<32x128xbf16>
    %cst_92 = arith.constant dense<0.000000e+00> : vector<2x128xf32>
    %118 = tpu.matmul %116, %117, %cst_92 {dimension_numbers = #tpu.dot_dimension_numbers<[1], [0], [0], [1], [0, 0, 1, 1], [], []>} : vector<2x32xbf16>, vector<32x128xbf16>, vector<2x128xf32> -> vector<2x128xf32>
    %c0_93 = arith.constant 0 : index
    %c0_94 = arith.constant 0 : index
    %119 = vector.load %arg6[%c0_93, %c0_94] : memref<2x4xbf16, #tpu.memory_space<vmem>>, vector<2x4xbf16>
    %c0_95 = arith.constant 0 : index
    %c0_96 = arith.constant 0 : index
    %120 = vector.load %arg8[%c0_95, %c0_96] : memref<4x128xbf16, #tpu.memory_space<vmem>>, vector<4x128xbf16>
    %cst_97 = arith.constant dense<0.000000e+00> : vector<2x128xf32>
    %121 = tpu.matmul %119, %120, %cst_97 {dimension_numbers = #tpu.dot_dimension_numbers<[1], [0], [0], [1], [0, 0, 1, 1], [], []>} : vector<2x4xbf16>, vector<4x128xbf16>, vector<2x128xf32> -> vector<2x128xf32>
    %122 = arith.addf %118, %121 : vector<2x128xf32>
    %c0_98 = arith.constant 0 : index
    %c0_99 = arith.constant 0 : index
    %123 = vector.load %arg9[%c0_98, %c0_99] : memref<1x128xf32, #tpu.memory_space<vmem>>, vector<1x128xf32>
    %124 = vector.broadcast %123 : vector<1x128xf32> to vector<2x128xf32>
    %125 = arith.addf %122, %124 : vector<2x128xf32>
    %cst_100 = arith.constant 0.000000e+00 : f32
    %126 = vector.broadcast %cst_100 : f32 to vector<2x128xf32>
    %127 = arith.maximumf %125, %126 : vector<2x128xf32>
    %128 = arith.truncf %127 : vector<2x128xf32> to vector<2x128xbf16>
    %c0_101 = arith.constant 0 : index
    %c0_102 = arith.constant 0 : index
    %129 = vector.load %arg10[%c0_101, %c0_102] : memref<128x1xbf16, #tpu.memory_space<vmem>>, vector<128x1xbf16>
    %cst_103 = arith.constant dense<0.000000e+00> : vector<2x1xf32>
    %130 = tpu.matmul %128, %129, %cst_103 {dimension_numbers = #tpu.dot_dimension_numbers<[1], [0], [0], [1], [0, 0, 1, 1], [], []>} : vector<2x128xbf16>, vector<128x1xbf16>, vector<2x1xf32> -> vector<2x1xf32>
    %c0_104 = arith.constant 0 : index
    %c0_105 = arith.constant 0 : index
    %131 = vector.load %arg11[%c0_104, %c0_105] : memref<1x1xf32, #tpu.memory_space<vmem>>, vector<1x1xf32>
    %132 = vector.broadcast %131 : vector<1x1xf32> to vector<2x1xf32>
    %133 = arith.addf %130, %132 : vector<2x1xf32>
    %c0_106 = arith.constant 0 : index
    %c0_107 = arith.constant 0 : index
    %134 = vector.load %arg12[%c0_106, %c0_107] : memref<2x1xf32, #tpu.memory_space<vmem>>, vector<2x1xf32>
    tpu.vector_store %arg12[%c0_106, %c0_107], %133 {strides = array<i32>} : memref<2x1xf32, #tpu.memory_space<vmem>>, vector<2x1xf32>,
    return
  }
  func.func @transform_0(%arg0: i32) -> (i32, i32) {
    %c0_i32 = arith.constant 0 : i32
    %c0_i32_0 = arith.constant 0 : i32
    %c0_i32_1 = arith.constant 0 : i32
    return %c0_i32, %c0_i32_0 : i32, i32
  }
  func.func @transform_1(%arg0: i32) -> (i32, i32) {
    %c0_i32 = arith.constant 0 : i32
    %c0_i32_0 = arith.constant 0 : i32
    %c0_i32_1 = arith.constant 0 : i32
    return %c0_i32, %c0_i32_0 : i32, i32
  }
  func.func @transform_2(%arg0: i32) -> (i32, i32) {
    %c0_i32 = arith.constant 0 : i32
    %c0_i32_0 = arith.constant 0 : i32
    %c0_i32_1 = arith.constant 0 : i32
    return %c0_i32, %c0_i32_0 : i32, i32
  }
  func.func @transform_3(%arg0: i32) -> (i32, i32) {
    %c0_i32 = arith.constant 0 : i32
    %c0_i32_0 = arith.constant 0 : i32
    %c0_i32_1 = arith.constant 0 : i32
    return %c0_i32, %c0_i32_0 : i32, i32
  }
  func.func @transform_4(%arg0: i32) -> (i32, i32) {
    %c0_i32 = arith.constant 0 : i32
    %c0_i32_0 = arith.constant 0 : i32
    %c0_i32_1 = arith.constant 0 : i32
    return %c0_i32, %c0_i32_0 : i32, i32
  }
  func.func @transform_5(%arg0: i32) -> (i32, i32) {
    %c0_i32 = arith.constant 0 : i32
    %c0_i32_0 = arith.constant 0 : i32
    %c0_i32_1 = arith.constant 0 : i32
    return %c0_i32, %c0_i32_0 : i32, i32
  }
  func.func @transform_6(%arg0: i32) -> (i32, i32) {
    %c0_i32 = arith.constant 0 : i32
    %c0_i32_0 = arith.constant 0 : i32
    %c0_i32_1 = arith.constant 0 : i32
    return %c0_i32, %c0_i32_0 : i32, i32
  }
  func.func @transform_7(%arg0: i32) -> (i32, i32) {
    %c0_i32 = arith.constant 0 : i32
    %c0_i32_0 = arith.constant 0 : i32
    %c0_i32_1 = arith.constant 0 : i32
    return %c0_i32, %c0_i32_0 : i32, i32
  }
  func.func @transform_8(%arg0: i32) -> (i32, i32) {
    %c0_i32 = arith.constant 0 : i32
    %c0_i32_0 = arith.constant 0 : i32
    %c0_i32_1 = arith.constant 0 : i32
    return %c0_i32, %c0_i32_0 : i32, i32
  }
  func.func @transform_9(%arg0: i32) -> (i32, i32) {
    %c0_i32 = arith.constant 0 : i32
    %c0_i32_0 = arith.constant 0 : i32
    %c0_i32_1 = arith.constant 0 : i32
    return %c0_i32, %c0_i32_0 : i32, i32
  }
  func.func @transform_10(%arg0: i32) -> (i32, i32) {
    %c0_i32 = arith.constant 0 : i32
    %c0_i32_0 = arith.constant 0 : i32
    %c0_i32_1 = arith.constant 0 : i32
    return %c0_i32, %c0_i32_0 : i32, i32
  }
  func.func @transform_11(%arg0: i32) -> (i32, i32) {
    %c0_i32 = arith.constant 0 : i32
    %c0_i32_0 = arith.constant 0 : i32
    %c0_i32_1 = arith.constant 0 : i32
    return %c0_i32, %c0_i32_0 : i32, i32
  }
}

</mosaic_0001>

<llo_original>
// kernel: value_net_forward.2
$region0: #{value_net_forward.2}
  #allocation0 [shape = 'u32[]', space=smem, size = 0x4, offset = 0x4, fixed_abs, tag = 'smem constant byte address 0x4 - core index']
  #allocation1 [shape = 'u32[144,128]{1,0:T(1,128)}', space=vmem, size = 0x12000, scoped, tag = 'internal scratch']
  %s0 = inlined_call_operand.vmem [shape: bf16[392,128], index: 0, kind: input, shape index: {}]
  %s1 = inlined_call_operand.vmem [shape: bf16[128,16], index: 1, kind: input, shape index: {}]
  %s2 = inlined_call_operand.vmem [shape: f32[1,16], index: 2, kind: input, shape index: {}]
  %s3 = inlined_call_operand.vmem [shape: bf16[392,16], index: 3, kind: output, shape index: {}]
  %s4 = sld [smem:[#allocation0]]
  $region22: #{value_net_forward.2} parent=0
    _
  %s6 = ssub.s32 1, %s4
  %s7 = scalar_select 0, %s6, %s4
  // Predicated region
  $region2: #{value_net_forward.2} parent=0 // pred_check
    _
  $region3: #{value_net_forward.2} parent=0 // pred_check_branch
    %9 = sbr.rel (0) target = $region5
  $region4: #{value_net_forward.2} parent=0 // pred_region
    _
  $region5: #{value_net_forward.2} parent=0 // pred_fallthru
    _
  // Predicated region
  $region6: #{value_net_forward.2} parent=0 // pred_check
    _
  $region7: #{value_net_forward.2} parent=0 // pred_check_branch
    %11 = sbr.rel (0) target = $region9
  $region8: #{value_net_forward.2} parent=0 // pred_region
    _
  $region9: #{value_net_forward.2} parent=0 // pred_fallthru
    _
  // Predicated region
  $region10: #{value_net_forward.2} parent=0 // pred_check
    _
  $region11: #{value_net_forward.2} parent=0 // pred_check_branch
    %13 = sbr.rel (0) target = $region13
  $region12: #{value_net_forward.2} parent=0 // pred_region
    _
  $region13: #{value_net_forward.2} parent=0 // pred_fallthru
    _
  %v15 = vld [vmem:[%s0] sm:$0xf]
  %v16 = vld [vmem:[%s0 + $0x4] sm:$0xf]
  %v17 = vld [vmem:[%s0 + $0x8] sm:$0xf]
  %v18 = vld [vmem:[%s0 + $0xc] sm:$0xf]
  %v19 = vld [vmem:[%s0 + $0x10] sm:$0xf]
  %v20 = vld [vmem:[%s0 + $0x14] sm:$0xf]
  %v21 = vld [vmem:[%s0 + $0x18] sm:$0xf]
  %v22 = vld [vmem:[%s0 + $0x1c] sm:$0xf]
  %v23 = vld [vmem:[%s0 + $0x20] sm:$0xf]
  %v24 = vld [vmem:[%s0 + $0x24] sm:$0xf]
  %v25 = vld [vmem:[%s0 + $0x28] sm:$0xf]
  %v26 = vld [vmem:[%s0 + $0x2c] sm:$0xf]
  %v27 = vld [vmem:[%s0 + $0x30] sm:$0xf]
  %v28 = vld [vmem:[%s0 + $0x34] sm:$0xf]
  %v29 = vld [vmem:[%s0 + $0x38] sm:$0xf]
  %v30 = vld [vmem:[%s0 + $0x3c] sm:$0xf]
  %v31 = vld [vmem:[%s0 + $0x40] sm:$0xf]
  %v32 = vld [vmem:[%s0 + $0x44] sm:$0xf]
  %v33 = vld [vmem:[%s0 + $0x48] sm:$0xf]
  %v34 = vld [vmem:[%s0 + $0x4c] sm:$0xf]
  %v35 = vld [vmem:[%s0 + $0x50] sm:$0xf]
  %v36 = vld [vmem:[%s0 + $0x54] sm:$0xf]
  %v37 = vld [vmem:[%s0 + $0x58] sm:$0xf]
  %v38 = vld [vmem:[%s0 + $0x5c] sm:$0xf]
  %v39 = vld [vmem:[%s0 + $0x60] sm:$0xf]
  %v40 = vld [vmem:[%s0 + $0x64] sm:$0xf]
  %v41 = vld [vmem:[%s0 + $0x68] sm:$0xf]
  %v42 = vld [vmem:[%s0 + $0x6c] sm:$0xf]
  %v43 = vld [vmem:[%s0 + $0x70] sm:$0xf]
  %v44 = vld [vmem:[%s0 + $0x74] sm:$0xf]
  %v45 = vld [vmem:[%s0 + $0x78] sm:$0xf]
  %v46 = vld [vmem:[%s0 + $0x7c] sm:$0xf]
  %v47 = vld [vmem:[%s0 + $0x80] sm:$0xf]
  %v48 = vld [vmem:[%s0 + $0x84] sm:$0xf]
  %v49 = vld [vmem:[%s0 + $0x88] sm:$0xf]
  %v50 = vld [vmem:[%s0 + $0x8c] sm:$0xf]
  %v51 = vld [vmem:[%s0 + $0x90] sm:$0xf]
  %v52 = vld [vmem:[%s0 + $0x94] sm:$0xf]
  %v53 = vld [vmem:[%s0 + $0x98] sm:$0xf]
  %v54 = vld [vmem:[%s0 + $0x9c] sm:$0xf]
  %v55 = vld [vmem:[%s0 + $0xa0] sm:$0xf]
  %v56 = vld [vmem:[%s0 + $0xa4] sm:$0xf]
  %v57 = vld [vmem:[%s0 + $0xa8] sm:$0xf]
  %v58 = vld [vmem:[%s0 + $0xac] sm:$0xf]
  %v59 = vld [vmem:[%s0 + $0xb0] sm:$0xf]
  %v60 = vld [vmem:[%s0 + $0xb4] sm:$0xf]
  %v61 = vld [vmem:[%s0 + $0xb8] sm:$0xf]
  %v62 = vld [vmem:[%s0 + $0xbc] sm:$0xf]
  %v63 = vld [vmem:[%s0 + $0xc0] sm:$0xf]
  %v64 = vld [vmem:[%s1] sm:$0xf]
  %v65 = vld [vmem:[%s1 + $0x4] sm:$0xf]
  %v66 = vld [vmem:[%s1 + $0x8] sm:$0xf]
  %v67 = vld [vmem:[%s1 + $0xc] sm:$0xf]
  %v68 = vld [vmem:[%s1 + $0x10] sm:$0xf]
  %v69 = vld [vmem:[%s1 + $0x14] sm:$0xf]
  %v70 = vld [vmem:[%s1 + $0x18] sm:$0xf]
  %v71 = vld [vmem:[%s1 + $0x1c] sm:$0xf]
  %v72 = vld [vmem:[%s1 + $0x20] sm:$0xf]
  %v73 = vld [vmem:[%s1 + $0x24] sm:$0xf]
  %v74 = vld [vmem:[%s1 + $0x28] sm:$0xf]
  %v75 = vld [vmem:[%s1 + $0x2c] sm:$0xf]
  %v76 = vld [vmem:[%s1 + $0x30] sm:$0xf]
  %v77 = vld [vmem:[%s1 + $0x34] sm:$0xf]
  %v78 = vld [vmem:[%s1 + $0x38] sm:$0xf]
  %v79 = vld [vmem:[%s1 + $0x3c] sm:$0xf]
  %v80 = vld [vmem:[%s2] sm:$0x1]
  %v82 = vlaneseq
  %v83 = vshrl.u32 %v82, 7
  %v84 = vsub.s32 0, %v83
  %v85 = vrot.slane %v80, %v84
  %v136 = vunpack.c.l.b16 %v15
  %v137 = vunpack.c.l.b16 %v16
  %v138 = vunpack.c.l.b16 %v17
  %v139 = vunpack.c.l.b16 %v18
  %v140 = vunpack.c.l.b16 %v19
  %v141 = vunpack.c.l.b16 %v20
  %v142 = vunpack.c.l.b16 %v21
  %v143 = vunpack.c.l.b16 %v22
  %v144 = vunpack.c.l.b16 %v23
  %v145 = vunpack.c.l.b16 %v24
  %v146 = vunpack.c.l.b16 %v25
  %v147 = vunpack.c.l.b16 %v26
  %v148 = vunpack.c.l.b16 %v27
  %v149 = vunpack.c.l.b16 %v28
  %v150 = vunpack.c.l.b16 %v29
  %v151 = vunpack.c.l.b16 %v30
  %v152 = vunpack.c.l.b16 %v31
  %v153 = vunpack.c.l.b16 %v32
  %v154 = vunpack.c.l.b16 %v33
  %v155 = vunpack.c.l.b16 %v34
  %v156 = vunpack.c.l.b16 %v35
  %v157 = vunpack.c.l.b16 %v36
  %v158 = vunpack.c.l.b16 %v37
  %v159 = vunpack.c.l.b16 %v38
  %v160 = vunpack.c.l.b16 %v39
  %v161 = vunpack.c.l.b16 %v40
  %v162 = vunpack.c.l.b16 %v41
  %v163 = vunpack.c.l.b16 %v42
  %v164 = vunpack.c.l.b16 %v43
  %v165 = vunpack.c.l.b16 %v44
  %v166 = vunpack.c.l.b16 %v45
  %v167 = vunpack.c.l.b16 %v46
  %v168 = vunpack.c.l.b16 %v47
  %v169 = vunpack.c.l.b16 %v48
  %v170 = vunpack.c.l.b16 %v49
  %v171 = vunpack.c.l.b16 %v50
  %v172 = vunpack.c.l.b16 %v51
  %v173 = vunpack.c.l.b16 %v52
  %v174 = vunpack.c.l.b16 %v53
  %v175 = vunpack.c.l.b16 %v54
  %v176 = vunpack.c.l.b16 %v55
  %v177 = vunpack.c.l.b16 %v56
  %v178 = vunpack.c.l.b16 %v57
  %v179 = vunpack.c.l.b16 %v58
  %v180 = vunpack.c.l.b16 %v59
  %v181 = vunpack.c.l.b16 %v60
  %v182 = vunpack.c.l.b16 %v61
  %v183 = vunpack.c.l.b16 %v62
  %v184 = vunpack.c.l.b16 %v63
  %v185 = vpack.c.b16 %v137, %v136
  %v186 = vpack.c.b16 %v139, %v138
  %v187 = vpack.c.b16 %v141, %v140
  %v188 = vpack.c.b16 %v143, %v142
  %v189 = vpack.c.b16 %v145, %v144
  %v190 = vpack.c.b16 %v147, %v146
  %v191 = vpack.c.b16 %v149, %v148
  %v192 = vpack.c.b16 %v151, %v150
  %v193 = vpack.c.b16 %v153, %v152
  %v194 = vpack.c.b16 %v155, %v154
  %v195 = vpack.c.b16 %v157, %v156
  %v196 = vpack.c.b16 %v159, %v158
  %v197 = vpack.c.b16 %v161, %v160
  %v198 = vpack.c.b16 %v163, %v162
  %v199 = vpack.c.b16 %v165, %v164
  %v200 = vpack.c.b16 %v167, %v166
  %v201 = vpack.c.b16 %v169, %v168
  %v202 = vpack.c.b16 %v171, %v170
  %v203 = vpack.c.b16 %v173, %v172
  %v204 = vpack.c.b16 %v175, %v174
  %v205 = vpack.c.b16 %v177, %v176
  %v206 = vpack.c.b16 %v179, %v178
  %v207 = vpack.c.b16 %v181, %v180
  %v208 = vpack.c.b16 %v183, %v182
  %v209 = vpack.c.b16 %v184, %v184
  %v251 = vunpack.c.l.b16 %v64
  %v252 = vunpack.c.l.b16 %v65
  %v253 = vunpack.c.l.b16 %v66
  %v254 = vunpack.c.l.b16 %v67
  %v255 = vunpack.c.l.b16 %v68
  %v256 = vunpack.c.l.b16 %v69
  %v257 = vunpack.c.l.b16 %v70
  %v258 = vunpack.c.l.b16 %v71
  %v259 = vunpack.c.l.b16 %v72
  %v260 = vunpack.c.l.b16 %v73
  %v261 = vunpack.c.l.b16 %v74
  %v262 = vunpack.c.l.b16 %v75
  %v263 = vunpack.c.l.b16 %v76
  %v264 = vunpack.c.l.b16 %v77
  %v265 = vunpack.c.l.b16 %v78
  %v266 = vunpack.c.l.b16 %v79
  %v267 = vpack.c.b16 %v252, %v251
  %v268 = vpack.c.b16 %v254, %v253
  %v269 = vpack.c.b16 %v256, %v255
  %v270 = vpack.c.b16 %v258, %v257
  %v271 = vpack.c.b16 %v260, %v259
  %v272 = vpack.c.b16 %v262, %v261
  %v273 = vpack.c.b16 %v264, %v263
  %v274 = vpack.c.b16 %v266, %v265
  %283 = vmatprep.subr.bf16.mxu0 0
  %284 = vmatpush1.bf16.msra.mxu0 %v274
  %285 = vmatprep.subr.bf16.mxu0 0
  %286 = vmatpush1.bf16.msra.mxu0 %v273
  %287 = vmatprep.subr.bf16.mxu0 0
  %288 = vmatpush1.bf16.msra.mxu0 %v272
  %289 = vmatprep.subr.bf16.mxu0 0
  %290 = vmatpush1.bf16.msra.mxu0 %v271
  %291 = vmatprep.subr.bf16.mxu0 0
  %292 = vmatpush1.bf16.msra.mxu0 %v270
  %293 = vmatprep.subr.bf16.mxu0 0
  %294 = vmatpush1.bf16.msra.mxu0 %v269
  %295 = vmatprep.subr.bf16.mxu0 0
  %296 = vmatpush1.bf16.msra.mxu0 %v268
  %297 = vmatprep.subr.bf16.mxu0 0
  %298 = vmatpush1.bf16.msra.mxu0 %v267
  %299 = vmatprep.subr.bf16.mxu0 0
  %300 = vmatpush2.bf16.msra.mxu0 0
  %301 = vmatprep.subr.bf16.mxu0 0
  %302 = vmatpush2.bf16.msra.mxu0 0
  %303 = vmatprep.subr.bf16.mxu0 0
  %304 = vmatpush2.bf16.msra.mxu0 0
  %305 = vmatprep.subr.bf16.mxu0 0
  %306 = vmatpush2.bf16.msra.mxu0 0
  %307 = vmatprep.subr.bf16.mxu0 0
  %308 = vmatpush2.bf16.msra.mxu0 0
  %309 = vmatprep.subr.bf16.mxu0 0
  %310 = vmatpush2.bf16.msra.mxu0 0
  %311 = vmatprep.subr.bf16.mxu0 0
  %312 = vmatpush2.bf16.msra.mxu0 0
  %313 = vmatprep.subr.bf16.mxu0 0
  %314 = vmatpush2.bf16.msra.mxu0 0
  %315 = vmatprep.mubr.bf16.mxu0 0
  %316 = vmatmul.mubr.bf16.gmra.mxu0 %v185
  %v317 = vpop.f32.mrf.mxu0
  %v318 = vadd.f32 %v85, %v317
  %v319 = vpop.f32.mrf.mxu0
  %v320 = vpop.f32.mrf.mxu0
  %v321 = vadd.f32 %v85, %v320
  %v322 = vpop.f32.mrf.mxu0
  %323 = vmatprep.mubr.bf16.mxu0 0
  %324 = vmatmul.mubr.bf16.gmra.mxu0 %v186
  %v325 = vpop.f32.mrf.mxu0
  %v326 = vadd.f32 %v85, %v325
  %v327 = vpop.f32.mrf.mxu0
  %v328 = vpop.f32.mrf.mxu0
  %v329 = vadd.f32 %v85, %v328
  %v330 = vpop.f32.mrf.mxu0
  %331 = vmatprep.mubr.bf16.mxu0 0
  %332 = vmatmul.mubr.bf16.gmra.mxu0 %v187
  %v333 = vpop.f32.mrf.mxu0
  %v334 = vadd.f32 %v85, %v333
  %v335 = vpop.f32.mrf.mxu0
  %v336 = vpop.f32.mrf.mxu0
  %v337 = vadd.f32 %v85, %v336
  %v338 = vpop.f32.mrf.mxu0
  %339 = vmatprep.mubr.bf16.mxu0 0
  %340 = vmatmul.mubr.bf16.gmra.mxu0 %v188
  %v341 = vpop.f32.mrf.mxu0
  %v342 = vadd.f32 %v85, %v341
  %v343 = vpop.f32.mrf.mxu0
  %v344 = vpop.f32.mrf.mxu0
  %v345 = vadd.f32 %v85, %v344
  %v346 = vpop.f32.mrf.mxu0
  %347 = vmatprep.mubr.bf16.mxu0 0
  %348 = vmatmul.mubr.bf16.gmra.mxu0 %v189
  %v349 = vpop.f32.mrf.mxu0
  %v350 = vadd.f32 %v85, %v349
  %v351 = vpop.f32.mrf.mxu0
  %v352 = vpop.f32.mrf.mxu0
  %v353 = vadd.f32 %v85, %v352
  %v354 = vpop.f32.mrf.mxu0
  %355 = vmatprep.mubr.bf16.mxu0 0
  %356 = vmatmul.mubr.bf16.gmra.mxu0 %v190
  %v357 = vpop.f32.mrf.mxu0
  %v358 = vadd.f32 %v85, %v357
  %v359 = vpop.f32.mrf.mxu0
  %v360 = vpop.f32.mrf.mxu0
  %v361 = vadd.f32 %v85, %v360
  %v362 = vpop.f32.mrf.mxu0
  %363 = vmatprep.mubr.bf16.mxu0 0
  %364 = vmatmul.mubr.bf16.gmra.mxu0 %v191
  %v365 = vpop.f32.mrf.mxu0
  %v366 = vadd.f32 %v85, %v365
  %v367 = vpop.f32.mrf.mxu0
  %v368 = vpop.f32.mrf.mxu0
  %v369 = vadd.f32 %v85, %v368
  %v370 = vpop.f32.mrf.mxu0
  %371 = vmatprep.mubr.bf16.mxu0 0
  %372 = vmatmul.mubr.bf16.gmra.mxu0 %v192
  %v373 = vpop.f32.mrf.mxu0
  %v374 = vadd.f32 %v85, %v373
  %v375 = vpop.f32.mrf.mxu0
  %v376 = vpop.f32.mrf.mxu0
  %v377 = vadd.f32 %v85, %v376
  %v378 = vpop.f32.mrf.mxu0
  %379 = vmatprep.mubr.bf16.mxu0 0
  %380 = vmatmul.mubr.bf16.gmra.mxu0 %v193
  %v381 = vpop.f32.mrf.mxu0
  %v382 = vadd.f32 %v85, %v381
  %v383 = vpop.f32.mrf.mxu0
  %v384 = vpop.f32.mrf.mxu0
  %v385 = vadd.f32 %v85, %v384
  %v386 = vpop.f32.mrf.mxu0
  %387 = vmatprep.mubr.bf16.mxu0 0
  %388 = vmatmul.mubr.bf16.gmra.mxu0 %v194
  %v389 = vpop.f32.mrf.mxu0
  %v390 = vadd.f32 %v85, %v389
  %v391 = vpop.f32.mrf.mxu0
  %v392 = vpop.f32.mrf.mxu0
  %v393 = vadd.f32 %v85, %v392
  %v394 = vpop.f32.mrf.mxu0
  %395 = vmatprep.mubr.bf16.mxu0 0
  %396 = vmatmul.mubr.bf16.gmra.mxu0 %v195
  %v397 = vpop.f32.mrf.mxu0
  %v398 = vadd.f32 %v85, %v397
  %v399 = vpop.f32.mrf.mxu0
  %v400 = vpop.f32.mrf.mxu0
  %v401 = vadd.f32 %v85, %v400
  %v402 = vpop.f32.mrf.mxu0
  %403 = vmatprep.mubr.bf16.mxu0 0
  %404 = vmatmul.mubr.bf16.gmra.mxu0 %v196
  %v405 = vpop.f32.mrf.mxu0
  %v406 = vadd.f32 %v85, %v405
  %v407 = vpop.f32.mrf.mxu0
  %v408 = vpop.f32.mrf.mxu0
  %v409 = vadd.f32 %v85, %v408
  %v410 = vpop.f32.mrf.mxu0
  %411 = vmatprep.mubr.bf16.mxu0 0
  %412 = vmatmul.mubr.bf16.gmra.mxu0 %v197
  %v413 = vpop.f32.mrf.mxu0
  %v414 = vadd.f32 %v85, %v413
  %v415 = vpop.f32.mrf.mxu0
  %v416 = vpop.f32.mrf.mxu0
  %v417 = vadd.f32 %v85, %v416
  %v418 = vpop.f32.mrf.mxu0
  %419 = vmatprep.mubr.bf16.mxu0 0
  %420 = vmatmul.mubr.bf16.gmra.mxu0 %v198
  %v421 = vpop.f32.mrf.mxu0
  %v422 = vadd.f32 %v85, %v421
  %v423 = vpop.f32.mrf.mxu0
  %v424 = vpop.f32.mrf.mxu0
  %v425 = vadd.f32 %v85, %v424
  %v426 = vpop.f32.mrf.mxu0
  %427 = vmatprep.mubr.bf16.mxu0 0
  %428 = vmatmul.mubr.bf16.gmra.mxu0 %v199
  %v429 = vpop.f32.mrf.mxu0
  %v430 = vadd.f32 %v85, %v429
  %v431 = vpop.f32.mrf.mxu0
  %v432 = vpop.f32.mrf.mxu0
  %v433 = vadd.f32 %v85, %v432
  %v434 = vpop.f32.mrf.mxu0
  %435 = vmatprep.mubr.bf16.mxu0 0
  %436 = vmatmul.mubr.bf16.gmra.mxu0 %v200
  %v437 = vpop.f32.mrf.mxu0
  %v438 = vadd.f32 %v85, %v437
  %v439 = vpop.f32.mrf.mxu0
  %v440 = vpop.f32.mrf.mxu0
  %v441 = vadd.f32 %v85, %v440
  %v442 = vpop.f32.mrf.mxu0
  %443 = vmatprep.mubr.bf16.mxu0 0
  %444 = vmatmul.mubr.bf16.gmra.mxu0 %v201
  %v445 = vpop.f32.mrf.mxu0
  %v446 = vadd.f32 %v85, %v445
  %v447 = vpop.f32.mrf.mxu0
  %v448 = vpop.f32.mrf.mxu0
  %v449 = vadd.f32 %v85, %v448
  %v450 = vpop.f32.mrf.mxu0
  %451 = vmatprep.mubr.bf16.mxu0 0
  %452 = vmatmul.mubr.bf16.gmra.mxu0 %v202
  %v453 = vpop.f32.mrf.mxu0
  %v454 = vadd.f32 %v85, %v453
  %v455 = vpop.f32.mrf.mxu0
  %v456 = vpop.f32.mrf.mxu0
  %v457 = vadd.f32 %v85, %v456
  %v458 = vpop.f32.mrf.mxu0
  %459 = vmatprep.mubr.bf16.mxu0 0
  %460 = vmatmul.mubr.bf16.gmra.mxu0 %v203
  %v461 = vpop.f32.mrf.mxu0
  %v462 = vadd.f32 %v85, %v461
  %v463 = vpop.f32.mrf.mxu0
  %v464 = vpop.f32.mrf.mxu0
  %v465 = vadd.f32 %v85, %v464
  %v466 = vpop.f32.mrf.mxu0
  %467 = vmatprep.mubr.bf16.mxu0 0
  %468 = vmatmul.mubr.bf16.gmra.mxu0 %v204
  %v469 = vpop.f32.mrf.mxu0
  %v470 = vadd.f32 %v85, %v469
  %v471 = vpop.f32.mrf.mxu0
  %v472 = vpop.f32.mrf.mxu0
  %v473 = vadd.f32 %v85, %v472
  %v474 = vpop.f32.mrf.mxu0
  %475 = vmatprep.mubr.bf16.mxu0 0
  %476 = vmatmul.mubr.bf16.gmra.mxu0 %v205
  %v477 = vpop.f32.mrf.mxu0
  %v478 = vadd.f32 %v85, %v477
  %v479 = vpop.f32.mrf.mxu0
  %v480 = vpop.f32.mrf.mxu0
  %v481 = vadd.f32 %v85, %v480
  %v482 = vpop.f32.mrf.mxu0
  %483 = vmatprep.mubr.bf16.mxu0 0
  %484 = vmatmul.mubr.bf16.gmra.mxu0 %v206
  %v485 = vpop.f32.mrf.mxu0
  %v486 = vadd.f32 %v85, %v485
  %v487 = vpop.f32.mrf.mxu0
  %v488 = vpop.f32.mrf.mxu0
  %v489 = vadd.f32 %v85, %v488
  %v490 = vpop.f32.mrf.mxu0
  %491 = vmatprep.mubr.bf16.mxu0 0
  %492 = vmatmul.mubr.bf16.gmra.mxu0 %v207
  %v493 = vpop.f32.mrf.mxu0
  %v494 = vadd.f32 %v85, %v493
  %v495 = vpop.f32.mrf.mxu0
  %v496 = vpop.f32.mrf.mxu0
  %v497 = vadd.f32 %v85, %v496
  %v498 = vpop.f32.mrf.mxu0
  %499 = vmatprep.mubr.bf16.mxu0 0
  %500 = vmatmul.mubr.bf16.gmra.mxu0 %v208
  %v501 = vpop.f32.mrf.mxu0
  %v502 = vadd.f32 %v85, %v501
  %v503 = vpop.f32.mrf.mxu0
  %v504 = vpop.f32.mrf.mxu0
  %v505 = vadd.f32 %v85, %v504
  %v506 = vpop.f32.mrf.mxu0
  %507 = vmatprep.mubr.bf16.mxu0 0
  %508 = vmatmul.mubr.bf16.gmra.mxu0 %v209
  %v509 = vpop.f32.mrf.mxu0
  %v510 = vadd.f32 %v85, %v509
  %v511 = vpop.f32.mrf.mxu0
  %v512 = vpop.f32.mrf.mxu0
  %v513 = vpop.f32.mrf.mxu0
  %514 = vdwg.mxu0
  %v515 = vmax.f32 %v318, 0.0
  %v516 = vmax.f32 %v321, 0.0
  %v517 = vmax.f32 %v326, 0.0
  %v518 = vmax.f32 %v329, 0.0
  %v519 = vmax.f32 %v334, 0.0
  %v520 = vmax.f32 %v337, 0.0
  %v521 = vmax.f32 %v342, 0.0
  %v522 = vmax.f32 %v345, 0.0
  %v523 = vmax.f32 %v350, 0.0
  %v524 = vmax.f32 %v353, 0.0
  %v525 = vmax.f32 %v358, 0.0
  %v526 = vmax.f32 %v361, 0.0
  %v527 = vmax.f32 %v366, 0.0
  %v528 = vmax.f32 %v369, 0.0
  %v529 = vmax.f32 %v374, 0.0
  %v530 = vmax.f32 %v377, 0.0
  %v531 = vmax.f32 %v382, 0.0
  %v532 = vmax.f32 %v385, 0.0
  %v533 = vmax.f32 %v390, 0.0
  %v534 = vmax.f32 %v393, 0.0
  %v535 = vmax.f32 %v398, 0.0
  %v536 = vmax.f32 %v401, 0.0
  %v537 = vmax.f32 %v406, 0.0
  %v538 = vmax.f32 %v409, 0.0
  %v539 = vmax.f32 %v414, 0.0
  %v540 = vmax.f32 %v417, 0.0
  %v541 = vmax.f32 %v422, 0.0
  %v542 = vmax.f32 %v425, 0.0
  %v543 = vmax.f32 %v430, 0.0
  %v544 = vmax.f32 %v433, 0.0
  %v545 = vmax.f32 %v438, 0.0
  %v546 = vmax.f32 %v441, 0.0
  %v547 = vmax.f32 %v446, 0.0
  %v548 = vmax.f32 %v449, 0.0
  %v549 = vmax.f32 %v454, 0.0
  %v550 = vmax.f32 %v457, 0.0
  %v551 = vmax.f32 %v462, 0.0
  %v552 = vmax.f32 %v465, 0.0
  %v553 = vmax.f32 %v470, 0.0
  %v554 = vmax.f32 %v473, 0.0
  %v555 = vmax.f32 %v478, 0.0
  %v556 = vmax.f32 %v481, 0.0
  %v557 = vmax.f32 %v486, 0.0
  %v558 = vmax.f32 %v489, 0.0
  %v559 = vmax.f32 %v494, 0.0
  %v560 = vmax.f32 %v497, 0.0
  %v561 = vmax.f32 %v502, 0.0
  %v562 = vmax.f32 %v505, 0.0
  %v563 = vmax.f32 %v510, 0.0
  %v564 = vpack.c.bf16 %v516, %v515
  %v565 = vpack.c.bf16 %v518, %v517
  %v566 = vpack.c.bf16 %v520, %v519
  %v567 = vpack.c.bf16 %v522, %v521
  %v568 = vpack.c.bf16 %v524, %v523
  %v569 = vpack.c.bf16 %v526, %v525
  %v570 = vpack.c.bf16 %v528, %v527
  %v571 = vpack.c.bf16 %v530, %v529
  %v572 = vpack.c.bf16 %v532, %v531
  %v573 = vpack.c.bf16 %v534, %v533
  %v574 = vpack.c.bf16 %v536, %v535
  %v575 = vpack.c.bf16 %v538, %v537
  %v576 = vpack.c.bf16 %v540, %v539
  %v577 = vpack.c.bf16 %v542, %v541
  %v578 = vpack.c.bf16 %v544, %v543
  %v579 = vpack.c.bf16 %v546, %v545
  %v580 = vpack.c.bf16 %v548, %v547
  %v581 = vpack.c.bf16 %v550, %v549
  %v582 = vpack.c.bf16 %v552, %v551
  %v583 = vpack.c.bf16 %v554, %v553
  %v584 = vpack.c.bf16 %v556, %v555
  %v585 = vpack.c.bf16 %v558, %v557
  %v586 = vpack.c.bf16 %v560, %v559
  %v587 = vpack.c.bf16 %v562, %v561
  %v588 = vpack.c.bf16 %v563, %v563
  %v614 = vunpack.c.l.b16 %v564
  %v615 = vunpack.c.h.b16 %v564
  %v616 = vunpack.c.l.b16 %v565
  %v617 = vunpack.c.h.b16 %v565
  %v618 = vunpack.c.l.b16 %v566
  %v619 = vunpack.c.h.b16 %v566
  %v620 = vunpack.c.l.b16 %v567
  %v621 = vunpack.c.h.b16 %v567
  %v622 = vunpack.c.l.b16 %v568
  %v623 = vunpack.c.h.b16 %v568
  %v624 = vunpack.c.l.b16 %v569
  %v625 = vunpack.c.h.b16 %v569
  %v626 = vunpack.c.l.b16 %v570
  %v627 = vunpack.c.h.b16 %v570
  %v628 = vunpack.c.l.b16 %v571
  %v629 = vunpack.c.h.b16 %v571
  %v630 = vunpack.c.l.b16 %v572
  %v631 = vunpack.c.h.b16 %v572
  %v632 = vunpack.c.l.b16 %v573
  %v633 = vunpack.c.h.b16 %v573
  %v634 = vunpack.c.l.b16 %v574
  %v635 = vunpack.c.h.b16 %v574
  %v636 = vunpack.c.l.b16 %v575
  %v637 = vunpack.c.h.b16 %v575
  %v638 = vunpack.c.l.b16 %v576
  %v639 = vunpack.c.h.b16 %v576
  %v640 = vunpack.c.l.b16 %v577
  %v641 = vunpack.c.h.b16 %v577
  %v642 = vunpack.c.l.b16 %v578
  %v643 = vunpack.c.h.b16 %v578
  %v644 = vunpack.c.l.b16 %v579
  %v645 = vunpack.c.h.b16 %v579
  %v646 = vunpack.c.l.b16 %v580
  %v647 = vunpack.c.h.b16 %v580
  %v648 = vunpack.c.l.b16 %v581
  %v649 = vunpack.c.h.b16 %v581
  %v650 = vunpack.c.l.b16 %v582
  %v651 = vunpack.c.h.b16 %v582
  %v652 = vunpack.c.l.b16 %v583
  %v653 = vunpack.c.h.b16 %v583
  %v654 = vunpack.c.l.b16 %v584
  %v655 = vunpack.c.h.b16 %v584
  %v656 = vunpack.c.l.b16 %v585
  %v657 = vunpack.c.h.b16 %v585
  %v658 = vunpack.c.l.b16 %v586
  %v659 = vunpack.c.h.b16 %v586
  %v660 = vunpack.c.l.b16 %v587
  %v661 = vunpack.c.h.b16 %v587
  %v662 = vunpack.c.l.b16 %v588
  %v663 = vpack.c.b16 %v614, %v614
  %v664 = vpack.c.b16 %v615, %v615
  %v665 = vpack.c.b16 %v616, %v616
  %v666 = vpack.c.b16 %v617, %v617
  %v667 = vpack.c.b16 %v618, %v618
  %v668 = vpack.c.b16 %v619, %v619
  %v669 = vpack.c.b16 %v620, %v620
  %v670 = vpack.c.b16 %v621, %v621
  %v671 = vpack.c.b16 %v622, %v622
  %v672 = vpack.c.b16 %v623, %v623
  %v673 = vpack.c.b16 %v624, %v624
  %v674 = vpack.c.b16 %v625, %v625
  %v675 = vpack.c.b16 %v626, %v626
  %v676 = vpack.c.b16 %v627, %v627
  %v677 = vpack.c.b16 %v628, %v628
  %v678 = vpack.c.b16 %v629, %v629
  %v679 = vpack.c.b16 %v630, %v630
  %v680 = vpack.c.b16 %v631, %v631
  %v681 = vpack.c.b16 %v632, %v632
  %v682 = vpack.c.b16 %v633, %v633
  %v683 = vpack.c.b16 %v634, %v634
  %v684 = vpack.c.b16 %v635, %v635
  %v685 = vpack.c.b16 %v636, %v636
  %v686 = vpack.c.b16 %v637, %v637
  %v687 = vpack.c.b16 %v638, %v638
  %v688 = vpack.c.b16 %v639, %v639
  %v689 = vpack.c.b16 %v640, %v640
  %v690 = vpack.c.b16 %v641, %v641
  %v691 = vpack.c.b16 %v642, %v642
  %v692 = vpack.c.b16 %v643, %v643
  %v693 = vpack.c.b16 %v644, %v644
  %v694 = vpack.c.b16 %v645, %v645
  %v695 = vpack.c.b16 %v646, %v646
  %v696 = vpack.c.b16 %v647, %v647
  %v697 = vpack.c.b16 %v648, %v648
  %v698 = vpack.c.b16 %v649, %v649
  %v699 = vpack.c.b16 %v650, %v650
  %v700 = vpack.c.b16 %v651, %v651
  %v701 = vpack.c.b16 %v652, %v652
  %v702 = vpack.c.b16 %v653, %v653
  %v703 = vpack.c.b16 %v654, %v654
  %v704 = vpack.c.b16 %v655, %v655
  %v705 = vpack.c.b16 %v656, %v656
  %v706 = vpack.c.b16 %v657, %v657
  %v707 = vpack.c.b16 %v658, %v658
  %v708 = vpack.c.b16 %v659, %v659
  %v709 = vpack.c.b16 %v660, %v660
  %v710 = vpack.c.b16 %v661, %v661
  %v711 = vpack.c.b16 %v662, %v662
  %vm761 = vcmask 125952
  %762 = vst.msk [vmem:[%s3] sm:$0xf] %vm761, %v663
  %763 = vst.msk [vmem:[%s3 + $0x4] sm:$0xf] %vm761, %v664
  %764 = vst.msk [vmem:[%s3 + $0x8] sm:$0xf] %vm761, %v665
  %765 = vst.msk [vmem:[%s3 + $0xc] sm:$0xf] %vm761, %v666
  %766 = vst.msk [vmem:[%s3 + $0x10] sm:$0xf] %vm761, %v667
  %767 = vst.msk [vmem:[%s3 + $0x14] sm:$0xf] %vm761, %v668
  %768 = vst.msk [vmem:[%s3 + $0x18] sm:$0xf] %vm761, %v669
  %769 = vst.msk [vmem:[%s3 + $0x1c] sm:$0xf] %vm761, %v670
  %770 = vst.msk [vmem:[%s3 + $0x20] sm:$0xf] %vm761, %v671
  %771 = vst.msk [vmem:[%s3 + $0x24] sm:$0xf] %vm761, %v672
  %772 = vst.msk [vmem:[%s3 + $0x28] sm:$0xf] %vm761, %v673
  %773 = vst.msk [vmem:[%s3 + $0x2c] sm:$0xf] %vm761, %v674
  %774 = vst.msk [vmem:[%s3 + $0x30] sm:$0xf] %vm761, %v675
  %775 = vst.msk [vmem:[%s3 + $0x34] sm:$0xf] %vm761, %v676
  %776 = vst.msk [vmem:[%s3 + $0x38] sm:$0xf] %vm761, %v677
  %777 = vst.msk [vmem:[%s3 + $0x3c] sm:$0xf] %vm761, %v678
  %778 = vst.msk [vmem:[%s3 + $0x40] sm:$0xf] %vm761, %v679
  %779 = vst.msk [vmem:[%s3 + $0x44] sm:$0xf] %vm761, %v680
  %780 = vst.msk [vmem:[%s3 + $0x48] sm:$0xf] %vm761, %v681
  %781 = vst.msk [vmem:[%s3 + $0x4c] sm:$0xf] %vm761, %v682
  %782 = vst.msk [vmem:[%s3 + $0x50] sm:$0xf] %vm761, %v683
  %783 = vst.msk [vmem:[%s3 + $0x54] sm:$0xf] %vm761, %v684
  %784 = vst.msk [vmem:[%s3 + $0x58] sm:$0xf] %vm761, %v685
  %785 = vst.msk [vmem:[%s3 + $0x5c] sm:$0xf] %vm761, %v686
  %786 = vst.msk [vmem:[%s3 + $0x60] sm:$0xf] %vm761, %v687
  %787 = vst.msk [vmem:[%s3 + $0x64] sm:$0xf] %vm761, %v688
  %788 = vst.msk [vmem:[%s3 + $0x68] sm:$0xf] %vm761, %v689
  %789 = vst.msk [vmem:[%s3 + $0x6c] sm:$0xf] %vm761, %v690
  %790 = vst.msk [vmem:[%s3 + $0x70] sm:$0xf] %vm761, %v691
  %791 = vst.msk [vmem:[%s3 + $0x74] sm:$0xf] %vm761, %v692
  %792 = vst.msk [vmem:[%s3 + $0x78] sm:$0xf] %vm761, %v693
  %793 = vst.msk [vmem:[%s3 + $0x7c] sm:$0xf] %vm761, %v694
  %794 = vst.msk [vmem:[%s3 + $0x80] sm:$0xf] %vm761, %v695
  %795 = vst.msk [vmem:[%s3 + $0x84] sm:$0xf] %vm761, %v696
  %796 = vst.msk [vmem:[%s3 + $0x88] sm:$0xf] %vm761, %v697
  %797 = vst.msk [vmem:[%s3 + $0x8c] sm:$0xf] %vm761, %v698
  %798 = vst.msk [vmem:[%s3 + $0x90] sm:$0xf] %vm761, %v699
  %799 = vst.msk [vmem:[%s3 + $0x94] sm:$0xf] %vm761, %v700
  %800 = vst.msk [vmem:[%s3 + $0x98] sm:$0xf] %vm761, %v701
  %801 = vst.msk [vmem:[%s3 + $0x9c] sm:$0xf] %vm761, %v702
  %802 = vst.msk [vmem:[%s3 + $0xa0] sm:$0xf] %vm761, %v703
  %803 = vst.msk [vmem:[%s3 + $0xa4] sm:$0xf] %vm761, %v704
  %804 = vst.msk [vmem:[%s3 + $0xa8] sm:$0xf] %vm761, %v705
  %805 = vst.msk [vmem:[%s3 + $0xac] sm:$0xf] %vm761, %v706
  %806 = vst.msk [vmem:[%s3 + $0xb0] sm:$0xf] %vm761, %v707
  %807 = vst.msk [vmem:[%s3 + $0xb4] sm:$0xf] %vm761, %v708
  %808 = vst.msk [vmem:[%s3 + $0xb8] sm:$0xf] %vm761, %v709
  %809 = vst.msk [vmem:[%s3 + $0xbc] sm:$0xf] %vm761, %v710
  %810 = vst.msk [vmem:[%s3 + $0xc0] sm:$0xf] %vm761, %v711
  // Predicated region
  $region14: #{value_net_forward.2} parent=0 // pred_check
    _
  $region15: #{value_net_forward.2} parent=0 // pred_check_branch
    %812 = sbr.rel (0) target = $region17
  $region16: #{value_net_forward.2} parent=0 // pred_region
    _
  $region17: #{value_net_forward.2} parent=0 // pred_fallthru
    _
  // Predicated region
  $region18: #{value_net_forward.2} parent=0 // pred_check
    _
  $region19: #{value_net_forward.2} parent=0 // pred_check_branch
    %814 = sbr.rel (0) target = $region21
  $region20: #{value_net_forward.2} parent=0 // pred_region
    _
  $region21: #{value_net_forward.2} parent=0 // pred_fallthru
    _

// kernel: value_net_forward.3
$region0: #{value_net_forward.3}
  #allocation0 [shape = 'u32[]', space=smem, size = 0x4, offset = 0x4, fixed_abs, tag = 'smem constant byte address 0x4 - core index']
  #allocation1 [shape = 'u32[144,128]{1,0:T(1,128)}', space=vmem, size = 0x12000, scoped, tag = 'internal scratch']
  #allocation2 [shape = 'bf16[50,32]{1,0:T(8,128)(2,1)}', space=vmem, size = 0x3800, scoped, tag = 'scratch operand']
  #allocation3 [shape = 'f32[1,1]{1,0:T(1,128)S(1)}', space=vmem, size = 0x200, scoped, tag = 'scoped memory for value_net_forward.3']
  %s0 = inlined_call_operand.vmem [shape: bf16[50,512], index: 0, kind: input, shape index: {}]
  %s1 = inlined_call_operand.vmem [shape: bf16[512,32], index: 1, kind: input, shape index: {}]
  %s2 = inlined_call_operand.vmem [shape: f32[1,32], index: 2, kind: input, shape index: {}]
  %s3 = inlined_call_operand.vmem [shape: bf16[800,32], index: 3, kind: input, shape index: {}]
  %s4 = inlined_call_operand.vmem [shape: f32[1,32], index: 4, kind: input, shape index: {}]
  %s5 = inlined_call_operand.vmem [shape: bf16[2,4], index: 5, kind: input, shape index: {}]
  %s6 = inlined_call_operand.vmem [shape: bf16[32,128], index: 6, kind: input, shape index: {}]
  %s7 = inlined_call_operand.vmem [shape: bf16[4,128], index: 7, kind: input, shape index: {}]
  %s8 = inlined_call_operand.vmem [shape: f32[1,128], index: 8, kind: input, shape index: {}]
  %s9 = inlined_call_operand.vmem [shape: bf16[128,1], index: 9, kind: input, shape index: {}]
  %s10 = inlined_call_operand.<no memory space> [shape: f32[1,1], index: 10, kind: input, shape index: {}]
  %s11 = inlined_call_operand.vmem [shape: f32[2,1], index: 11, kind: output, shape index: {}]
  %s12 = sld [smem:[#allocation0]]
  $region54: #{value_net_forward.3} parent=0
    _
  %s14 = ssub.s32 1, %s12
  %s15 = scalar_select 0, %s14, %s12
  %v16 = vstv %s10
  %17 = vst [vmem:[#allocation3] sm:$0x1] %v16
  // Predicated region
  $region2: #{value_net_forward.3} parent=0 // pred_check
    _
  $region3: #{value_net_forward.3} parent=0 // pred_check_branch
    %19 = sbr.rel (0) target = $region5
  $region4: #{value_net_forward.3} parent=0 // pred_region
    _
  $region5: #{value_net_forward.3} parent=0 // pred_fallthru
    _
  // Predicated region
  $region6: #{value_net_forward.3} parent=0 // pred_check
    _
  $region7: #{value_net_forward.3} parent=0 // pred_check_branch
    %21 = sbr.rel (0) target = $region9
  $region8: #{value_net_forward.3} parent=0 // pred_region
    _
  $region9: #{value_net_forward.3} parent=0 // pred_fallthru
    _
  // Predicated region
  $region10: #{value_net_forward.3} parent=0 // pred_check
    _
  $region11: #{value_net_forward.3} parent=0 // pred_check_branch
    %23 = sbr.rel (0) target = $region13
  $region12: #{value_net_forward.3} parent=0 // pred_region
    _
  $region13: #{value_net_forward.3} parent=0 // pred_fallthru
    _
  // Predicated region
  $region14: #{value_net_forward.3} parent=0 // pred_check
    _
  $region15: #{value_net_forward.3} parent=0 // pred_check_branch
    %25 = sbr.rel (0) target = $region17
  $region16: #{value_net_forward.3} parent=0 // pred_region
    _
  $region17: #{value_net_forward.3} parent=0 // pred_fallthru
    _
  // Predicated region
  $region18: #{value_net_forward.3} parent=0 // pred_check
    _
  $region19: #{value_net_forward.3} parent=0 // pred_check_branch
    %27 = sbr.rel (0) target = $region21
  $region20: #{value_net_forward.3} parent=0 // pred_region
    _
  $region21: #{value_net_forward.3} parent=0 // pred_fallthru
    _
  // Predicated region
  $region22: #{value_net_forward.3} parent=0 // pred_check
    _
  $region23: #{value_net_forward.3} parent=0 // pred_check_branch
    %29 = sbr.rel (0) target = $region25
  $region24: #{value_net_forward.3} parent=0 // pred_region
    _
  $region25: #{value_net_forward.3} parent=0 // pred_fallthru
    _
  // Predicated region
  $region26: #{value_net_forward.3} parent=0 // pred_check
    _
  $region27: #{value_net_forward.3} parent=0 // pred_check_branch
    %31 = sbr.rel (0) target = $region29
  $region28: #{value_net_forward.3} parent=0 // pred_region
    _
  $region29: #{value_net_forward.3} parent=0 // pred_fallthru
    _
  // Predicated region
  $region30: #{value_net_forward.3} parent=0 // pred_check
    _
  $region31: #{value_net_forward.3} parent=0 // pred_check_branch
    %33 = sbr.rel (0) target = $region33
  $region32: #{value_net_forward.3} parent=0 // pred_region
    _
  $region33: #{value_net_forward.3} parent=0 // pred_fallthru
    _
  // Predicated region
  $region34: #{value_net_forward.3} parent=0 // pred_check
    _
  $region35: #{value_net_forward.3} parent=0 // pred_check_branch
    %35 = sbr.rel (0) target = $region37
  $region36: #{value_net_forward.3} parent=0 // pred_region
    _
  $region37: #{value_net_forward.3} parent=0 // pred_fallthru
    _
  // Predicated region
  $region38: #{value_net_forward.3} parent=0 // pred_check
    _
  $region39: #{value_net_forward.3} parent=0 // pred_check_branch
    %37 = sbr.rel (0) target = $region41
  $region40: #{value_net_forward.3} parent=0 // pred_region
    _
  $region41: #{value_net_forward.3} parent=0 // pred_fallthru
    _
  // Predicated region
  $region42: #{value_net_forward.3} parent=0 // pred_check
    _
  $region43: #{value_net_forward.3} parent=0 // pred_check_branch
    %39 = sbr.rel (0) target = $region45
  $region44: #{value_net_forward.3} parent=0 // pred_region
    _
  $region45: #{value_net_forward.3} parent=0 // pred_fallthru
    _
  %v41 = vld [vmem:[%s0] sm:$0xff]
  %v42 = vld [vmem:[%s0 + $0x8] sm:$0xff]
  %v43 = vld [vmem:[%s0 + $0x10] sm:$0xff]
  %v44 = vld [vmem:[%s0 + $0x18] sm:$0xff]
  %v45 = vld [vmem:[%s0 + $0x20] sm:$0xff]
  %v46 = vld [vmem:[%s0 + $0x28] sm:$0xff]
  %v47 = vld [vmem:[%s0 + $0x30] sm:$0xff]
  %v48 = vld [vmem:[%s0 + $0x38] sm:$0xff]
  %v49 = vld [vmem:[%s0 + $0x40] sm:$0xff]
  %v50 = vld [vmem:[%s0 + $0x48] sm:$0xff]
  %v51 = vld [vmem:[%s0 + $0x50] sm:$0xff]
  %v52 = vld [vmem:[%s0 + $0x58] sm:$0xff]
  %v53 = vld [vmem:[%s0 + $0x60] sm:$0x11]
  %v54 = vld [vmem:[%s0 + $0x68] sm:$0x11]
  %v55 = vld [vmem:[%s1] sm:$0xf]
  %v56 = vld [vmem:[%s1 + $0x4] sm:$0xf]
  %v57 = vld [vmem:[%s1 + $0x8] sm:$0xf]
  %v58 = vld [vmem:[%s1 + $0xc] sm:$0xf]
  %v59 = vld [vmem:[%s1 + $0x10] sm:$0xf]
  %v60 = vld [vmem:[%s1 + $0x14] sm:$0xf]
  %v61 = vld [vmem:[%s1 + $0x18] sm:$0xf]
  %v62 = vld [vmem:[%s1 + $0x1c] sm:$0xf]
  %v63 = vld [vmem:[%s1 + $0x20] sm:$0xf]
  %v64 = vld [vmem:[%s1 + $0x24] sm:$0xf]
  %v65 = vld [vmem:[%s1 + $0x28] sm:$0xf]
  %v66 = vld [vmem:[%s1 + $0x2c] sm:$0xf]
  %v67 = vld [vmem:[%s1 + $0x30] sm:$0xf]
  %v68 = vld [vmem:[%s1 + $0x34] sm:$0xf]
  %v69 = vld [vmem:[%s1 + $0x38] sm:$0xf]
  %v70 = vld [vmem:[%s1 + $0x3c] sm:$0xf]
  %v71 = vld [vmem:[%s1 + $0x40] sm:$0xf]
  %v72 = vld [vmem:[%s1 + $0x44] sm:$0xf]
  %v73 = vld [vmem:[%s1 + $0x48] sm:$0xf]
  %v74 = vld [vmem:[%s1 + $0x4c] sm:$0xf]
  %v75 = vld [vmem:[%s1 + $0x50] sm:$0xf]
  %v76 = vld [vmem:[%s1 + $0x54] sm:$0xf]
  %v77 = vld [vmem:[%s1 + $0x58] sm:$0xf]
  %v78 = vld [vmem:[%s1 + $0x5c] sm:$0xf]
  %v79 = vld [vmem:[%s1 + $0x60] sm:$0xf]
  %v80 = vld [vmem:[%s1 + $0x64] sm:$0xf]
  %v81 = vld [vmem:[%s1 + $0x68] sm:$0xf]
  %v82 = vld [vmem:[%s1 + $0x6c] sm:$0xf]
  %v83 = vld [vmem:[%s1 + $0x70] sm:$0xf]
  %v84 = vld [vmem:[%s1 + $0x74] sm:$0xf]
  %v85 = vld [vmem:[%s1 + $0x78] sm:$0xf]
  %v86 = vld [vmem:[%s1 + $0x7c] sm:$0xf]
  %v87 = vld [vmem:[%s1 + $0x80] sm:$0xf]
  %v88 = vld [vmem:[%s1 + $0x84] sm:$0xf]
  %v89 = vld [vmem:[%s1 + $0x88] sm:$0xf]
  %v90 = vld [vmem:[%s1 + $0x8c] sm:$0xf]
  %v91 = vld [vmem:[%s1 + $0x90] sm:$0xf]
  %v92 = vld [vmem:[%s1 + $0x94] sm:$0xf]
  %v93 = vld [vmem:[%s1 + $0x98] sm:$0xf]
  %v94 = vld [vmem:[%s1 + $0x9c] sm:$0xf]
  %v95 = vld [vmem:[%s1 + $0xa0] sm:$0xf]
  %v96 = vld [vmem:[%s1 + $0xa4] sm:$0xf]
  %v97 = vld [vmem:[%s1 + $0xa8] sm:$0xf]
  %v98 = vld [vmem:[%s1 + $0xac] sm:$0xf]
  %v99 = vld [vmem:[%s1 + $0xb0] sm:$0xf]
  %v100 = vld [vmem:[%s1 + $0xb4] sm:$0xf]
  %v101 = vld [vmem:[%s1 + $0xb8] sm:$0xf]
  %v102 = vld [vmem:[%s1 + $0xbc] sm:$0xf]
  %v103 = vld [vmem:[%s1 + $0xc0] sm:$0xf]
  %v104 = vld [vmem:[%s1 + $0xc4] sm:$0xf]
  %v105 = vld [vmem:[%s1 + $0xc8] sm:$0xf]
  %v106 = vld [vmem:[%s1 + $0xcc] sm:$0xf]
  %v107 = vld [vmem:[%s1 + $0xd0] sm:$0xf]
  %v108 = vld [vmem:[%s1 + $0xd4] sm:$0xf]
  %v109 = vld [vmem:[%s1 + $0xd8] sm:$0xf]
  %v110 = vld [vmem:[%s1 + $0xdc] sm:$0xf]
  %v111 = vld [vmem:[%s1 + $0xe0] sm:$0xf]
  %v112 = vld [vmem:[%s1 + $0xe4] sm:$0xf]
  %v113 = vld [vmem:[%s1 + $0xe8] sm:$0xf]
  %v114 = vld [vmem:[%s1 + $0xec] sm:$0xf]
  %v115 = vld [vmem:[%s1 + $0xf0] sm:$0xf]
  %v116 = vld [vmem:[%s1 + $0xf4] sm:$0xf]
  %v117 = vld [vmem:[%s1 + $0xf8] sm:$0xf]
  %v118 = vld [vmem:[%s1 + $0xfc] sm:$0xf]
  %v119 = vld [vmem:[%s2] sm:$0x1]
  %v121 = vlaneseq
  %v122 = vshrl.u32 %v121, 7
  %v123 = vsub.s32 0, %v122
  %v124 = vrot.slane %v119, %v123
  %v140 = vunpack.c.l.b16 %v41
  %v141 = vunpack.c.h.b16 %v41
  %v142 = vunpack.c.l.b16 %v42
  %v143 = vunpack.c.h.b16 %v42
  %v144 = vunpack.c.l.b16 %v43
  %v145 = vunpack.c.h.b16 %v43
  %v146 = vunpack.c.l.b16 %v44
  %v147 = vunpack.c.h.b16 %v44
  %v148 = vunpack.c.l.b16 %v45
  %v149 = vunpack.c.h.b16 %v45
  %v150 = vunpack.c.l.b16 %v46
  %v151 = vunpack.c.h.b16 %v46
  %v152 = vunpack.c.l.b16 %v47
  %v153 = vunpack.c.h.b16 %v47
  %v154 = vunpack.c.l.b16 %v48
  %v155 = vunpack.c.h.b16 %v48
  %v156 = vunpack.c.l.b16 %v49
  %v157 = vunpack.c.h.b16 %v49
  %v158 = vunpack.c.l.b16 %v50
  %v159 = vunpack.c.h.b16 %v50
  %v160 = vunpack.c.l.b16 %v51
  %v161 = vunpack.c.h.b16 %v51
  %v162 = vunpack.c.l.b16 %v52
  %v163 = vunpack.c.h.b16 %v52
  %v164 = vunpack.c.l.b16 %v53
  %v165 = vunpack.c.h.b16 %v53
  %v166 = vunpack.c.l.b16 %v54
  %v167 = vunpack.c.h.b16 %v54
  %v168 = vpack.c.b16 %v144, %v140
  %v169 = vpack.c.b16 %v145, %v141
  %v170 = vpack.c.b16 %v146, %v142
  %v171 = vpack.c.b16 %v147, %v143
  %v172 = vpack.c.b16 %v152, %v148
  %v173 = vpack.c.b16 %v153, %v149
  %v174 = vpack.c.b16 %v154, %v150
  %v175 = vpack.c.b16 %v155, %v151
  %v176 = vpack.c.b16 %v160, %v156
  %v177 = vpack.c.b16 %v161, %v157
  %v178 = vpack.c.b16 %v162, %v158
  %v179 = vpack.c.b16 %v163, %v159
  %v180 = vpack.c.b16 %v164, %v164
  %v181 = vpack.c.b16 %v165, %v165
  %v182 = vpack.c.b16 %v166, %v166
  %v183 = vpack.c.b16 %v167, %v167
  %v264 = vunpack.c.l.b16 %v55
  %v265 = vunpack.c.l.b16 %v56
  %v266 = vunpack.c.l.b16 %v57
  %v267 = vunpack.c.l.b16 %v58
  %v268 = vunpack.c.l.b16 %v59
  %v269 = vunpack.c.l.b16 %v60
  %v270 = vunpack.c.l.b16 %v61
  %v271 = vunpack.c.l.b16 %v62
  %v272 = vunpack.c.l.b16 %v63
  %v273 = vunpack.c.l.b16 %v64
  %v274 = vunpack.c.l.b16 %v65
  %v275 = vunpack.c.l.b16 %v66
  %v276 = vunpack.c.l.b16 %v67
  %v277 = vunpack.c.l.b16 %v68
  %v278 = vunpack.c.l.b16 %v69
  %v279 = vunpack.c.l.b16 %v70
  %v280 = vunpack.c.l.b16 %v71
  %v281 = vunpack.c.l.b16 %v72
  %v282 = vunpack.c.l.b16 %v73
  %v283 = vunpack.c.l.b16 %v74
  %v284 = vunpack.c.l.b16 %v75
  %v285 = vunpack.c.l.b16 %v76
  %v286 = vunpack.c.l.b16 %v77
  %v287 = vunpack.c.l.b16 %v78
  %v288 = vunpack.c.l.b16 %v79
  %v289 = vunpack.c.l.b16 %v80
  %v290 = vunpack.c.l.b16 %v81
  %v291 = vunpack.c.l.b16 %v82
  %v292 = vunpack.c.l.b16 %v83
  %v293 = vunpack.c.l.b16 %v84
  %v294 = vunpack.c.l.b16 %v85
  %v295 = vunpack.c.l.b16 %v86
  %v296 = vunpack.c.l.b16 %v87
  %v297 = vunpack.c.l.b16 %v88
  %v298 = vunpack.c.l.b16 %v89
  %v299 = vunpack.c.l.b16 %v90
  %v300 = vunpack.c.l.b16 %v91
  %v301 = vunpack.c.l.b16 %v92
  %v302 = vunpack.c.l.b16 %v93
  %v303 = vunpack.c.l.b16 %v94
  %v304 = vunpack.c.l.b16 %v95
  %v305 = vunpack.c.l.b16 %v96
  %v306 = vunpack.c.l.b16 %v97
  %v307 = vunpack.c.l.b16 %v98
  %v308 = vunpack.c.l.b16 %v99
  %v309 = vunpack.c.l.b16 %v100
  %v310 = vunpack.c.l.b16 %v101
  %v311 = vunpack.c.l.b16 %v102
  %v312 = vunpack.c.l.b16 %v103
  %v313 = vunpack.c.l.b16 %v104
  %v314 = vunpack.c.l.b16 %v105
  %v315 = vunpack.c.l.b16 %v106
  %v316 = vunpack.c.l.b16 %v107
  %v317 = vunpack.c.l.b16 %v108
  %v318 = vunpack.c.l.b16 %v109
  %v319 = vunpack.c.l.b16 %v110
  %v320 = vunpack.c.l.b16 %v111
  %v321 = vunpack.c.l.b16 %v112
  %v322 = vunpack.c.l.b16 %v113
  %v323 = vunpack.c.l.b16 %v114
  %v324 = vunpack.c.l.b16 %v115
  %v325 = vunpack.c.l.b16 %v116
  %v326 = vunpack.c.l.b16 %v117
  %v327 = vunpack.c.l.b16 %v118
  %v328 = vpack.c.b16 %v265, %v264
  %v329 = vpack.c.b16 %v267, %v266
  %v330 = vpack.c.b16 %v269, %v268
  %v331 = vpack.c.b16 %v271, %v270
  %v332 = vpack.c.b16 %v273, %v272
  %v333 = vpack.c.b16 %v275, %v274
  %v334 = vpack.c.b16 %v277, %v276
  %v335 = vpack.c.b16 %v279, %v278
  %v336 = vpack.c.b16 %v281, %v280
  %v337 = vpack.c.b16 %v283, %v282
  %v338 = vpack.c.b16 %v285, %v284
  %v339 = vpack.c.b16 %v287, %v286
  %v340 = vpack.c.b16 %v289, %v288
  %v341 = vpack.c.b16 %v291, %v290
  %v342 = vpack.c.b16 %v293, %v292
  %v343 = vpack.c.b16 %v295, %v294
  %v344 = vpack.c.b16 %v297, %v296
  %v345 = vpack.c.b16 %v299, %v298
  %v346 = vpack.c.b16 %v301, %v300
  %v347 = vpack.c.b16 %v303, %v302
  %v348 = vpack.c.b16 %v305, %v304
  %v349 = vpack.c.b16 %v307, %v306
  %v350 = vpack.c.b16 %v309, %v308
  %v351 = vpack.c.b16 %v311, %v310
  %v352 = vpack.c.b16 %v313, %v312
  %v353 = vpack.c.b16 %v315, %v314
  %v354 = vpack.c.b16 %v317, %v316
  %v355 = vpack.c.b16 %v319, %v318
  %v356 = vpack.c.b16 %v321, %v320
  %v357 = vpack.c.b16 %v323, %v322
  %v358 = vpack.c.b16 %v325, %v324
  %v359 = vpack.c.b16 %v327, %v326
  %392 = vmatprep.subr.bf16.mxu0 0
  %393 = vmatpush1.bf16.msra.mxu0 %v335
  %394 = vmatprep.subr.bf16.mxu0 0
  %395 = vmatpush1.bf16.msra.mxu0 %v334
  %396 = vmatprep.subr.bf16.mxu0 0
  %397 = vmatpush1.bf16.msra.mxu0 %v333
  %398 = vmatprep.subr.bf16.mxu0 0
  %399 = vmatpush1.bf16.msra.mxu0 %v332
  %400 = vmatprep.subr.bf16.mxu0 0
  %401 = vmatpush1.bf16.msra.mxu0 %v331
  %402 = vmatprep.subr.bf16.mxu0 0
  %403 = vmatpush1.bf16.msra.mxu0 %v330
  %404 = vmatprep.subr.bf16.mxu0 0
  %405 = vmatpush1.bf16.msra.mxu0 %v329
  %406 = vmatprep.subr.bf16.mxu0 0
  %407 = vmatpush1.bf16.msra.mxu0 %v328
  %408 = vmatprep.subr.bf16.mxu0 0
  %409 = vmatpush2.bf16.msra.mxu0 %v343
  %410 = vmatprep.subr.bf16.mxu0 0
  %411 = vmatpush2.bf16.msra.mxu0 %v342
  %412 = vmatprep.subr.bf16.mxu0 0
  %413 = vmatpush2.bf16.msra.mxu0 %v341
  %414 = vmatprep.subr.bf16.mxu0 0
  %415 = vmatpush2.bf16.msra.mxu0 %v340
  %416 = vmatprep.subr.bf16.mxu0 0
  %417 = vmatpush2.bf16.msra.mxu0 %v339
  %418 = vmatprep.subr.bf16.mxu0 0
  %419 = vmatpush2.bf16.msra.mxu0 %v338
  %420 = vmatprep.subr.bf16.mxu0 0
  %421 = vmatpush2.bf16.msra.mxu0 %v337
  %422 = vmatprep.subr.bf16.mxu0 0
  %423 = vmatpush2.bf16.msra.mxu0 %v336
  %424 = vmatprep.mubr.bf16.mxu0 %v169
  %425 = vmatmul.mubr.bf16.gmra.mxu0 %v168
  %v426 = vpop.f32.mrf.mxu0
  %v427 = vadd.f32 %v124, %v426
  %v428 = vpop.f32.mrf.mxu0
  %v429 = vpop.f32.mrf.mxu0
  %v430 = vadd.f32 %v124, %v429
  %v431 = vpop.f32.mrf.mxu0
  %432 = vmatprep.mubr.bf16.mxu0 %v173
  %433 = vmatmul.mubr.bf16.gmra.mxu0 %v172
  %v434 = vpop.f32.mrf.mxu0
  %v435 = vadd.f32 %v124, %v434
  %v436 = vpop.f32.mrf.mxu0
  %v437 = vpop.f32.mrf.mxu0
  %v438 = vadd.f32 %v124, %v437
  %v439 = vpop.f32.mrf.mxu0
  %440 = vmatprep.mubr.bf16.mxu0 %v177
  %441 = vmatmul.mubr.bf16.gmra.mxu0 %v176
  %v442 = vpop.f32.mrf.mxu0
  %v443 = vadd.f32 %v124, %v442
  %v444 = vpop.f32.mrf.mxu0
  %v445 = vpop.f32.mrf.mxu0
  %v446 = vadd.f32 %v124, %v445
  %v447 = vpop.f32.mrf.mxu0
  %448 = vmatprep.mubr.bf16.mxu0 %v181
  %449 = vmatmul.mubr.bf16.gmra.mxu0 %v180
  %v450 = vpop.f32.mrf.mxu0
  %v451 = vadd.f32 %v124, %v450
  %v452 = vpop.f32.mrf.mxu0
  %v453 = vpop.f32.mrf.mxu0
  %v454 = vpop.f32.mrf.mxu0
  %455 = vdwg.mxu0
  %456 = vmatprep.subr.bf16.mxu0 0
  %457 = vmatpush1.bf16.msra.mxu0 %v351
  %458 = vmatprep.subr.bf16.mxu0 0
  %459 = vmatpush1.bf16.msra.mxu0 %v350
  %460 = vmatprep.subr.bf16.mxu0 0
  %461 = vmatpush1.bf16.msra.mxu0 %v349
  %462 = vmatprep.subr.bf16.mxu0 0
  %463 = vmatpush1.bf16.msra.mxu0 %v348
  %464 = vmatprep.subr.bf16.mxu0 0
  %465 = vmatpush1.bf16.msra.mxu0 %v347
  %466 = vmatprep.subr.bf16.mxu0 0
  %467 = vmatpush1.bf16.msra.mxu0 %v346
  %468 = vmatprep.subr.bf16.mxu0 0
  %469 = vmatpush1.bf16.msra.mxu0 %v345
  %470 = vmatprep.subr.bf16.mxu0 0
  %471 = vmatpush1.bf16.msra.mxu0 %v344
  %472 = vmatprep.subr.bf16.mxu0 0
  %473 = vmatpush2.bf16.msra.mxu0 %v359
  %474 = vmatprep.subr.bf16.mxu0 0
  %475 = vmatpush2.bf16.msra.mxu0 %v358
  %476 = vmatprep.subr.bf16.mxu0 0
  %477 = vmatpush2.bf16.msra.mxu0 %v357
  %478 = vmatprep.subr.bf16.mxu0 0
  %479 = vmatpush2.bf16.msra.mxu0 %v356
  %480 = vmatprep.subr.bf16.mxu0 0
  %481 = vmatpush2.bf16.msra.mxu0 %v355
  %482 = vmatprep.subr.bf16.mxu0 0
  %483 = vmatpush2.bf16.msra.mxu0 %v354
  %484 = vmatprep.subr.bf16.mxu0 0
  %485 = vmatpush2.bf16.msra.mxu0 %v353
  %486 = vmatprep.subr.bf16.mxu0 0
  %487 = vmatpush2.bf16.msra.mxu0 %v352
  %488 = vmatprep.mubr.bf16.mxu0 %v171
  %489 = vmatmul.mubr.bf16.gmra.mxu0 %v170
  %v490 = vpop.f32.mrf.mxu0
  %v491 = vadd.f32 %v427, %v490
  %v492 = vpop.f32.mrf.mxu0
  %v493 = vpop.f32.mrf.mxu0
  %v494 = vadd.f32 %v430, %v493
  %v495 = vpop.f32.mrf.mxu0
  %496 = vmatprep.mubr.bf16.mxu0 %v175
  %497 = vmatmul.mubr.bf16.gmra.mxu0 %v174
  %v498 = vpop.f32.mrf.mxu0
  %v499 = vadd.f32 %v435, %v498
  %v500 = vpop.f32.mrf.mxu0
  %v501 = vpop.f32.mrf.mxu0
  %v502 = vadd.f32 %v438, %v501
  %v503 = vpop.f32.mrf.mxu0
  %504 = vmatprep.mubr.bf16.mxu0 %v179
  %505 = vmatmul.mubr.bf16.gmra.mxu0 %v178
  %v506 = vpop.f32.mrf.mxu0
  %v507 = vadd.f32 %v443, %v506
  %v508 = vpop.f32.mrf.mxu0
  %v509 = vpop.f32.mrf.mxu0
  %v510 = vadd.f32 %v446, %v509
  %v511 = vpop.f32.mrf.mxu0
  %512 = vmatprep.mubr.bf16.mxu0 %v183
  %513 = vmatmul.mubr.bf16.gmra.mxu0 %v182
  %v514 = vpop.f32.mrf.mxu0
  %v515 = vadd.f32 %v451, %v514
  %v516 = vpop.f32.mrf.mxu0
  %v517 = vpop.f32.mrf.mxu0
  %v518 = vpop.f32.mrf.mxu0
  %519 = vdwg.mxu0
  %v520 = vmax.f32 %v491, 0.0
  %v521 = vmax.f32 %v494, 0.0
  %v522 = vmax.f32 %v499, 0.0
  %v523 = vmax.f32 %v502, 0.0
  %v524 = vmax.f32 %v507, 0.0
  %v525 = vmax.f32 %v510, 0.0
  %v526 = vmax.f32 %v515, 0.0
  %v527 = vpack.c.bf16 %v521, %v520
  %v528 = vpack.c.bf16 %v523, %v522
  %v529 = vpack.c.bf16 %v525, %v524
  %v530 = vpack.c.bf16 %v526, %v526
  %v535 = vunpack.c.l.b16 %v527
  %v536 = vunpack.c.h.b16 %v527
  %v537 = vunpack.c.l.b16 %v528
  %v538 = vunpack.c.h.b16 %v528
  %v539 = vunpack.c.l.b16 %v529
  %v540 = vunpack.c.h.b16 %v529
  %v541 = vunpack.c.l.b16 %v530
  %v542 = vpack.c.b16 %v535, %v535
  %v543 = vpack.c.b16 %v536, %v536
  %v544 = vpack.c.b16 %v537, %v537
  %v545 = vpack.c.b16 %v538, %v538
  %v546 = vpack.c.b16 %v539, %v539
  %v547 = vpack.c.b16 %v540, %v540
  %v548 = vpack.c.b16 %v541, %v541
  %vm556 = vcmask 257024
  %557 = vst.msk [vmem:[#allocation2] sm:$0xf] %vm556, %v542
  %558 = vst.msk [vmem:[#allocation2 + $0x4] sm:$0xf] %vm556, %v543
  %559 = vst.msk [vmem:[#allocation2 + $0x8] sm:$0xf] %vm556, %v544
  %560 = vst.msk [vmem:[#allocation2 + $0xc] sm:$0xf] %vm556, %v545
  %561 = vst.msk [vmem:[#allocation2 + $0x10] sm:$0xf] %vm556, %v546
  %562 = vst.msk [vmem:[#allocation2 + $0x14] sm:$0xf] %vm556, %v547
  %vm563 = vcmask 253952
  %564 = vst.msk [vmem:[#allocation2 + $0x18] sm:$0x1] %vm563, %v548
  %v565 = vld [vmem:[#allocation2] sm:$0x1]
  %v566 = vld [vmem:[%s3] sm:$0xf]
  %v567 = vld [vmem:[%s3 + $0x4] sm:$0xf]
  %v568 = vld [vmem:[%s3 + $0x8] sm:$0xf]
  %v569 = vld [vmem:[%s3 + $0xc] sm:$0xf]
  %v570 = vld [vmem:[#allocation2] sm:$0x2]
  %v571 = vld [vmem:[%s3 + $0x10] sm:$0xf]
  %v572 = vld [vmem:[%s3 + $0x14] sm:$0xf]
  %v573 = vld [vmem:[%s3 + $0x18] sm:$0xf]
  %v574 = vld [vmem:[%s3 + $0x1c] sm:$0xf]
  %v576 = vunpack.c.l.b16 %v570
  %v577 = vpack.c.b16 %v576, %v576
  %v578 = vrot.slane %v577, 1
  %v583 = vunpack.c.l.b16 %v571
  %v584 = vunpack.c.l.b16 %v572
  %v585 = vunpack.c.l.b16 %v573
  %v586 = vunpack.c.l.b16 %v574
  %v587 = vpack.c.b16 %v584, %v583
  %v588 = vpack.c.b16 %v586, %v585
  %vm591 = vcmask 261120
  %v593 = vsel %vm591, %v578, 0
  %595 = vmatprep.subr.bf16.mxu0 0
  %596 = vmatpush1.bf16.msra.mxu0 0
  %597 = vmatprep.subr.bf16.mxu0 0
  %598 = vmatpush1.bf16.msra.mxu0 0
  %599 = vmatprep.subr.bf16.mxu0 0
  %600 = vmatpush1.bf16.msra.mxu0 0
  %601 = vmatprep.subr.bf16.mxu0 0
  %602 = vmatpush1.bf16.msra.mxu0 0
  %603 = vmatprep.subr.bf16.mxu0 0
  %604 = vmatpush1.bf16.msra.mxu0 0
  %605 = vmatprep.subr.bf16.mxu0 0
  %606 = vmatpush1.bf16.msra.mxu0 0
  %607 = vmatprep.subr.bf16.mxu0 0
  %608 = vmatpush1.bf16.msra.mxu0 %v588
  %609 = vmatprep.subr.bf16.mxu0 0
  %610 = vmatpush1.bf16.msra.mxu0 %v587
  %611 = vmatprep.subr.bf16.mxu0 0
  %612 = vmatpush2.bf16.msra.mxu0 0
  %613 = vmatprep.subr.bf16.mxu0 0
  %614 = vmatpush2.bf16.msra.mxu0 0
  %615 = vmatprep.subr.bf16.mxu0 0
  %616 = vmatpush2.bf16.msra.mxu0 0
  %617 = vmatprep.subr.bf16.mxu0 0
  %618 = vmatpush2.bf16.msra.mxu0 0
  %619 = vmatprep.subr.bf16.mxu0 0
  %620 = vmatpush2.bf16.msra.mxu0 0
  %621 = vmatprep.subr.bf16.mxu0 0
  %622 = vmatpush2.bf16.msra.mxu0 0
  %623 = vmatprep.subr.bf16.mxu0 0
  %624 = vmatpush2.bf16.msra.mxu0 0
  %625 = vmatprep.subr.bf16.mxu0 0
  %626 = vmatpush2.bf16.msra.mxu0 0
  %627 = vmatprep.mubr.bf16.mxu0 0
  %628 = vmatmul.mubr.bf16.gmra.mxu0 %v593
  %v629 = vpop.f32.mrf.mxu0
  %v630 = vadd.f32 0.0, %v629
  %v631 = vpop.f32.mrf.mxu0
  %v632 = vpop.f32.mrf.mxu0
  %v633 = vpop.f32.mrf.mxu0
  %634 = vdwg.mxu0
  %v639 = vunpack.c.l.b16 %v566
  %v640 = vunpack.c.l.b16 %v567
  %v641 = vunpack.c.l.b16 %v568
  %v642 = vunpack.c.l.b16 %v569
  %v643 = vpack.c.b16 %v640, %v639
  %v644 = vpack.c.b16 %v642, %v641
  %v648 = vsel %vm591, %v565, 0
  %650 = vmatprep.subr.bf16.mxu0 0
  %651 = vmatpush1.bf16.msra.mxu0 0
  %652 = vmatprep.subr.bf16.mxu0 0
  %653 = vmatpush1.bf16.msra.mxu0 0
  %654 = vmatprep.subr.bf16.mxu0 0
  %655 = vmatpush1.bf16.msra.mxu0 0
  %656 = vmatprep.subr.bf16.mxu0 0
  %657 = vmatpush1.bf16.msra.mxu0 0
  %658 = vmatprep.subr.bf16.mxu0 0
  %659 = vmatpush1.bf16.msra.mxu0 0
  %660 = vmatprep.subr.bf16.mxu0 0
  %661 = vmatpush1.bf16.msra.mxu0 0
  %662 = vmatprep.subr.bf16.mxu0 0
  %663 = vmatpush1.bf16.msra.mxu0 %v644
  %664 = vmatprep.subr.bf16.mxu0 0
  %665 = vmatpush1.bf16.msra.mxu0 %v643
  %666 = vmatprep.subr.bf16.mxu0 0
  %667 = vmatpush2.bf16.msra.mxu0 0
  %668 = vmatprep.subr.bf16.mxu0 0
  %669 = vmatpush2.bf16.msra.mxu0 0
  %670 = vmatprep.subr.bf16.mxu0 0
  %671 = vmatpush2.bf16.msra.mxu0 0
  %672 = vmatprep.subr.bf16.mxu0 0
  %673 = vmatpush2.bf16.msra.mxu0 0
  %674 = vmatprep.subr.bf16.mxu0 0
  %675 = vmatpush2.bf16.msra.mxu0 0
  %676 = vmatprep.subr.bf16.mxu0 0
  %677 = vmatpush2.bf16.msra.mxu0 0
  %678 = vmatprep.subr.bf16.mxu0 0
  %679 = vmatpush2.bf16.msra.mxu0 0
  %680 = vmatprep.subr.bf16.mxu0 0
  %681 = vmatpush2.bf16.msra.mxu0 0
  %682 = vmatprep.mubr.bf16.mxu0 0
  %683 = vmatmul.mubr.bf16.gmra.mxu0 %v648
  %v684 = vpop.f32.mrf.mxu0
  %v685 = vadd.f32 %v630, %v684
  %v686 = vpop.f32.mrf.mxu0
  %v687 = vpop.f32.mrf.mxu0
  %v688 = vpop.f32.mrf.mxu0
  %689 = vdwg.mxu0
  %v690 = vld [vmem:[#allocation2] sm:$0x4]
  %v691 = vld [vmem:[%s3 + $0x20] sm:$0xf]
  %v692 = vld [vmem:[%s3 + $0x24] sm:$0xf]
  %v693 = vld [vmem:[%s3 + $0x28] sm:$0xf]
  %v694 = vld [vmem:[%s3 + $0x2c] sm:$0xf]
  %v696 = vunpack.c.l.b16 %v690
  %v697 = vpack.c.b16 %v696, %v696
  %v698 = vrot.slane %v697, 2
  %v703 = vunpack.c.l.b16 %v691
  %v704 = vunpack.c.l.b16 %v692
  %v705 = vunpack.c.l.b16 %v693
  %v706 = vunpack.c.l.b16 %v694
  %v707 = vpack.c.b16 %v704, %v703
  %v708 = vpack.c.b16 %v706, %v705
  %v712 = vsel %vm591, %v698, 0
  %714 = vmatprep.subr.bf16.mxu0 0
  %715 = vmatpush1.bf16.msra.mxu0 0
  %716 = vmatprep.subr.bf16.mxu0 0
  %717 = vmatpush1.bf16.msra.mxu0 0
  %718 = vmatprep.subr.bf16.mxu0 0
  %719 = vmatpush1.bf16.msra.mxu0 0
  %720 = vmatprep.subr.bf16.mxu0 0
  %721 = vmatpush1.bf16.msra.mxu0 0
  %722 = vmatprep.subr.bf16.mxu0 0
  %723 = vmatpush1.bf16.msra.mxu0 0
  %724 = vmatprep.subr.bf16.mxu0 0
  %725 = vmatpush1.bf16.msra.mxu0 0
  %726 = vmatprep.subr.bf16.mxu0 0
  %727 = vmatpush1.bf16.msra.mxu0 %v708
  %728 = vmatprep.subr.bf16.mxu0 0
  %729 = vmatpush1.bf16.msra.mxu0 %v707
  %730 = vmatprep.subr.bf16.mxu0 0
  %731 = vmatpush2.bf16.msra.mxu0 0
  %732 = vmatprep.subr.bf16.mxu0 0
  %733 = vmatpush2.bf16.msra.mxu0 0
  %734 = vmatprep.subr.bf16.mxu0 0
  %735 = vmatpush2.bf16.msra.mxu0 0
  %736 = vmatprep.subr.bf16.mxu0 0
  %737 = vmatpush2.bf16.msra.mxu0 0
  %738 = vmatprep.subr.bf16.mxu0 0
  %739 = vmatpush2.bf16.msra.mxu0 0
  %740 = vmatprep.subr.bf16.mxu0 0
  %741 = vmatpush2.bf16.msra.mxu0 0
  %742 = vmatprep.subr.bf16.mxu0 0
  %743 = vmatpush2.bf16.msra.mxu0 0
  %744 = vmatprep.subr.bf16.mxu0 0
  %745 = vmatpush2.bf16.msra.mxu0 0
  %746 = vmatprep.mubr.bf16.mxu0 0
  %747 = vmatmul.mubr.bf16.gmra.mxu0 %v712
  %v748 = vpop.f32.mrf.mxu0
  %v749 = vadd.f32 0.0, %v748
  %v750 = vpop.f32.mrf.mxu0
  %v751 = vpop.f32.mrf.mxu0
  %v752 = vpop.f32.mrf.mxu0
  %753 = vdwg.mxu0
  %v754 = vadd.f32 %v685, %v749
  %v755 = vld [vmem:[#allocation2] sm:$0x8]
  %v756 = vld [vmem:[%s3 + $0x30] sm:$0xf]
  %v757 = vld [vmem:[%s3 + $0x34] sm:$0xf]
  %v758 = vld [vmem:[%s3 + $0x38] sm:$0xf]
  %v759 = vld [vmem:[%s3 + $0x3c] sm:$0xf]
  %v761 = vunpack.c.l.b16 %v755
  %v762 = vpack.c.b16 %v761, %v761
  %v763 = vrot.slane %v762, 3
  %v768 = vunpack.c.l.b16 %v756
  %v769 = vunpack.c.l.b16 %v757
  %v770 = vunpack.c.l.b16 %v758
  %v771 = vunpack.c.l.b16 %v759
  %v772 = vpack.c.b16 %v769, %v768
  %v773 = vpack.c.b16 %v771, %v770
  %v777 = vsel %vm591, %v763, 0
  %779 = vmatprep.subr.bf16.mxu0 0
  %780 = vmatpush1.bf16.msra.mxu0 0
  %781 = vmatprep.subr.bf16.mxu0 0
  %782 = vmatpush1.bf16.msra.mxu0 0
  %783 = vmatprep.subr.bf16.mxu0 0
  %784 = vmatpush1.bf16.msra.mxu0 0
  %785 = vmatprep.subr.bf16.mxu0 0
  %786 = vmatpush1.bf16.msra.mxu0 0
  %787 = vmatprep.subr.bf16.mxu0 0
  %788 = vmatpush1.bf16.msra.mxu0 0
  %789 = vmatprep.subr.bf16.mxu0 0
  %790 = vmatpush1.bf16.msra.mxu0 0
  %791 = vmatprep.subr.bf16.mxu0 0
  %792 = vmatpush1.bf16.msra.mxu0 %v773
  %793 = vmatprep.subr.bf16.mxu0 0
  %794 = vmatpush1.bf16.msra.mxu0 %v772
  %795 = vmatprep.subr.bf16.mxu0 0
  %796 = vmatpush2.bf16.msra.mxu0 0
  %797 = vmatprep.subr.bf16.mxu0 0
  %798 = vmatpush2.bf16.msra.mxu0 0
  %799 = vmatprep.subr.bf16.mxu0 0
  %800 = vmatpush2.bf16.msra.mxu0 0
  %801 = vmatprep.subr.bf16.mxu0 0
  %802 = vmatpush2.bf16.msra.mxu0 0
  %803 = vmatprep.subr.bf16.mxu0 0
  %804 = vmatpush2.bf16.msra.mxu0 0
  %805 = vmatprep.subr.bf16.mxu0 0
  %806 = vmatpush2.bf16.msra.mxu0 0
  %807 = vmatprep.subr.bf16.mxu0 0
  %808 = vmatpush2.bf16.msra.mxu0 0
  %809 = vmatprep.subr.bf16.mxu0 0
  %810 = vmatpush2.bf16.msra.mxu0 0
  %811 = vmatprep.mubr.bf16.mxu0 0
  %812 = vmatmul.mubr.bf16.gmra.mxu0 %v777
  %v813 = vpop.f32.mrf.mxu0
  %v814 = vadd.f32 0.0, %v813
  %v815 = vpop.f32.mrf.mxu0
  %v816 = vpop.f32.mrf.mxu0
  %v817 = vpop.f32.mrf.mxu0
  %818 = vdwg.mxu0
  %v819 = vadd.f32 %v754, %v814
  %v820 = vld [vmem:[#allocation2 + $0x4] sm:$0x1]
  %v821 = vld [vmem:[%s3 + $0x40] sm:$0xf]
  %v822 = vld [vmem:[%s3 + $0x44] sm:$0xf]
  %v823 = vld [vmem:[%s3 + $0x48] sm:$0xf]
  %v824 = vld [vmem:[%s3 + $0x4c] sm:$0xf]
  %v829 = vunpack.c.l.b16 %v821
  %v830 = vunpack.c.l.b16 %v822
  %v831 = vunpack.c.l.b16 %v823
  %v832 = vunpack.c.l.b16 %v824
  %v833 = vpack.c.b16 %v830, %v829
  %v834 = vpack.c.b16 %v832, %v831
  %v838 = vsel %vm591, %v820, 0
  %840 = vmatprep.subr.bf16.mxu0 0
  %841 = vmatpush1.bf16.msra.mxu0 0
  %842 = vmatprep.subr.bf16.mxu0 0
  %843 = vmatpush1.bf16.msra.mxu0 0
  %844 = vmatprep.subr.bf16.mxu0 0
  %845 = vmatpush1.bf16.msra.mxu0 0
  %846 = vmatprep.subr.bf16.mxu0 0
  %847 = vmatpush1.bf16.msra.mxu0 0
  %848 = vmatprep.subr.bf16.mxu0 0
  %849 = vmatpush1.bf16.msra.mxu0 0
  %850 = vmatprep.subr.bf16.mxu0 0
  %851 = vmatpush1.bf16.msra.mxu0 0
  %852 = vmatprep.subr.bf16.mxu0 0
  %853 = vmatpush1.bf16.msra.mxu0 %v834
  %854 = vmatprep.subr.bf16.mxu0 0
  %855 = vmatpush1.bf16.msra.mxu0 %v833
  %856 = vmatprep.subr.bf16.mxu0 0
  %857 = vmatpush2.bf16.msra.mxu0 0
  %858 = vmatprep.subr.bf16.mxu0 0
  %859 = vmatpush2.bf16.msra.mxu0 0
  %860 = vmatprep.subr.bf16.mxu0 0
  %861 = vmatpush2.bf16.msra.mxu0 0
  %862 = vmatprep.subr.bf16.mxu0 0
  %863 = vmatpush2.bf16.msra.mxu0 0
  %864 = vmatprep.subr.bf16.mxu0 0
  %865 = vmatpush2.bf16.msra.mxu0 0
  %866 = vmatprep.subr.bf16.mxu0 0
  %867 = vmatpush2.bf16.msra.mxu0 0
  %868 = vmatprep.subr.bf16.mxu0 0
  %869 = vmatpush2.bf16.msra.mxu0 0
  %870 = vmatprep.subr.bf16.mxu0 0
  %871 = vmatpush2.bf16.msra.mxu0 0
  %872 = vmatprep.mubr.bf16.mxu0 0
  %873 = vmatmul.mubr.bf16.gmra.mxu0 %v838
  %v874 = vpop.f32.mrf.mxu0
  %v875 = vadd.f32 0.0, %v874
  %v876 = vpop.f32.mrf.mxu0
  %v877 = vpop.f32.mrf.mxu0
  %v878 = vpop.f32.mrf.mxu0
  %879 = vdwg.mxu0
  %v880 = vadd.f32 %v819, %v875
  %v881 = vld [vmem:[#allocation2 + $0x4] sm:$0x2]
  %v882 = vld [vmem:[%s3 + $0x50] sm:$0xf]
  %v883 = vld [vmem:[%s3 + $0x54] sm:$0xf]
  %v884 = vld [vmem:[%s3 + $0x58] sm:$0xf]
  %v885 = vld [vmem:[%s3 + $0x5c] sm:$0xf]
  %v887 = vunpack.c.l.b16 %v881
  %v888 = vpack.c.b16 %v887, %v887
  %v889 = vrot.slane %v888, 1
  %v894 = vunpack.c.l.b16 %v882
  %v895 = vunpack.c.l.b16 %v883
  %v896 = vunpack.c.l.b16 %v884
  %v897 = vunpack.c.l.b16 %v885
  %v898 = vpack.c.b16 %v895, %v894
  %v899 = vpack.c.b16 %v897, %v896
  %v903 = vsel %vm591, %v889, 0
  %905 = vmatprep.subr.bf16.mxu0 0
  %906 = vmatpush1.bf16.msra.mxu0 0
  %907 = vmatprep.subr.bf16.mxu0 0
  %908 = vmatpush1.bf16.msra.mxu0 0
  %909 = vmatprep.subr.bf16.mxu0 0
  %910 = vmatpush1.bf16.msra.mxu0 0
  %911 = vmatprep.subr.bf16.mxu0 0
  %912 = vmatpush1.bf16.msra.mxu0 0
  %913 = vmatprep.subr.bf16.mxu0 0
  %914 = vmatpush1.bf16.msra.mxu0 0
  %915 = vmatprep.subr.bf16.mxu0 0
  %916 = vmatpush1.bf16.msra.mxu0 0
  %917 = vmatprep.subr.bf16.mxu0 0
  %918 = vmatpush1.bf16.msra.mxu0 %v899
  %919 = vmatprep.subr.bf16.mxu0 0
  %920 = vmatpush1.bf16.msra.mxu0 %v898
  %921 = vmatprep.subr.bf16.mxu0 0
  %922 = vmatpush2.bf16.msra.mxu0 0
  %923 = vmatprep.subr.bf16.mxu0 0
  %924 = vmatpush2.bf16.msra.mxu0 0
  %925 = vmatprep.subr.bf16.mxu0 0
  %926 = vmatpush2.bf16.msra.mxu0 0
  %927 = vmatprep.subr.bf16.mxu0 0
  %928 = vmatpush2.bf16.msra.mxu0 0
  %929 = vmatprep.subr.bf16.mxu0 0
  %930 = vmatpush2.bf16.msra.mxu0 0
  %931 = vmatprep.subr.bf16.mxu0 0
  %932 = vmatpush2.bf16.msra.mxu0 0
  %933 = vmatprep.subr.bf16.mxu0 0
  %934 = vmatpush2.bf16.msra.mxu0 0
  %935 = vmatprep.subr.bf16.mxu0 0
  %936 = vmatpush2.bf16.msra.mxu0 0
  %937 = vmatprep.mubr.bf16.mxu0 0
  %938 = vmatmul.mubr.bf16.gmra.mxu0 %v903
  %v939 = vpop.f32.mrf.mxu0
  %v940 = vadd.f32 0.0, %v939
  %v941 = vpop.f32.mrf.mxu0
  %v942 = vpop.f32.mrf.mxu0
  %v943 = vpop.f32.mrf.mxu0
  %944 = vdwg.mxu0
  %v945 = vadd.f32 %v880, %v940
  %v946 = vld [vmem:[#allocation2 + $0x4] sm:$0x4]
  %v947 = vld [vmem:[%s3 + $0x60] sm:$0xf]
  %v948 = vld [vmem:[%s3 + $0x64] sm:$0xf]
  %v949 = vld [vmem:[%s3 + $0x68] sm:$0xf]
  %v950 = vld [vmem:[%s3 + $0x6c] sm:$0xf]
  %v952 = vunpack.c.l.b16 %v946
  %v953 = vpack.c.b16 %v952, %v952
  %v954 = vrot.slane %v953, 2
  %v959 = vunpack.c.l.b16 %v947
  %v960 = vunpack.c.l.b16 %v948
  %v961 = vunpack.c.l.b16 %v949
  %v962 = vunpack.c.l.b16 %v950
  %v963 = vpack.c.b16 %v960, %v959
  %v964 = vpack.c.b16 %v962, %v961
  %v968 = vsel %vm591, %v954, 0
  %970 = vmatprep.subr.bf16.mxu0 0
  %971 = vmatpush1.bf16.msra.mxu0 0
  %972 = vmatprep.subr.bf16.mxu0 0
  %973 = vmatpush1.bf16.msra.mxu0 0
  %974 = vmatprep.subr.bf16.mxu0 0
  %975 = vmatpush1.bf16.msra.mxu0 0
  %976 = vmatprep.subr.bf16.mxu0 0
  %977 = vmatpush1.bf16.msra.mxu0 0
  %978 = vmatprep.subr.bf16.mxu0 0
  %979 = vmatpush1.bf16.msra.mxu0 0
  %980 = vmatprep.subr.bf16.mxu0 0
  %981 = vmatpush1.bf16.msra.mxu0 0
  %982 = vmatprep.subr.bf16.mxu0 0
  %983 = vmatpush1.bf16.msra.mxu0 %v964
  %984 = vmatprep.subr.bf16.mxu0 0
  %985 = vmatpush1.bf16.msra.mxu0 %v963
  %986 = vmatprep.subr.bf16.mxu0 0
  %987 = vmatpush2.bf16.msra.mxu0 0
  %988 = vmatprep.subr.bf16.mxu0 0
  %989 = vmatpush2.bf16.msra.mxu0 0
  %990 = vmatprep.subr.bf16.mxu0 0
  %991 = vmatpush2.bf16.msra.mxu0 0
  %992 = vmatprep.subr.bf16.mxu0 0
  %993 = vmatpush2.bf16.msra.mxu0 0
  %994 = vmatprep.subr.bf16.mxu0 0
  %995 = vmatpush2.bf16.msra.mxu0 0
  %996 = vmatprep.subr.bf16.mxu0 0
  %997 = vmatpush2.bf16.msra.mxu0 0
  %998 = vmatprep.subr.bf16.mxu0 0
  %999 = vmatpush2.bf16.msra.mxu0 0
  %1000 = vmatprep.subr.bf16.mxu0 0
  %1001 = vmatpush2.bf16.msra.mxu0 0
  %1002 = vmatprep.mubr.bf16.mxu0 0
  %1003 = vmatmul.mubr.bf16.gmra.mxu0 %v968
  %v1004 = vpop.f32.mrf.mxu0
  %v1005 = vadd.f32 0.0, %v1004
  %v1006 = vpop.f32.mrf.mxu0
  %v1007 = vpop.f32.mrf.mxu0
  %v1008 = vpop.f32.mrf.mxu0
  %1009 = vdwg.mxu0
  %v1010 = vadd.f32 %v945, %v1005
  %v1011 = vld [vmem:[#allocation2 + $0x4] sm:$0x8]
  %v1012 = vld [vmem:[%s3 + $0x70] sm:$0xf]
  %v1013 = vld [vmem:[%s3 + $0x74] sm:$0xf]
  %v1014 = vld [vmem:[%s3 + $0x78] sm:$0xf]
  %v1015 = vld [vmem:[%s3 + $0x7c] sm:$0xf]
  %v1017 = vunpack.c.l.b16 %v1011
  %v1018 = vpack.c.b16 %v1017, %v1017
  %v1019 = vrot.slane %v1018, 3
  %v1024 = vunpack.c.l.b16 %v1012
  %v1025 = vunpack.c.l.b16 %v1013
  %v1026 = vunpack.c.l.b16 %v1014
  %v1027 = vunpack.c.l.b16 %v1015
  %v1028 = vpack.c.b16 %v1025, %v1024
  %v1029 = vpack.c.b16 %v1027, %v1026
  %v1033 = vsel %vm591, %v1019, 0
  %1035 = vmatprep.subr.bf16.mxu0 0
  %1036 = vmatpush1.bf16.msra.mxu0 0
  %1037 = vmatprep.subr.bf16.mxu0 0
  %1038 = vmatpush1.bf16.msra.mxu0 0
  %1039 = vmatprep.subr.bf16.mxu0 0
  %1040 = vmatpush1.bf16.msra.mxu0 0
  %1041 = vmatprep.subr.bf16.mxu0 0
  %1042 = vmatpush1.bf16.msra.mxu0 0
  %1043 = vmatprep.subr.bf16.mxu0 0
  %1044 = vmatpush1.bf16.msra.mxu0 0
  %1045 = vmatprep.subr.bf16.mxu0 0
  %1046 = vmatpush1.bf16.msra.mxu0 0
  %1047 = vmatprep.subr.bf16.mxu0 0
  %1048 = vmatpush1.bf16.msra.mxu0 %v1029
  %1049 = vmatprep.subr.bf16.mxu0 0
  %1050 = vmatpush1.bf16.msra.mxu0 %v1028
  %1051 = vmatprep.subr.bf16.mxu0 0
  %1052 = vmatpush2.bf16.msra.mxu0 0
  %1053 = vmatprep.subr.bf16.mxu0 0
  %1054 = vmatpush2.bf16.msra.mxu0 0
  %1055 = vmatprep.subr.bf16.mxu0 0
  %1056 = vmatpush2.bf16.msra.mxu0 0
  %1057 = vmatprep.subr.bf16.mxu0 0
  %1058 = vmatpush2.bf16.msra.mxu0 0
  %1059 = vmatprep.subr.bf16.mxu0 0
  %1060 = vmatpush2.bf16.msra.mxu0 0
  %1061 = vmatprep.subr.bf16.mxu0 0
  %1062 = vmatpush2.bf16.msra.mxu0 0
  %1063 = vmatprep.subr.bf16.mxu0 0
  %1064 = vmatpush2.bf16.msra.mxu0 0
  %1065 = vmatprep.subr.bf16.mxu0 0
  %1066 = vmatpush2.bf16.msra.mxu0 0
  %1067 = vmatprep.mubr.bf16.mxu0 0
  %1068 = vmatmul.mubr.bf16.gmra.mxu0 %v1033
  %v1069 = vpop.f32.mrf.mxu0
  %v1070 = vadd.f32 0.0, %v1069
  %v1071 = vpop.f32.mrf.mxu0
  %v1072 = vpop.f32.mrf.mxu0
  %v1073 = vpop.f32.mrf.mxu0
  %1074 = vdwg.mxu0
  %v1075 = vadd.f32 %v1010, %v1070
  %v1076 = vld [vmem:[#allocation2 + $0x8] sm:$0x1]
  %v1077 = vld [vmem:[%s3 + $0x80] sm:$0xf]
  %v1078 = vld [vmem:[%s3 + $0x84] sm:$0xf]
  %v1079 = vld [vmem:[%s3 + $0x88] sm:$0xf]
  %v1080 = vld [vmem:[%s3 + $0x8c] sm:$0xf]
  %v1085 = vunpack.c.l.b16 %v1077
  %v1086 = vunpack.c.l.b16 %v1078
  %v1087 = vunpack.c.l.b16 %v1079
  %v1088 = vunpack.c.l.b16 %v1080
  %v1089 = vpack.c.b16 %v1086, %v1085
  %v1090 = vpack.c.b16 %v1088, %v1087
  %v1094 = vsel %vm591, %v1076, 0
  %1096 = vmatprep.subr.bf16.mxu0 0
  %1097 = vmatpush1.bf16.msra.mxu0 0
  %1098 = vmatprep.subr.bf16.mxu0 0
  %1099 = vmatpush1.bf16.msra.mxu0 0
  %1100 = vmatprep.subr.bf16.mxu0 0
  %1101 = vmatpush1.bf16.msra.mxu0 0
  %1102 = vmatprep.subr.bf16.mxu0 0
  %1103 = vmatpush1.bf16.msra.mxu0 0
  %1104 = vmatprep.subr.bf16.mxu0 0
  %1105 = vmatpush1.bf16.msra.mxu0 0
  %1106 = vmatprep.subr.bf16.mxu0 0
  %1107 = vmatpush1.bf16.msra.mxu0 0
  %1108 = vmatprep.subr.bf16.mxu0 0
  %1109 = vmatpush1.bf16.msra.mxu0 %v1090
  %1110 = vmatprep.subr.bf16.mxu0 0
  %1111 = vmatpush1.bf16.msra.mxu0 %v1089
  %1112 = vmatprep.subr.bf16.mxu0 0
  %1113 = vmatpush2.bf16.msra.mxu0 0
  %1114 = vmatprep.subr.bf16.mxu0 0
  %1115 = vmatpush2.bf16.msra.mxu0 0
  %1116 = vmatprep.subr.bf16.mxu0 0
  %1117 = vmatpush2.bf16.msra.mxu0 0
  %1118 = vmatprep.subr.bf16.mxu0 0
  %1119 = vmatpush2.bf16.msra.mxu0 0
  %1120 = vmatprep.subr.bf16.mxu0 0
  %1121 = vmatpush2.bf16.msra.mxu0 0
  %1122 = vmatprep.subr.bf16.mxu0 0
  %1123 = vmatpush2.bf16.msra.mxu0 0
  %1124 = vmatprep.subr.bf16.mxu0 0
  %1125 = vmatpush2.bf16.msra.mxu0 0
  %1126 = vmatprep.subr.bf16.mxu0 0
  %1127 = vmatpush2.bf16.msra.mxu0 0
  %1128 = vmatprep.mubr.bf16.mxu0 0
  %1129 = vmatmul.mubr.bf16.gmra.mxu0 %v1094
  %v1130 = vpop.f32.mrf.mxu0
  %v1131 = vadd.f32 0.0, %v1130
  %v1132 = vpop.f32.mrf.mxu0
  %v1133 = vpop.f32.mrf.mxu0
  %v1134 = vpop.f32.mrf.mxu0
  %1135 = vdwg.mxu0
  %v1136 = vadd.f32 %v1075, %v1131
  %v1137 = vld [vmem:[#allocation2 + $0x8] sm:$0x2]
  %v1138 = vld [vmem:[%s3 + $0x90] sm:$0xf]
  %v1139 = vld [vmem:[%s3 + $0x94] sm:$0xf]
  %v1140 = vld [vmem:[%s3 + $0x98] sm:$0xf]
  %v1141 = vld [vmem:[%s3 + $0x9c] sm:$0xf]
  %v1143 = vunpack.c.l.b16 %v1137
  %v1144 = vpack.c.b16 %v1143, %v1143
  %v1145 = vrot.slane %v1144, 1
  %v1150 = vunpack.c.l.b16 %v1138
  %v1151 = vunpack.c.l.b16 %v1139
  %v1152 = vunpack.c.l.b16 %v1140
  %v1153 = vunpack.c.l.b16 %v1141
  %v1154 = vpack.c.b16 %v1151, %v1150
  %v1155 = vpack.c.b16 %v1153, %v1152
  %v1159 = vsel %vm591, %v1145, 0
  %1161 = vmatprep.subr.bf16.mxu0 0
  %1162 = vmatpush1.bf16.msra.mxu0 0
  %1163 = vmatprep.subr.bf16.mxu0 0
  %1164 = vmatpush1.bf16.msra.mxu0 0
  %1165 = vmatprep.subr.bf16.mxu0 0
  %1166 = vmatpush1.bf16.msra.mxu0 0
  %1167 = vmatprep.subr.bf16.mxu0 0
  %1168 = vmatpush1.bf16.msra.mxu0 0
  %1169 = vmatprep.subr.bf16.mxu0 0
  %1170 = vmatpush1.bf16.msra.mxu0 0
  %1171 = vmatprep.subr.bf16.mxu0 0
  %1172 = vmatpush1.bf16.msra.mxu0 0
  %1173 = vmatprep.subr.bf16.mxu0 0
  %1174 = vmatpush1.bf16.msra.mxu0 %v1155
  %1175 = vmatprep.subr.bf16.mxu0 0
  %1176 = vmatpush1.bf16.msra.mxu0 %v1154
  %1177 = vmatprep.subr.bf16.mxu0 0
  %1178 = vmatpush2.bf16.msra.mxu0 0
  %1179 = vmatprep.subr.bf16.mxu0 0
  %1180 = vmatpush2.bf16.msra.mxu0 0
  %1181 = vmatprep.subr.bf16.mxu0 0
  %1182 = vmatpush2.bf16.msra.mxu0 0
  %1183 = vmatprep.subr.bf16.mxu0 0
  %1184 = vmatpush2.bf16.msra.mxu0 0
  %1185 = vmatprep.subr.bf16.mxu0 0
  %1186 = vmatpush2.bf16.msra.mxu0 0
  %1187 = vmatprep.subr.bf16.mxu0 0
  %1188 = vmatpush2.bf16.msra.mxu0 0
  %1189 = vmatprep.subr.bf16.mxu0 0
  %1190 = vmatpush2.bf16.msra.mxu0 0
  %1191 = vmatprep.subr.bf16.mxu0 0
  %1192 = vmatpush2.bf16.msra.mxu0 0
  %1193 = vmatprep.mubr.bf16.mxu0 0
  %1194 = vmatmul.mubr.bf16.gmra.mxu0 %v1159
  %v1195 = vpop.f32.mrf.mxu0
  %v1196 = vadd.f32 0.0, %v1195
  %v1197 = vpop.f32.mrf.mxu0
  %v1198 = vpop.f32.mrf.mxu0
  %v1199 = vpop.f32.mrf.mxu0
  %1200 = vdwg.mxu0
  %v1201 = vadd.f32 %v1136, %v1196
  %v1202 = vld [vmem:[#allocation2 + $0x8] sm:$0x4]
  %v1203 = vld [vmem:[%s3 + $0xa0] sm:$0xf]
  %v1204 = vld [vmem:[%s3 + $0xa4] sm:$0xf]
  %v1205 = vld [vmem:[%s3 + $0xa8] sm:$0xf]
  %v1206 = vld [vmem:[%s3 + $0xac] sm:$0xf]
  %v1208 = vunpack.c.l.b16 %v1202
  %v1209 = vpack.c.b16 %v1208, %v1208
  %v1210 = vrot.slane %v1209, 2
  %v1215 = vunpack.c.l.b16 %v1203
  %v1216 = vunpack.c.l.b16 %v1204
  %v1217 = vunpack.c.l.b16 %v1205
  %v1218 = vunpack.c.l.b16 %v1206
  %v1219 = vpack.c.b16 %v1216, %v1215
  %v1220 = vpack.c.b16 %v1218, %v1217
  %v1224 = vsel %vm591, %v1210, 0
  %1226 = vmatprep.subr.bf16.mxu0 0
  %1227 = vmatpush1.bf16.msra.mxu0 0
  %1228 = vmatprep.subr.bf16.mxu0 0
  %1229 = vmatpush1.bf16.msra.mxu0 0
  %1230 = vmatprep.subr.bf16.mxu0 0
  %1231 = vmatpush1.bf16.msra.mxu0 0
  %1232 = vmatprep.subr.bf16.mxu0 0
  %1233 = vmatpush1.bf16.msra.mxu0 0
  %1234 = vmatprep.subr.bf16.mxu0 0
  %1235 = vmatpush1.bf16.msra.mxu0 0
  %1236 = vmatprep.subr.bf16.mxu0 0
  %1237 = vmatpush1.bf16.msra.mxu0 0
  %1238 = vmatprep.subr.bf16.mxu0 0
  %1239 = vmatpush1.bf16.msra.mxu0 %v1220
  %1240 = vmatprep.subr.bf16.mxu0 0
  %1241 = vmatpush1.bf16.msra.mxu0 %v1219
  %1242 = vmatprep.subr.bf16.mxu0 0
  %1243 = vmatpush2.bf16.msra.mxu0 0
  %1244 = vmatprep.subr.bf16.mxu0 0
  %1245 = vmatpush2.bf16.msra.mxu0 0
  %1246 = vmatprep.subr.bf16.mxu0 0
  %1247 = vmatpush2.bf16.msra.mxu0 0
  %1248 = vmatprep.subr.bf16.mxu0 0
  %1249 = vmatpush2.bf16.msra.mxu0 0
  %1250 = vmatprep.subr.bf16.mxu0 0
  %1251 = vmatpush2.bf16.msra.mxu0 0
  %1252 = vmatprep.subr.bf16.mxu0 0
  %1253 = vmatpush2.bf16.msra.mxu0 0
  %1254 = vmatprep.subr.bf16.mxu0 0
  %1255 = vmatpush2.bf16.msra.mxu0 0
  %1256 = vmatprep.subr.bf16.mxu0 0
  %1257 = vmatpush2.bf16.msra.mxu0 0
  %1258 = vmatprep.mubr.bf16.mxu0 0
  %1259 = vmatmul.mubr.bf16.gmra.mxu0 %v1224
  %v1260 = vpop.f32.mrf.mxu0
  %v1261 = vadd.f32 0.0, %v1260
  %v1262 = vpop.f32.mrf.mxu0
  %v1263 = vpop.f32.mrf.mxu0
  %v1264 = vpop.f32.mrf.mxu0
  %1265 = vdwg.mxu0
  %v1266 = vadd.f32 %v1201, %v1261
  %v1267 = vld [vmem:[#allocation2 + $0x8] sm:$0x8]
  %v1268 = vld [vmem:[%s3 + $0xb0] sm:$0xf]
  %v1269 = vld [vmem:[%s3 + $0xb4] sm:$0xf]
  %v1270 = vld [vmem:[%s3 + $0xb8] sm:$0xf]
  %v1271 = vld [vmem:[%s3 + $0xbc] sm:$0xf]
  %v1273 = vunpack.c.l.b16 %v1267
  %v1274 = vpack.c.b16 %v1273, %v1273
  %v1275 = vrot.slane %v1274, 3
  %v1280 = vunpack.c.l.b16 %v1268
  %v1281 = vunpack.c.l.b16 %v1269
  %v1282 = vunpack.c.l.b16 %v1270
  %v1283 = vunpack.c.l.b16 %v1271
  %v1284 = vpack.c.b16 %v1281, %v1280
  %v1285 = vpack.c.b16 %v1283, %v1282
  %v1289 = vsel %vm591, %v1275, 0
  %1291 = vmatprep.subr.bf16.mxu0 0
  %1292 = vmatpush1.bf16.msra.mxu0 0
  %1293 = vmatprep.subr.bf16.mxu0 0
  %1294 = vmatpush1.bf16.msra.mxu0 0
  %1295 = vmatprep.subr.bf16.mxu0 0
  %1296 = vmatpush1.bf16.msra.mxu0 0
  %1297 = vmatprep.subr.bf16.mxu0 0
  %1298 = vmatpush1.bf16.msra.mxu0 0
  %1299 = vmatprep.subr.bf16.mxu0 0
  %1300 = vmatpush1.bf16.msra.mxu0 0
  %1301 = vmatprep.subr.bf16.mxu0 0
  %1302 = vmatpush1.bf16.msra.mxu0 0
  %1303 = vmatprep.subr.bf16.mxu0 0
  %1304 = vmatpush1.bf16.msra.mxu0 %v1285
  %1305 = vmatprep.subr.bf16.mxu0 0
  %1306 = vmatpush1.bf16.msra.mxu0 %v1284
  %1307 = vmatprep.subr.bf16.mxu0 0
  %1308 = vmatpush2.bf16.msra.mxu0 0
  %1309 = vmatprep.subr.bf16.mxu0 0
  %1310 = vmatpush2.bf16.msra.mxu0 0
  %1311 = vmatprep.subr.bf16.mxu0 0
  %1312 = vmatpush2.bf16.msra.mxu0 0
  %1313 = vmatprep.subr.bf16.mxu0 0
  %1314 = vmatpush2.bf16.msra.mxu0 0
  %1315 = vmatprep.subr.bf16.mxu0 0
  %1316 = vmatpush2.bf16.msra.mxu0 0
  %1317 = vmatprep.subr.bf16.mxu0 0
  %1318 = vmatpush2.bf16.msra.mxu0 0
  %1319 = vmatprep.subr.bf16.mxu0 0
  %1320 = vmatpush2.bf16.msra.mxu0 0
  %1321 = vmatprep.subr.bf16.mxu0 0
  %1322 = vmatpush2.bf16.msra.mxu0 0
  %1323 = vmatprep.mubr.bf16.mxu0 0
  %1324 = vmatmul.mubr.bf16.gmra.mxu0 %v1289
  %v1325 = vpop.f32.mrf.mxu0
  %v1326 = vadd.f32 0.0, %v1325
  %v1327 = vpop.f32.mrf.mxu0
  %v1328 = vpop.f32.mrf.mxu0
  %v1329 = vpop.f32.mrf.mxu0
  %1330 = vdwg.mxu0
  %v1331 = vadd.f32 %v1266, %v1326
  %v1332 = vld [vmem:[#allocation2 + $0xc] sm:$0x1]
  %v1333 = vld [vmem:[%s3 + $0xc0] sm:$0xf]
  %v1334 = vld [vmem:[%s3 + $0xc4] sm:$0xf]
  %v1335 = vld [vmem:[%s3 + $0xc8] sm:$0xf]
  %v1336 = vld [vmem:[%s3 + $0xcc] sm:$0xf]
  %v1341 = vunpack.c.l.b16 %v1333
  %v1342 = vunpack.c.l.b16 %v1334
  %v1343 = vunpack.c.l.b16 %v1335
  %v1344 = vunpack.c.l.b16 %v1336
  %v1345 = vpack.c.b16 %v1342, %v1341
  %v1346 = vpack.c.b16 %v1344, %v1343
  %v1350 = vsel %vm591, %v1332, 0
  %1352 = vmatprep.subr.bf16.mxu0 0
  %1353 = vmatpush1.bf16.msra.mxu0 0
  %1354 = vmatprep.subr.bf16.mxu0 0
  %1355 = vmatpush1.bf16.msra.mxu0 0
  %1356 = vmatprep.subr.bf16.mxu0 0
  %1357 = vmatpush1.bf16.msra.mxu0 0
  %1358 = vmatprep.subr.bf16.mxu0 0
  %1359 = vmatpush1.bf16.msra.mxu0 0
  %1360 = vmatprep.subr.bf16.mxu0 0
  %1361 = vmatpush1.bf16.msra.mxu0 0
  %1362 = vmatprep.subr.bf16.mxu0 0
  %1363 = vmatpush1.bf16.msra.mxu0 0
  %1364 = vmatprep.subr.bf16.mxu0 0
  %1365 = vmatpush1.bf16.msra.mxu0 %v1346
  %1366 = vmatprep.subr.bf16.mxu0 0
  %1367 = vmatpush1.bf16.msra.mxu0 %v1345
  %1368 = vmatprep.subr.bf16.mxu0 0
  %1369 = vmatpush2.bf16.msra.mxu0 0
  %1370 = vmatprep.subr.bf16.mxu0 0
  %1371 = vmatpush2.bf16.msra.mxu0 0
  %1372 = vmatprep.subr.bf16.mxu0 0
  %1373 = vmatpush2.bf16.msra.mxu0 0
  %1374 = vmatprep.subr.bf16.mxu0 0
  %1375 = vmatpush2.bf16.msra.mxu0 0
  %1376 = vmatprep.subr.bf16.mxu0 0
  %1377 = vmatpush2.bf16.msra.mxu0 0
  %1378 = vmatprep.subr.bf16.mxu0 0
  %1379 = vmatpush2.bf16.msra.mxu0 0
  %1380 = vmatprep.subr.bf16.mxu0 0
  %1381 = vmatpush2.bf16.msra.mxu0 0
  %1382 = vmatprep.subr.bf16.mxu0 0
  %1383 = vmatpush2.bf16.msra.mxu0 0
  %1384 = vmatprep.mubr.bf16.mxu0 0
  %1385 = vmatmul.mubr.bf16.gmra.mxu0 %v1350
  %v1386 = vpop.f32.mrf.mxu0
  %v1387 = vadd.f32 0.0, %v1386
  %v1388 = vpop.f32.mrf.mxu0
  %v1389 = vpop.f32.mrf.mxu0
  %v1390 = vpop.f32.mrf.mxu0
  %1391 = vdwg.mxu0
  %v1392 = vadd.f32 %v1331, %v1387
  %v1393 = vld [vmem:[#allocation2 + $0xc] sm:$0x2]
  %v1394 = vld [vmem:[%s3 + $0xd0] sm:$0xf]
  %v1395 = vld [vmem:[%s3 + $0xd4] sm:$0xf]
  %v1396 = vld [vmem:[%s3 + $0xd8] sm:$0xf]
  %v1397 = vld [vmem:[%s3 + $0xdc] sm:$0xf]
  %v1399 = vunpack.c.l.b16 %v1393
  %v1400 = vpack.c.b16 %v1399, %v1399
  %v1401 = vrot.slane %v1400, 1
  %v1406 = vunpack.c.l.b16 %v1394
  %v1407 = vunpack.c.l.b16 %v1395
  %v1408 = vunpack.c.l.b16 %v1396
  %v1409 = vunpack.c.l.b16 %v1397
  %v1410 = vpack.c.b16 %v1407, %v1406
  %v1411 = vpack.c.b16 %v1409, %v1408
  %v1415 = vsel %vm591, %v1401, 0
  %1417 = vmatprep.subr.bf16.mxu0 0
  %1418 = vmatpush1.bf16.msra.mxu0 0
  %1419 = vmatprep.subr.bf16.mxu0 0
  %1420 = vmatpush1.bf16.msra.mxu0 0
  %1421 = vmatprep.subr.bf16.mxu0 0
  %1422 = vmatpush1.bf16.msra.mxu0 0
  %1423 = vmatprep.subr.bf16.mxu0 0
  %1424 = vmatpush1.bf16.msra.mxu0 0
  %1425 = vmatprep.subr.bf16.mxu0 0
  %1426 = vmatpush1.bf16.msra.mxu0 0
  %1427 = vmatprep.subr.bf16.mxu0 0
  %1428 = vmatpush1.bf16.msra.mxu0 0
  %1429 = vmatprep.subr.bf16.mxu0 0
  %1430 = vmatpush1.bf16.msra.mxu0 %v1411
  %1431 = vmatprep.subr.bf16.mxu0 0
  %1432 = vmatpush1.bf16.msra.mxu0 %v1410
  %1433 = vmatprep.subr.bf16.mxu0 0
  %1434 = vmatpush2.bf16.msra.mxu0 0
  %1435 = vmatprep.subr.bf16.mxu0 0
  %1436 = vmatpush2.bf16.msra.mxu0 0
  %1437 = vmatprep.subr.bf16.mxu0 0
  %1438 = vmatpush2.bf16.msra.mxu0 0
  %1439 = vmatprep.subr.bf16.mxu0 0
  %1440 = vmatpush2.bf16.msra.mxu0 0
  %1441 = vmatprep.subr.bf16.mxu0 0
  %1442 = vmatpush2.bf16.msra.mxu0 0
  %1443 = vmatprep.subr.bf16.mxu0 0
  %1444 = vmatpush2.bf16.msra.mxu0 0
  %1445 = vmatprep.subr.bf16.mxu0 0
  %1446 = vmatpush2.bf16.msra.mxu0 0
  %1447 = vmatprep.subr.bf16.mxu0 0
  %1448 = vmatpush2.bf16.msra.mxu0 0
  %1449 = vmatprep.mubr.bf16.mxu0 0
  %1450 = vmatmul.mubr.bf16.gmra.mxu0 %v1415
  %v1451 = vpop.f32.mrf.mxu0
  %v1452 = vadd.f32 0.0, %v1451
  %v1453 = vpop.f32.mrf.mxu0
  %v1454 = vpop.f32.mrf.mxu0
  %v1455 = vpop.f32.mrf.mxu0
  %1456 = vdwg.mxu0
  %v1457 = vadd.f32 %v1392, %v1452
  %v1458 = vld [vmem:[#allocation2 + $0xc] sm:$0x4]
  %v1459 = vld [vmem:[%s3 + $0xe0] sm:$0xf]
  %v1460 = vld [vmem:[%s3 + $0xe4] sm:$0xf]
  %v1461 = vld [vmem:[%s3 + $0xe8] sm:$0xf]
  %v1462 = vld [vmem:[%s3 + $0xec] sm:$0xf]
  %v1464 = vunpack.c.l.b16 %v1458
  %v1465 = vpack.c.b16 %v1464, %v1464
  %v1466 = vrot.slane %v1465, 2
  %v1471 = vunpack.c.l.b16 %v1459
  %v1472 = vunpack.c.l.b16 %v1460
  %v1473 = vunpack.c.l.b16 %v1461
  %v1474 = vunpack.c.l.b16 %v1462
  %v1475 = vpack.c.b16 %v1472, %v1471
  %v1476 = vpack.c.b16 %v1474, %v1473
  %v1480 = vsel %vm591, %v1466, 0
  %1482 = vmatprep.subr.bf16.mxu0 0
  %1483 = vmatpush1.bf16.msra.mxu0 0
  %1484 = vmatprep.subr.bf16.mxu0 0
  %1485 = vmatpush1.bf16.msra.mxu0 0
  %1486 = vmatprep.subr.bf16.mxu0 0
  %1487 = vmatpush1.bf16.msra.mxu0 0
  %1488 = vmatprep.subr.bf16.mxu0 0
  %1489 = vmatpush1.bf16.msra.mxu0 0
  %1490 = vmatprep.subr.bf16.mxu0 0
  %1491 = vmatpush1.bf16.msra.mxu0 0
  %1492 = vmatprep.subr.bf16.mxu0 0
  %1493 = vmatpush1.bf16.msra.mxu0 0
  %1494 = vmatprep.subr.bf16.mxu0 0
  %1495 = vmatpush1.bf16.msra.mxu0 %v1476
  %1496 = vmatprep.subr.bf16.mxu0 0
  %1497 = vmatpush1.bf16.msra.mxu0 %v1475
  %1498 = vmatprep.subr.bf16.mxu0 0
  %1499 = vmatpush2.bf16.msra.mxu0 0
  %1500 = vmatprep.subr.bf16.mxu0 0
  %1501 = vmatpush2.bf16.msra.mxu0 0
  %1502 = vmatprep.subr.bf16.mxu0 0
  %1503 = vmatpush2.bf16.msra.mxu0 0
  %1504 = vmatprep.subr.bf16.mxu0 0
  %1505 = vmatpush2.bf16.msra.mxu0 0
  %1506 = vmatprep.subr.bf16.mxu0 0
  %1507 = vmatpush2.bf16.msra.mxu0 0
  %1508 = vmatprep.subr.bf16.mxu0 0
  %1509 = vmatpush2.bf16.msra.mxu0 0
  %1510 = vmatprep.subr.bf16.mxu0 0
  %1511 = vmatpush2.bf16.msra.mxu0 0
  %1512 = vmatprep.subr.bf16.mxu0 0
  %1513 = vmatpush2.bf16.msra.mxu0 0
  %1514 = vmatprep.mubr.bf16.mxu0 0
  %1515 = vmatmul.mubr.bf16.gmra.mxu0 %v1480
  %v1516 = vpop.f32.mrf.mxu0
  %v1517 = vadd.f32 0.0, %v1516
  %v1518 = vpop.f32.mrf.mxu0
  %v1519 = vpop.f32.mrf.mxu0
  %v1520 = vpop.f32.mrf.mxu0
  %1521 = vdwg.mxu0
  %v1522 = vadd.f32 %v1457, %v1517
  %v1523 = vld [vmem:[#allocation2 + $0xc] sm:$0x8]
  %v1524 = vld [vmem:[%s3 + $0xf0] sm:$0xf]
  %v1525 = vld [vmem:[%s3 + $0xf4] sm:$0xf]
  %v1526 = vld [vmem:[%s3 + $0xf8] sm:$0xf]
  %v1527 = vld [vmem:[%s3 + $0xfc] sm:$0xf]
  %v1529 = vunpack.c.l.b16 %v1523
  %v1530 = vpack.c.b16 %v1529, %v1529
  %v1531 = vrot.slane %v1530, 3
  %v1536 = vunpack.c.l.b16 %v1524
  %v1537 = vunpack.c.l.b16 %v1525
  %v1538 = vunpack.c.l.b16 %v1526
  %v1539 = vunpack.c.l.b16 %v1527
  %v1540 = vpack.c.b16 %v1537, %v1536
  %v1541 = vpack.c.b16 %v1539, %v1538
  %v1545 = vsel %vm591, %v1531, 0
  %1547 = vmatprep.subr.bf16.mxu0 0
  %1548 = vmatpush1.bf16.msra.mxu0 0
  %1549 = vmatprep.subr.bf16.mxu0 0
  %1550 = vmatpush1.bf16.msra.mxu0 0
  %1551 = vmatprep.subr.bf16.mxu0 0
  %1552 = vmatpush1.bf16.msra.mxu0 0
  %1553 = vmatprep.subr.bf16.mxu0 0
  %1554 = vmatpush1.bf16.msra.mxu0 0
  %1555 = vmatprep.subr.bf16.mxu0 0
  %1556 = vmatpush1.bf16.msra.mxu0 0
  %1557 = vmatprep.subr.bf16.mxu0 0
  %1558 = vmatpush1.bf16.msra.mxu0 0
  %1559 = vmatprep.subr.bf16.mxu0 0
  %1560 = vmatpush1.bf16.msra.mxu0 %v1541
  %1561 = vmatprep.subr.bf16.mxu0 0
  %1562 = vmatpush1.bf16.msra.mxu0 %v1540
  %1563 = vmatprep.subr.bf16.mxu0 0
  %1564 = vmatpush2.bf16.msra.mxu0 0
  %1565 = vmatprep.subr.bf16.mxu0 0
  %1566 = vmatpush2.bf16.msra.mxu0 0
  %1567 = vmatprep.subr.bf16.mxu0 0
  %1568 = vmatpush2.bf16.msra.mxu0 0
  %1569 = vmatprep.subr.bf16.mxu0 0
  %1570 = vmatpush2.bf16.msra.mxu0 0
  %1571 = vmatprep.subr.bf16.mxu0 0
  %1572 = vmatpush2.bf16.msra.mxu0 0
  %1573 = vmatprep.subr.bf16.mxu0 0
  %1574 = vmatpush2.bf16.msra.mxu0 0
  %1575 = vmatprep.subr.bf16.mxu0 0
  %1576 = vmatpush2.bf16.msra.mxu0 0
  %1577 = vmatprep.subr.bf16.mxu0 0
  %1578 = vmatpush2.bf16.msra.mxu0 0
  %1579 = vmatprep.mubr.bf16.mxu0 0
  %1580 = vmatmul.mubr.bf16.gmra.mxu0 %v1545
  %v1581 = vpop.f32.mrf.mxu0
  %v1582 = vadd.f32 0.0, %v1581
  %v1583 = vpop.f32.mrf.mxu0
  %v1584 = vpop.f32.mrf.mxu0
  %v1585 = vpop.f32.mrf.mxu0
  %1586 = vdwg.mxu0
  %v1587 = vadd.f32 %v1522, %v1582
  %v1588 = vld [vmem:[#allocation2 + $0x10] sm:$0x1]
  %v1589 = vld [vmem:[%s3 + $0x100] sm:$0xf]
  %v1590 = vld [vmem:[%s3 + $0x104] sm:$0xf]
  %v1591 = vld [vmem:[%s3 + $0x108] sm:$0xf]
  %v1592 = vld [vmem:[%s3 + $0x10c] sm:$0xf]
  %v1597 = vunpack.c.l.b16 %v1589
  %v1598 = vunpack.c.l.b16 %v1590
  %v1599 = vunpack.c.l.b16 %v1591
  %v1600 = vunpack.c.l.b16 %v1592
  %v1601 = vpack.c.b16 %v1598, %v1597
  %v1602 = vpack.c.b16 %v1600, %v1599
  %v1606 = vsel %vm591, %v1588, 0
  %1608 = vmatprep.subr.bf16.mxu0 0
  %1609 = vmatpush1.bf16.msra.mxu0 0
  %1610 = vmatprep.subr.bf16.mxu0 0
  %1611 = vmatpush1.bf16.msra.mxu0 0
  %1612 = vmatprep.subr.bf16.mxu0 0
  %1613 = vmatpush1.bf16.msra.mxu0 0
  %1614 = vmatprep.subr.bf16.mxu0 0
  %1615 = vmatpush1.bf16.msra.mxu0 0
  %1616 = vmatprep.subr.bf16.mxu0 0
  %1617 = vmatpush1.bf16.msra.mxu0 0
  %1618 = vmatprep.subr.bf16.mxu0 0
  %1619 = vmatpush1.bf16.msra.mxu0 0
  %1620 = vmatprep.subr.bf16.mxu0 0
  %1621 = vmatpush1.bf16.msra.mxu0 %v1602
  %1622 = vmatprep.subr.bf16.mxu0 0
  %1623 = vmatpush1.bf16.msra.mxu0 %v1601
  %1624 = vmatprep.subr.bf16.mxu0 0
  %1625 = vmatpush2.bf16.msra.mxu0 0
  %1626 = vmatprep.subr.bf16.mxu0 0
  %1627 = vmatpush2.bf16.msra.mxu0 0
  %1628 = vmatprep.subr.bf16.mxu0 0
  %1629 = vmatpush2.bf16.msra.mxu0 0
  %1630 = vmatprep.subr.bf16.mxu0 0
  %1631 = vmatpush2.bf16.msra.mxu0 0
  %1632 = vmatprep.subr.bf16.mxu0 0
  %1633 = vmatpush2.bf16.msra.mxu0 0
  %1634 = vmatprep.subr.bf16.mxu0 0
  %1635 = vmatpush2.bf16.msra.mxu0 0
  %1636 = vmatprep.subr.bf16.mxu0 0
  %1637 = vmatpush2.bf16.msra.mxu0 0
  %1638 = vmatprep.subr.bf16.mxu0 0
  %1639 = vmatpush2.bf16.msra.mxu0 0
  %1640 = vmatprep.mubr.bf16.mxu0 0
  %1641 = vmatmul.mubr.bf16.gmra.mxu0 %v1606
  %v1642 = vpop.f32.mrf.mxu0
  %v1643 = vadd.f32 0.0, %v1642
  %v1644 = vpop.f32.mrf.mxu0
  %v1645 = vpop.f32.mrf.mxu0
  %v1646 = vpop.f32.mrf.mxu0
  %1647 = vdwg.mxu0
  %v1648 = vadd.f32 %v1587, %v1643
  %v1649 = vld [vmem:[#allocation2 + $0x10] sm:$0x2]
  %v1650 = vld [vmem:[%s3 + $0x110] sm:$0xf]
  %v1651 = vld [vmem:[%s3 + $0x114] sm:$0xf]
  %v1652 = vld [vmem:[%s3 + $0x118] sm:$0xf]
  %v1653 = vld [vmem:[%s3 + $0x11c] sm:$0xf]
  %v1655 = vunpack.c.l.b16 %v1649
  %v1656 = vpack.c.b16 %v1655, %v1655
  %v1657 = vrot.slane %v1656, 1
  %v1662 = vunpack.c.l.b16 %v1650
  %v1663 = vunpack.c.l.b16 %v1651
  %v1664 = vunpack.c.l.b16 %v1652
  %v1665 = vunpack.c.l.b16 %v1653
  %v1666 = vpack.c.b16 %v1663, %v1662
  %v1667 = vpack.c.b16 %v1665, %v1664
  %v1671 = vsel %vm591, %v1657, 0
  %1673 = vmatprep.subr.bf16.mxu0 0
  %1674 = vmatpush1.bf16.msra.mxu0 0
  %1675 = vmatprep.subr.bf16.mxu0 0
  %1676 = vmatpush1.bf16.msra.mxu0 0
  %1677 = vmatprep.subr.bf16.mxu0 0
  %1678 = vmatpush1.bf16.msra.mxu0 0
  %1679 = vmatprep.subr.bf16.mxu0 0
  %1680 = vmatpush1.bf16.msra.mxu0 0
  %1681 = vmatprep.subr.bf16.mxu0 0
  %1682 = vmatpush1.bf16.msra.mxu0 0
  %1683 = vmatprep.subr.bf16.mxu0 0
  %1684 = vmatpush1.bf16.msra.mxu0 0
  %1685 = vmatprep.subr.bf16.mxu0 0
  %1686 = vmatpush1.bf16.msra.mxu0 %v1667
  %1687 = vmatprep.subr.bf16.mxu0 0
  %1688 = vmatpush1.bf16.msra.mxu0 %v1666
  %1689 = vmatprep.subr.bf16.mxu0 0
  %1690 = vmatpush2.bf16.msra.mxu0 0
  %1691 = vmatprep.subr.bf16.mxu0 0
  %1692 = vmatpush2.bf16.msra.mxu0 0
  %1693 = vmatprep.subr.bf16.mxu0 0
  %1694 = vmatpush2.bf16.msra.mxu0 0
  %1695 = vmatprep.subr.bf16.mxu0 0
  %1696 = vmatpush2.bf16.msra.mxu0 0
  %1697 = vmatprep.subr.bf16.mxu0 0
  %1698 = vmatpush2.bf16.msra.mxu0 0
  %1699 = vmatprep.subr.bf16.mxu0 0
  %1700 = vmatpush2.bf16.msra.mxu0 0
  %1701 = vmatprep.subr.bf16.mxu0 0
  %1702 = vmatpush2.bf16.msra.mxu0 0
  %1703 = vmatprep.subr.bf16.mxu0 0
  %1704 = vmatpush2.bf16.msra.mxu0 0
  %1705 = vmatprep.mubr.bf16.mxu0 0
  %1706 = vmatmul.mubr.bf16.gmra.mxu0 %v1671
  %v1707 = vpop.f32.mrf.mxu0
  %v1708 = vadd.f32 0.0, %v1707
  %v1709 = vpop.f32.mrf.mxu0
  %v1710 = vpop.f32.mrf.mxu0
  %v1711 = vpop.f32.mrf.mxu0
  %1712 = vdwg.mxu0
  %v1713 = vadd.f32 %v1648, %v1708
  %v1714 = vld [vmem:[#allocation2 + $0x10] sm:$0x4]
  %v1715 = vld [vmem:[%s3 + $0x120] sm:$0xf]
  %v1716 = vld [vmem:[%s3 + $0x124] sm:$0xf]
  %v1717 = vld [vmem:[%s3 + $0x128] sm:$0xf]
  %v1718 = vld [vmem:[%s3 + $0x12c] sm:$0xf]
  %v1720 = vunpack.c.l.b16 %v1714
  %v1721 = vpack.c.b16 %v1720, %v1720
  %v1722 = vrot.slane %v1721, 2
  %v1727 = vunpack.c.l.b16 %v1715
  %v1728 = vunpack.c.l.b16 %v1716
  %v1729 = vunpack.c.l.b16 %v1717
  %v1730 = vunpack.c.l.b16 %v1718
  %v1731 = vpack.c.b16 %v1728, %v1727
  %v1732 = vpack.c.b16 %v1730, %v1729
  %v1736 = vsel %vm591, %v1722, 0
  %1738 = vmatprep.subr.bf16.mxu0 0
  %1739 = vmatpush1.bf16.msra.mxu0 0
  %1740 = vmatprep.subr.bf16.mxu0 0
  %1741 = vmatpush1.bf16.msra.mxu0 0
  %1742 = vmatprep.subr.bf16.mxu0 0
  %1743 = vmatpush1.bf16.msra.mxu0 0
  %1744 = vmatprep.subr.bf16.mxu0 0
  %1745 = vmatpush1.bf16.msra.mxu0 0
  %1746 = vmatprep.subr.bf16.mxu0 0
  %1747 = vmatpush1.bf16.msra.mxu0 0
  %1748 = vmatprep.subr.bf16.mxu0 0
  %1749 = vmatpush1.bf16.msra.mxu0 0
  %1750 = vmatprep.subr.bf16.mxu0 0
  %1751 = vmatpush1.bf16.msra.mxu0 %v1732
  %1752 = vmatprep.subr.bf16.mxu0 0
  %1753 = vmatpush1.bf16.msra.mxu0 %v1731
  %1754 = vmatprep.subr.bf16.mxu0 0
  %1755 = vmatpush2.bf16.msra.mxu0 0
  %1756 = vmatprep.subr.bf16.mxu0 0
  %1757 = vmatpush2.bf16.msra.mxu0 0
  %1758 = vmatprep.subr.bf16.mxu0 0
  %1759 = vmatpush2.bf16.msra.mxu0 0
  %1760 = vmatprep.subr.bf16.mxu0 0
  %1761 = vmatpush2.bf16.msra.mxu0 0
  %1762 = vmatprep.subr.bf16.mxu0 0
  %1763 = vmatpush2.bf16.msra.mxu0 0
  %1764 = vmatprep.subr.bf16.mxu0 0
  %1765 = vmatpush2.bf16.msra.mxu0 0
  %1766 = vmatprep.subr.bf16.mxu0 0
  %1767 = vmatpush2.bf16.msra.mxu0 0
  %1768 = vmatprep.subr.bf16.mxu0 0
  %1769 = vmatpush2.bf16.msra.mxu0 0
  %1770 = vmatprep.mubr.bf16.mxu0 0
  %1771 = vmatmul.mubr.bf16.gmra.mxu0 %v1736
  %v1772 = vpop.f32.mrf.mxu0
  %v1773 = vadd.f32 0.0, %v1772
  %v1774 = vpop.f32.mrf.mxu0
  %v1775 = vpop.f32.mrf.mxu0
  %v1776 = vpop.f32.mrf.mxu0
  %1777 = vdwg.mxu0
  %v1778 = vadd.f32 %v1713, %v1773
  %v1779 = vld [vmem:[#allocation2 + $0x10] sm:$0x8]
  %v1780 = vld [vmem:[%s3 + $0x130] sm:$0xf]
  %v1781 = vld [vmem:[%s3 + $0x134] sm:$0xf]
  %v1782 = vld [vmem:[%s3 + $0x138] sm:$0xf]
  %v1783 = vld [vmem:[%s3 + $0x13c] sm:$0xf]
  %v1785 = vunpack.c.l.b16 %v1779
  %v1786 = vpack.c.b16 %v1785, %v1785
  %v1787 = vrot.slane %v1786, 3
  %v1792 = vunpack.c.l.b16 %v1780
  %v1793 = vunpack.c.l.b16 %v1781
  %v1794 = vunpack.c.l.b16 %v1782
  %v1795 = vunpack.c.l.b16 %v1783
  %v1796 = vpack.c.b16 %v1793, %v1792
  %v1797 = vpack.c.b16 %v1795, %v1794
  %v1801 = vsel %vm591, %v1787, 0
  %1803 = vmatprep.subr.bf16.mxu0 0
  %1804 = vmatpush1.bf16.msra.mxu0 0
  %1805 = vmatprep.subr.bf16.mxu0 0
  %1806 = vmatpush1.bf16.msra.mxu0 0
  %1807 = vmatprep.subr.bf16.mxu0 0
  %1808 = vmatpush1.bf16.msra.mxu0 0
  %1809 = vmatprep.subr.bf16.mxu0 0
  %1810 = vmatpush1.bf16.msra.mxu0 0
  %1811 = vmatprep.subr.bf16.mxu0 0
  %1812 = vmatpush1.bf16.msra.mxu0 0
  %1813 = vmatprep.subr.bf16.mxu0 0
  %1814 = vmatpush1.bf16.msra.mxu0 0
  %1815 = vmatprep.subr.bf16.mxu0 0
  %1816 = vmatpush1.bf16.msra.mxu0 %v1797
  %1817 = vmatprep.subr.bf16.mxu0 0
  %1818 = vmatpush1.bf16.msra.mxu0 %v1796
  %1819 = vmatprep.subr.bf16.mxu0 0
  %1820 = vmatpush2.bf16.msra.mxu0 0
  %1821 = vmatprep.subr.bf16.mxu0 0
  %1822 = vmatpush2.bf16.msra.mxu0 0
  %1823 = vmatprep.subr.bf16.mxu0 0
  %1824 = vmatpush2.bf16.msra.mxu0 0
  %1825 = vmatprep.subr.bf16.mxu0 0
  %1826 = vmatpush2.bf16.msra.mxu0 0
  %1827 = vmatprep.subr.bf16.mxu0 0
  %1828 = vmatpush2.bf16.msra.mxu0 0
  %1829 = vmatprep.subr.bf16.mxu0 0
  %1830 = vmatpush2.bf16.msra.mxu0 0
  %1831 = vmatprep.subr.bf16.mxu0 0
  %1832 = vmatpush2.bf16.msra.mxu0 0
  %1833 = vmatprep.subr.bf16.mxu0 0
  %1834 = vmatpush2.bf16.msra.mxu0 0
  %1835 = vmatprep.mubr.bf16.mxu0 0
  %1836 = vmatmul.mubr.bf16.gmra.mxu0 %v1801
  %v1837 = vpop.f32.mrf.mxu0
  %v1838 = vadd.f32 0.0, %v1837
  %v1839 = vpop.f32.mrf.mxu0
  %v1840 = vpop.f32.mrf.mxu0
  %v1841 = vpop.f32.mrf.mxu0
  %1842 = vdwg.mxu0
  %v1843 = vadd.f32 %v1778, %v1838
  %v1844 = vld [vmem:[#allocation2 + $0x14] sm:$0x1]
  %v1845 = vld [vmem:[%s3 + $0x140] sm:$0xf]
  %v1846 = vld [vmem:[%s3 + $0x144] sm:$0xf]
  %v1847 = vld [vmem:[%s3 + $0x148] sm:$0xf]
  %v1848 = vld [vmem:[%s3 + $0x14c] sm:$0xf]
  %v1853 = vunpack.c.l.b16 %v1845
  %v1854 = vunpack.c.l.b16 %v1846
  %v1855 = vunpack.c.l.b16 %v1847
  %v1856 = vunpack.c.l.b16 %v1848
  %v1857 = vpack.c.b16 %v1854, %v1853
  %v1858 = vpack.c.b16 %v1856, %v1855
  %v1862 = vsel %vm591, %v1844, 0
  %1864 = vmatprep.subr.bf16.mxu0 0
  %1865 = vmatpush1.bf16.msra.mxu0 0
  %1866 = vmatprep.subr.bf16.mxu0 0
  %1867 = vmatpush1.bf16.msra.mxu0 0
  %1868 = vmatprep.subr.bf16.mxu0 0
  %1869 = vmatpush1.bf16.msra.mxu0 0
  %1870 = vmatprep.subr.bf16.mxu0 0
  %1871 = vmatpush1.bf16.msra.mxu0 0
  %1872 = vmatprep.subr.bf16.mxu0 0
  %1873 = vmatpush1.bf16.msra.mxu0 0
  %1874 = vmatprep.subr.bf16.mxu0 0
  %1875 = vmatpush1.bf16.msra.mxu0 0
  %1876 = vmatprep.subr.bf16.mxu0 0
  %1877 = vmatpush1.bf16.msra.mxu0 %v1858
  %1878 = vmatprep.subr.bf16.mxu0 0
  %1879 = vmatpush1.bf16.msra.mxu0 %v1857
  %1880 = vmatprep.subr.bf16.mxu0 0
  %1881 = vmatpush2.bf16.msra.mxu0 0
  %1882 = vmatprep.subr.bf16.mxu0 0
  %1883 = vmatpush2.bf16.msra.mxu0 0
  %1884 = vmatprep.subr.bf16.mxu0 0
  %1885 = vmatpush2.bf16.msra.mxu0 0
  %1886 = vmatprep.subr.bf16.mxu0 0
  %1887 = vmatpush2.bf16.msra.mxu0 0
  %1888 = vmatprep.subr.bf16.mxu0 0
  %1889 = vmatpush2.bf16.msra.mxu0 0
  %1890 = vmatprep.subr.bf16.mxu0 0
  %1891 = vmatpush2.bf16.msra.mxu0 0
  %1892 = vmatprep.subr.bf16.mxu0 0
  %1893 = vmatpush2.bf16.msra.mxu0 0
  %1894 = vmatprep.subr.bf16.mxu0 0
  %1895 = vmatpush2.bf16.msra.mxu0 0
  %1896 = vmatprep.mubr.bf16.mxu0 0
  %1897 = vmatmul.mubr.bf16.gmra.mxu0 %v1862
  %v1898 = vpop.f32.mrf.mxu0
  %v1899 = vadd.f32 0.0, %v1898
  %v1900 = vpop.f32.mrf.mxu0
  %v1901 = vpop.f32.mrf.mxu0
  %v1902 = vpop.f32.mrf.mxu0
  %1903 = vdwg.mxu0
  %v1904 = vadd.f32 %v1843, %v1899
  %v1905 = vld [vmem:[#allocation2 + $0x14] sm:$0x2]
  %v1906 = vld [vmem:[%s3 + $0x150] sm:$0xf]
  %v1907 = vld [vmem:[%s3 + $0x154] sm:$0xf]
  %v1908 = vld [vmem:[%s3 + $0x158] sm:$0xf]
  %v1909 = vld [vmem:[%s3 + $0x15c] sm:$0xf]
  %v1911 = vunpack.c.l.b16 %v1905
  %v1912 = vpack.c.b16 %v1911, %v1911
  %v1913 = vrot.slane %v1912, 1
  %v1918 = vunpack.c.l.b16 %v1906
  %v1919 = vunpack.c.l.b16 %v1907
  %v1920 = vunpack.c.l.b16 %v1908
  %v1921 = vunpack.c.l.b16 %v1909
  %v1922 = vpack.c.b16 %v1919, %v1918
  %v1923 = vpack.c.b16 %v1921, %v1920
  %v1927 = vsel %vm591, %v1913, 0
  %1929 = vmatprep.subr.bf16.mxu0 0
  %1930 = vmatpush1.bf16.msra.mxu0 0
  %1931 = vmatprep.subr.bf16.mxu0 0
  %1932 = vmatpush1.bf16.msra.mxu0 0
  %1933 = vmatprep.subr.bf16.mxu0 0
  %1934 = vmatpush1.bf16.msra.mxu0 0
  %1935 = vmatprep.subr.bf16.mxu0 0
  %1936 = vmatpush1.bf16.msra.mxu0 0
  %1937 = vmatprep.subr.bf16.mxu0 0
  %1938 = vmatpush1.bf16.msra.mxu0 0
  %1939 = vmatprep.subr.bf16.mxu0 0
  %1940 = vmatpush1.bf16.msra.mxu0 0
  %1941 = vmatprep.subr.bf16.mxu0 0
  %1942 = vmatpush1.bf16.msra.mxu0 %v1923
  %1943 = vmatprep.subr.bf16.mxu0 0
  %1944 = vmatpush1.bf16.msra.mxu0 %v1922
  %1945 = vmatprep.subr.bf16.mxu0 0
  %1946 = vmatpush2.bf16.msra.mxu0 0
  %1947 = vmatprep.subr.bf16.mxu0 0
  %1948 = vmatpush2.bf16.msra.mxu0 0
  %1949 = vmatprep.subr.bf16.mxu0 0
  %1950 = vmatpush2.bf16.msra.mxu0 0
  %1951 = vmatprep.subr.bf16.mxu0 0
  %1952 = vmatpush2.bf16.msra.mxu0 0
  %1953 = vmatprep.subr.bf16.mxu0 0
  %1954 = vmatpush2.bf16.msra.mxu0 0
  %1955 = vmatprep.subr.bf16.mxu0 0
  %1956 = vmatpush2.bf16.msra.mxu0 0
  %1957 = vmatprep.subr.bf16.mxu0 0
  %1958 = vmatpush2.bf16.msra.mxu0 0
  %1959 = vmatprep.subr.bf16.mxu0 0
  %1960 = vmatpush2.bf16.msra.mxu0 0
  %1961 = vmatprep.mubr.bf16.mxu0 0
  %1962 = vmatmul.mubr.bf16.gmra.mxu0 %v1927
  %v1963 = vpop.f32.mrf.mxu0
  %v1964 = vadd.f32 0.0, %v1963
  %v1965 = vpop.f32.mrf.mxu0
  %v1966 = vpop.f32.mrf.mxu0
  %v1967 = vpop.f32.mrf.mxu0
  %1968 = vdwg.mxu0
  %v1969 = vadd.f32 %v1904, %v1964
  %v1970 = vld [vmem:[#allocation2 + $0x14] sm:$0x4]
  %v1971 = vld [vmem:[%s3 + $0x160] sm:$0xf]
  %v1972 = vld [vmem:[%s3 + $0x164] sm:$0xf]
  %v1973 = vld [vmem:[%s3 + $0x168] sm:$0xf]
  %v1974 = vld [vmem:[%s3 + $0x16c] sm:$0xf]
  %v1976 = vunpack.c.l.b16 %v1970
  %v1977 = vpack.c.b16 %v1976, %v1976
  %v1978 = vrot.slane %v1977, 2
  %v1983 = vunpack.c.l.b16 %v1971
  %v1984 = vunpack.c.l.b16 %v1972
  %v1985 = vunpack.c.l.b16 %v1973
  %v1986 = vunpack.c.l.b16 %v1974
  %v1987 = vpack.c.b16 %v1984, %v1983
  %v1988 = vpack.c.b16 %v1986, %v1985
  %v1992 = vsel %vm591, %v1978, 0
  %1994 = vmatprep.subr.bf16.mxu0 0
  %1995 = vmatpush1.bf16.msra.mxu0 0
  %1996 = vmatprep.subr.bf16.mxu0 0
  %1997 = vmatpush1.bf16.msra.mxu0 0
  %1998 = vmatprep.subr.bf16.mxu0 0
  %1999 = vmatpush1.bf16.msra.mxu0 0
  %2000 = vmatprep.subr.bf16.mxu0 0
  %2001 = vmatpush1.bf16.msra.mxu0 0
  %2002 = vmatprep.subr.bf16.mxu0 0
  %2003 = vmatpush1.bf16.msra.mxu0 0
  %2004 = vmatprep.subr.bf16.mxu0 0
  %2005 = vmatpush1.bf16.msra.mxu0 0
  %2006 = vmatprep.subr.bf16.mxu0 0
  %2007 = vmatpush1.bf16.msra.mxu0 %v1988
  %2008 = vmatprep.subr.bf16.mxu0 0
  %2009 = vmatpush1.bf16.msra.mxu0 %v1987
  %2010 = vmatprep.subr.bf16.mxu0 0
  %2011 = vmatpush2.bf16.msra.mxu0 0
  %2012 = vmatprep.subr.bf16.mxu0 0
  %2013 = vmatpush2.bf16.msra.mxu0 0
  %2014 = vmatprep.subr.bf16.mxu0 0
  %2015 = vmatpush2.bf16.msra.mxu0 0
  %2016 = vmatprep.subr.bf16.mxu0 0
  %2017 = vmatpush2.bf16.msra.mxu0 0
  %2018 = vmatprep.subr.bf16.mxu0 0
  %2019 = vmatpush2.bf16.msra.mxu0 0
  %2020 = vmatprep.subr.bf16.mxu0 0
  %2021 = vmatpush2.bf16.msra.mxu0 0
  %2022 = vmatprep.subr.bf16.mxu0 0
  %2023 = vmatpush2.bf16.msra.mxu0 0
  %2024 = vmatprep.subr.bf16.mxu0 0
  %2025 = vmatpush2.bf16.msra.mxu0 0
  %2026 = vmatprep.mubr.bf16.mxu0 0
  %2027 = vmatmul.mubr.bf16.gmra.mxu0 %v1992
  %v2028 = vpop.f32.mrf.mxu0
  %v2029 = vadd.f32 0.0, %v2028
  %v2030 = vpop.f32.mrf.mxu0
  %v2031 = vpop.f32.mrf.mxu0
  %v2032 = vpop.f32.mrf.mxu0
  %2033 = vdwg.mxu0
  %v2034 = vadd.f32 %v1969, %v2029
  %v2035 = vld [vmem:[#allocation2 + $0x14] sm:$0x8]
  %v2036 = vld [vmem:[%s3 + $0x170] sm:$0xf]
  %v2037 = vld [vmem:[%s3 + $0x174] sm:$0xf]
  %v2038 = vld [vmem:[%s3 + $0x178] sm:$0xf]
  %v2039 = vld [vmem:[%s3 + $0x17c] sm:$0xf]
  %v2041 = vunpack.c.l.b16 %v2035
  %v2042 = vpack.c.b16 %v2041, %v2041
  %v2043 = vrot.slane %v2042, 3
  %v2048 = vunpack.c.l.b16 %v2036
  %v2049 = vunpack.c.l.b16 %v2037
  %v2050 = vunpack.c.l.b16 %v2038
  %v2051 = vunpack.c.l.b16 %v2039
  %v2052 = vpack.c.b16 %v2049, %v2048
  %v2053 = vpack.c.b16 %v2051, %v2050
  %v2057 = vsel %vm591, %v2043, 0
  %2059 = vmatprep.subr.bf16.mxu0 0
  %2060 = vmatpush1.bf16.msra.mxu0 0
  %2061 = vmatprep.subr.bf16.mxu0 0
  %2062 = vmatpush1.bf16.msra.mxu0 0
  %2063 = vmatprep.subr.bf16.mxu0 0
  %2064 = vmatpush1.bf16.msra.mxu0 0
  %2065 = vmatprep.subr.bf16.mxu0 0
  %2066 = vmatpush1.bf16.msra.mxu0 0
  %2067 = vmatprep.subr.bf16.mxu0 0
  %2068 = vmatpush1.bf16.msra.mxu0 0
  %2069 = vmatprep.subr.bf16.mxu0 0
  %2070 = vmatpush1.bf16.msra.mxu0 0
  %2071 = vmatprep.subr.bf16.mxu0 0
  %2072 = vmatpush1.bf16.msra.mxu0 %v2053
  %2073 = vmatprep.subr.bf16.mxu0 0
  %2074 = vmatpush1.bf16.msra.mxu0 %v2052
  %2075 = vmatprep.subr.bf16.mxu0 0
  %2076 = vmatpush2.bf16.msra.mxu0 0
  %2077 = vmatprep.subr.bf16.mxu0 0
  %2078 = vmatpush2.bf16.msra.mxu0 0
  %2079 = vmatprep.subr.bf16.mxu0 0
  %2080 = vmatpush2.bf16.msra.mxu0 0
  %2081 = vmatprep.subr.bf16.mxu0 0
  %2082 = vmatpush2.bf16.msra.mxu0 0
  %2083 = vmatprep.subr.bf16.mxu0 0
  %2084 = vmatpush2.bf16.msra.mxu0 0
  %2085 = vmatprep.subr.bf16.mxu0 0
  %2086 = vmatpush2.bf16.msra.mxu0 0
  %2087 = vmatprep.subr.bf16.mxu0 0
  %2088 = vmatpush2.bf16.msra.mxu0 0
  %2089 = vmatprep.subr.bf16.mxu0 0
  %2090 = vmatpush2.bf16.msra.mxu0 0
  %2091 = vmatprep.mubr.bf16.mxu0 0
  %2092 = vmatmul.mubr.bf16.gmra.mxu0 %v2057
  %v2093 = vpop.f32.mrf.mxu0
  %v2094 = vadd.f32 0.0, %v2093
  %v2095 = vpop.f32.mrf.mxu0
  %v2096 = vpop.f32.mrf.mxu0
  %v2097 = vpop.f32.mrf.mxu0
  %2098 = vdwg.mxu0
  %v2099 = vadd.f32 %v2034, %v2094
  %v2100 = vld [vmem:[#allocation2 + $0x18] sm:$0x1]
  %v2101 = vld [vmem:[%s3 + $0x180] sm:$0xf]
  %v2102 = vld [vmem:[%s3 + $0x184] sm:$0xf]
  %v2103 = vld [vmem:[%s3 + $0x188] sm:$0xf]
  %v2104 = vld [vmem:[%s3 + $0x18c] sm:$0xf]
  %v2109 = vunpack.c.l.b16 %v2101
  %v2110 = vunpack.c.l.b16 %v2102
  %v2111 = vunpack.c.l.b16 %v2103
  %v2112 = vunpack.c.l.b16 %v2104
  %v2113 = vpack.c.b16 %v2110, %v2109
  %v2114 = vpack.c.b16 %v2112, %v2111
  %v2118 = vsel %vm591, %v2100, 0
  %2120 = vmatprep.subr.bf16.mxu0 0
  %2121 = vmatpush1.bf16.msra.mxu0 0
  %2122 = vmatprep.subr.bf16.mxu0 0
  %2123 = vmatpush1.bf16.msra.mxu0 0
  %2124 = vmatprep.subr.bf16.mxu0 0
  %2125 = vmatpush1.bf16.msra.mxu0 0
  %2126 = vmatprep.subr.bf16.mxu0 0
  %2127 = vmatpush1.bf16.msra.mxu0 0
  %2128 = vmatprep.subr.bf16.mxu0 0
  %2129 = vmatpush1.bf16.msra.mxu0 0
  %2130 = vmatprep.subr.bf16.mxu0 0
  %2131 = vmatpush1.bf16.msra.mxu0 0
  %2132 = vmatprep.subr.bf16.mxu0 0
  %2133 = vmatpush1.bf16.msra.mxu0 %v2114
  %2134 = vmatprep.subr.bf16.mxu0 0
  %2135 = vmatpush1.bf16.msra.mxu0 %v2113
  %2136 = vmatprep.subr.bf16.mxu0 0
  %2137 = vmatpush2.bf16.msra.mxu0 0
  %2138 = vmatprep.subr.bf16.mxu0 0
  %2139 = vmatpush2.bf16.msra.mxu0 0
  %2140 = vmatprep.subr.bf16.mxu0 0
  %2141 = vmatpush2.bf16.msra.mxu0 0
  %2142 = vmatprep.subr.bf16.mxu0 0
  %2143 = vmatpush2.bf16.msra.mxu0 0
  %2144 = vmatprep.subr.bf16.mxu0 0
  %2145 = vmatpush2.bf16.msra.mxu0 0
  %2146 = vmatprep.subr.bf16.mxu0 0
  %2147 = vmatpush2.bf16.msra.mxu0 0
  %2148 = vmatprep.subr.bf16.mxu0 0
  %2149 = vmatpush2.bf16.msra.mxu0 0
  %2150 = vmatprep.subr.bf16.mxu0 0
  %2151 = vmatpush2.bf16.msra.mxu0 0
  %2152 = vmatprep.mubr.bf16.mxu0 0
  %2153 = vmatmul.mubr.bf16.gmra.mxu0 %v2118
  %v2154 = vpop.f32.mrf.mxu0
  %v2155 = vadd.f32 0.0, %v2154
  %v2156 = vpop.f32.mrf.mxu0
  %v2157 = vpop.f32.mrf.mxu0
  %v2158 = vpop.f32.mrf.mxu0
  %2159 = vdwg.mxu0
  %v2160 = vadd.f32 %v2099, %v2155
  %v2161 = vld [vmem:[%s4] sm:$0x1]
  %v2163 = vlaneseq
  %v2164 = vshrl.u32 %v2163, 7
  %v2165 = vsub.s32 0, %v2164
  %v2166 = vrot.slane %v2161, %v2165
  %v2168 = vadd.f32 %v2160, %v2166
  %v2169 = vmax.f32 %v2168, 0.0
  %v2170 = vpack.c.bf16 %v2169, %v2169
  %v2171 = vld [vmem:[%s6] sm:$0xf]
  %v2172 = vld [vmem:[%s6 + $0x4] sm:$0xf]
  %v2173 = vld [vmem:[%s6 + $0x8] sm:$0xf]
  %v2174 = vld [vmem:[%s6 + $0xc] sm:$0xf]
  %v2175 = vld [vmem:[%s5] sm:$0x1]
  %v2176 = vld [vmem:[%s7] sm:$0x3]
  %vm2177 = vcmask 31744
  %v2179 = vsel %vm2177, %v2175, 0
  %vm2181 = vcmask 1041408
  %v2183 = vsel %vm2181, %v2176, 0
  %2185 = vmatprep.subr.bf16.mxu0 0
  %2186 = vmatpush1.bf16.msra.mxu0 0
  %2187 = vmatprep.subr.bf16.mxu0 0
  %2188 = vmatpush1.bf16.msra.mxu0 0
  %2189 = vmatprep.subr.bf16.mxu0 0
  %2190 = vmatpush1.bf16.msra.mxu0 0
  %2191 = vmatprep.subr.bf16.mxu0 0
  %2192 = vmatpush1.bf16.msra.mxu0 0
  %2193 = vmatprep.subr.bf16.mxu0 0
  %2194 = vmatpush1.bf16.msra.mxu0 0
  %2195 = vmatprep.subr.bf16.mxu0 0
  %2196 = vmatpush1.bf16.msra.mxu0 0
  %2197 = vmatprep.subr.bf16.mxu0 0
  %2198 = vmatpush1.bf16.msra.mxu0 0
  %2199 = vmatprep.subr.bf16.mxu0 0
  %2200 = vmatpush1.bf16.msra.mxu0 %v2183
  %2201 = vmatprep.subr.bf16.mxu0 0
  %2202 = vmatpush2.bf16.msra.mxu0 0
  %2203 = vmatprep.subr.bf16.mxu0 0
  %2204 = vmatpush2.bf16.msra.mxu0 0
  %2205 = vmatprep.subr.bf16.mxu0 0
  %2206 = vmatpush2.bf16.msra.mxu0 0
  %2207 = vmatprep.subr.bf16.mxu0 0
  %2208 = vmatpush2.bf16.msra.mxu0 0
  %2209 = vmatprep.subr.bf16.mxu0 0
  %2210 = vmatpush2.bf16.msra.mxu0 0
  %2211 = vmatprep.subr.bf16.mxu0 0
  %2212 = vmatpush2.bf16.msra.mxu0 0
  %2213 = vmatprep.subr.bf16.mxu0 0
  %2214 = vmatpush2.bf16.msra.mxu0 0
  %2215 = vmatprep.subr.bf16.mxu0 0
  %2216 = vmatpush2.bf16.msra.mxu0 0
  %2217 = vmatprep.mubr.bf16.mxu0 0
  %2218 = vmatmul.mubr.bf16.gmra.mxu0 %v2179
  %v2219 = vpop.f32.mrf.mxu0
  %v2220 = vadd.f32 0.0, %v2219
  %v2221 = vpop.f32.mrf.mxu0
  %v2222 = vpop.f32.mrf.mxu0
  %v2223 = vpop.f32.mrf.mxu0
  %2224 = vdwg.mxu0
  %v2229 = vunpack.c.l.b16 %v2171
  %v2230 = vunpack.c.l.b16 %v2172
  %v2231 = vunpack.c.l.b16 %v2173
  %v2232 = vunpack.c.l.b16 %v2174
  %v2233 = vpack.c.b16 %v2230, %v2229
  %v2234 = vpack.c.b16 %v2232, %v2231
  %v2238 = vsel %vm591, %v2170, 0
  %2240 = vmatprep.subr.bf16.mxu0 0
  %2241 = vmatpush1.bf16.msra.mxu0 0
  %2242 = vmatprep.subr.bf16.mxu0 0
  %2243 = vmatpush1.bf16.msra.mxu0 0
  %2244 = vmatprep.subr.bf16.mxu0 0
  %2245 = vmatpush1.bf16.msra.mxu0 0
  %2246 = vmatprep.subr.bf16.mxu0 0
  %2247 = vmatpush1.bf16.msra.mxu0 0
  %2248 = vmatprep.subr.bf16.mxu0 0
  %2249 = vmatpush1.bf16.msra.mxu0 0
  %2250 = vmatprep.subr.bf16.mxu0 0
  %2251 = vmatpush1.bf16.msra.mxu0 0
  %2252 = vmatprep.subr.bf16.mxu0 0
  %2253 = vmatpush1.bf16.msra.mxu0 %v2234
  %2254 = vmatprep.subr.bf16.mxu0 0
  %2255 = vmatpush1.bf16.msra.mxu0 %v2233
  %2256 = vmatprep.subr.bf16.mxu0 0
  %2257 = vmatpush2.bf16.msra.mxu0 0
  %2258 = vmatprep.subr.bf16.mxu0 0
  %2259 = vmatpush2.bf16.msra.mxu0 0
  %2260 = vmatprep.subr.bf16.mxu0 0
  %2261 = vmatpush2.bf16.msra.mxu0 0
  %2262 = vmatprep.subr.bf16.mxu0 0
  %2263 = vmatpush2.bf16.msra.mxu0 0
  %2264 = vmatprep.subr.bf16.mxu0 0
  %2265 = vmatpush2.bf16.msra.mxu0 0
  %2266 = vmatprep.subr.bf16.mxu0 0
  %2267 = vmatpush2.bf16.msra.mxu0 0
  %2268 = vmatprep.subr.bf16.mxu0 0
  %2269 = vmatpush2.bf16.msra.mxu0 0
  %2270 = vmatprep.subr.bf16.mxu0 0
  %2271 = vmatpush2.bf16.msra.mxu0 0
  %2272 = vmatprep.mubr.bf16.mxu0 0
  %2273 = vmatmul.mubr.bf16.gmra.mxu0 %v2238
  %v2274 = vpop.f32.mrf.mxu0
  %v2275 = vadd.f32 %v2220, %v2274
  %v2276 = vpop.f32.mrf.mxu0
  %v2277 = vpop.f32.mrf.mxu0
  %v2278 = vpop.f32.mrf.mxu0
  %2279 = vdwg.mxu0
  %v2280 = vld [vmem:[%s8] sm:$0x1]
  %v2282 = vlaneseq
  %v2283 = vshrl.u32 %v2282, 7
  %v2284 = vsub.s32 0, %v2283
  %v2285 = vrot.slane %v2280, %v2284
  %v2287 = vadd.f32 %v2275, %v2285
  %v2288 = vmax.f32 %v2287, 0.0
  %v2289 = vpack.c.bf16 %v2288, %v2288
  %v2290 = vld [vmem:[%s9] sm:$0xf]
  %v2291 = vld [vmem:[%s9 + $0x4] sm:$0xf]
  %v2292 = vld [vmem:[%s9 + $0x8] sm:$0xf]
  %v2293 = vld [vmem:[%s9 + $0xc] sm:$0xf]
  %v2294 = vld [vmem:[%s9 + $0x10] sm:$0xf]
  %v2295 = vld [vmem:[%s9 + $0x14] sm:$0xf]
  %v2296 = vld [vmem:[%s9 + $0x18] sm:$0xf]
  %v2297 = vld [vmem:[%s9 + $0x1c] sm:$0xf]
  %v2298 = vld [vmem:[%s9 + $0x20] sm:$0xf]
  %v2299 = vld [vmem:[%s9 + $0x24] sm:$0xf]
  %v2300 = vld [vmem:[%s9 + $0x28] sm:$0xf]
  %v2301 = vld [vmem:[%s9 + $0x2c] sm:$0xf]
  %v2302 = vld [vmem:[%s9 + $0x30] sm:$0xf]
  %v2303 = vld [vmem:[%s9 + $0x34] sm:$0xf]
  %v2304 = vld [vmem:[%s9 + $0x38] sm:$0xf]
  %v2305 = vld [vmem:[%s9 + $0x3c] sm:$0xf]
  %v2306 = vld [vmem:[#allocation3] sm:$0x1]
  %v2308 = vlaneseq
  %v2309 = vshrl.u32 %v2308, 7
  %v2310 = vsub.s32 0, %v2309
  %v2311 = vrot.slane %v2306, %v2310
  %v2329 = vunpack.c.l.b16 %v2290
  %v2330 = vunpack.c.l.b16 %v2291
  %v2331 = vunpack.c.l.b16 %v2292
  %v2332 = vunpack.c.l.b16 %v2293
  %v2333 = vunpack.c.l.b16 %v2294
  %v2334 = vunpack.c.l.b16 %v2295
  %v2335 = vunpack.c.l.b16 %v2296
  %v2336 = vunpack.c.l.b16 %v2297
  %v2337 = vunpack.c.l.b16 %v2298
  %v2338 = vunpack.c.l.b16 %v2299
  %v2339 = vunpack.c.l.b16 %v2300
  %v2340 = vunpack.c.l.b16 %v2301
  %v2341 = vunpack.c.l.b16 %v2302
  %v2342 = vunpack.c.l.b16 %v2303
  %v2343 = vunpack.c.l.b16 %v2304
  %v2344 = vunpack.c.l.b16 %v2305
  %v2345 = vpack.c.b16 %v2330, %v2329
  %v2346 = vpack.c.b16 %v2332, %v2331
  %v2347 = vpack.c.b16 %v2334, %v2333
  %v2348 = vpack.c.b16 %v2336, %v2335
  %v2349 = vpack.c.b16 %v2338, %v2337
  %v2350 = vpack.c.b16 %v2340, %v2339
  %v2351 = vpack.c.b16 %v2342, %v2341
  %v2352 = vpack.c.b16 %v2344, %v2343
  %2361 = vmatprep.subr.bf16.mxu0 0
  %2362 = vmatpush1.bf16.msra.mxu0 %v2352
  %2363 = vmatprep.subr.bf16.mxu0 0
  %2364 = vmatpush1.bf16.msra.mxu0 %v2351
  %2365 = vmatprep.subr.bf16.mxu0 0
  %2366 = vmatpush1.bf16.msra.mxu0 %v2350
  %2367 = vmatprep.subr.bf16.mxu0 0
  %2368 = vmatpush1.bf16.msra.mxu0 %v2349
  %2369 = vmatprep.subr.bf16.mxu0 0
  %2370 = vmatpush1.bf16.msra.mxu0 %v2348
  %2371 = vmatprep.subr.bf16.mxu0 0
  %2372 = vmatpush1.bf16.msra.mxu0 %v2347
  %2373 = vmatprep.subr.bf16.mxu0 0
  %2374 = vmatpush1.bf16.msra.mxu0 %v2346
  %2375 = vmatprep.subr.bf16.mxu0 0
  %2376 = vmatpush1.bf16.msra.mxu0 %v2345
  %2377 = vmatprep.subr.bf16.mxu0 0
  %2378 = vmatpush2.bf16.msra.mxu0 0
  %2379 = vmatprep.subr.bf16.mxu0 0
  %2380 = vmatpush2.bf16.msra.mxu0 0
  %2381 = vmatprep.subr.bf16.mxu0 0
  %2382 = vmatpush2.bf16.msra.mxu0 0
  %2383 = vmatprep.subr.bf16.mxu0 0
  %2384 = vmatpush2.bf16.msra.mxu0 0
  %2385 = vmatprep.subr.bf16.mxu0 0
  %2386 = vmatpush2.bf16.msra.mxu0 0
  %2387 = vmatprep.subr.bf16.mxu0 0
  %2388 = vmatpush2.bf16.msra.mxu0 0
  %2389 = vmatprep.subr.bf16.mxu0 0
  %2390 = vmatpush2.bf16.msra.mxu0 0
  %2391 = vmatprep.subr.bf16.mxu0 0
  %2392 = vmatpush2.bf16.msra.mxu0 0
  %2393 = vmatprep.mubr.bf16.mxu0 0
  %2394 = vmatmul.mubr.bf16.gmra.mxu0 %v2289
  %v2395 = vpop.f32.mrf.mxu0
  %v2396 = vadd.f32 %v2311, %v2395
  %v2397 = vpop.f32.mrf.mxu0
  %v2398 = vpop.f32.mrf.mxu0
  %v2399 = vpop.f32.mrf.mxu0
  %2400 = vdwg.mxu0
  %vm2401 = vcmask 1024
  %2402 = vst.msk [vmem:[%s11] sm:$0x3] %vm2401, %v2396
  // Predicated region
  $region46: #{value_net_forward.3} parent=0 // pred_check
    _
  $region47: #{value_net_forward.3} parent=0 // pred_check_branch
    %2404 = sbr.rel (0) target = $region49
  $region48: #{value_net_forward.3} parent=0 // pred_region
    _
  $region49: #{value_net_forward.3} parent=0 // pred_fallthru
    _
  // Predicated region
  $region50: #{value_net_forward.3} parent=0 // pred_check
    _
  $region51: #{value_net_forward.3} parent=0 // pred_check_branch
    %2406 = sbr.rel (0) target = $region53
  $region52: #{value_net_forward.3} parent=0 // pred_region
    _
  $region53: #{value_net_forward.3} parent=0 // pred_fallthru
    _

</llo_original>
